<compile_context>
chip_gen: v7x
topology: tpu7x:2x2x1
jax: 0.10.0
libtpu: 0.0.40
codegen_flags: <defaults>
</compile_context>

<pallas_src>
import jax
import jax.numpy as jnp
from jax.experimental import pallas as pl
from jax.experimental.pallas import tpu as pltpu

NUM_CLASSES = 50
FEAT_PRETRAINED = 1000
HID1 = 128
HID2 = 64

FEAT_PAD = 1024          # 1000 -> lane-aligned 1024 (extra cols are exact zeros)
OUT_PAD = 128            # 50   -> lane-aligned 128 (extra logits forced to -1e30)
NEG_BIG = -1.0e30


def _round_up(x, m):
    return (x + m - 1) // m * m


def tuned_model_kernel(x_ref,
                       w0_ref, b0_ref,   # stand-in backbone: (CHW, 1024) bf16, (1, 1024) f32
                       w1_ref, b1_ref,   # Linear(1000,128):  (1024, 128) bf16, (1, 128) f32
                       w2_ref, b2_ref,   # Linear(128, 64):   (128, 64)   bf16, (1, 64)  f32
                       w3_ref, b3_ref,   # Linear(64, 50):    (64, 128)   bf16, (1, 128) f32
                       o_ref):
    x = x_ref[...]                                                # (TM, CHW) bf16

    # "pretrained" feature extractor stand-in -> (TM, 1024), f32 accumulate
    feats = jnp.dot(x, w0_ref[...],
                    preferred_element_type=jnp.float32) + b0_ref[...]

    # new_layers: ReLU -> Linear(1000,128) -> ReLU -> Linear(128,64)
    h = jnp.maximum(feats, 0.0).astype(jnp.bfloat16)
    h = jnp.dot(h, w1_ref[...],
                preferred_element_type=jnp.float32) + b1_ref[...]
    h = jnp.maximum(h, 0.0).astype(jnp.bfloat16)
    h = jnp.dot(h, w2_ref[...],
                preferred_element_type=jnp.float32) + b2_ref[...]

    # top_layer: ReLU -> Linear(64,50) -> Softmax(dim=1)
    h = jnp.maximum(h, 0.0).astype(jnp.bfloat16)
    logits = jnp.dot(h, w3_ref[...],
                     preferred_element_type=jnp.float32) + b3_ref[...]
    # Padded class columns carry bias -1e30 -> exp(...) == 0, so they do not
    # perturb the softmax over the 50 real classes.
    m = jnp.max(logits, axis=-1, keepdims=True)
    e = jnp.exp(logits - m)
    o_ref[...] = e * pl.reciprocal(jnp.sum(e, axis=-1, keepdims=True), approx=True)


def tuned_model_forward(x_nchw, params, tm=128):
    """x_nchw: (B, C, H, W).  Returns (B, NUM_CLASSES) softmax probs (f32)."""
    (w0, b0, w1, b1, w2, b2, w3, b3) = params
    B = x_nchw.shape[0]
    chw = int(x_nchw.shape[1] * x_nchw.shape[2] * x_nchw.shape[3])

    # Row tile: MXU-filling 128 for large B, shrink (multiple of 8) for tiny B.
    tm = min(tm, _round_up(B, 8))
    b_pad = _round_up(B, tm)

    # Glue: flatten NCHW, pad batch rows, cast activations to bf16.
    x2d = x_nchw.reshape(B, -1).astype(jnp.bfloat16)
    if b_pad != B:
        x2d = jnp.pad(x2d, ((0, b_pad - B), (0, 0)))

    grid = (b_pad // tm,)
    resident = lambda shape: pl.BlockSpec(shape, lambda i: (0, 0))  # VMEM-resident weights

    out = pl.pallas_call(
        tuned_model_kernel,
        out_shape=jax.ShapeDtypeStruct((b_pad, OUT_PAD), jnp.float32),
        grid=grid,
        in_specs=[
            pl.BlockSpec((tm, chw), lambda i: (i, 0)),     # x tile, double-buffered
            resident((chw, FEAT_PAD)), resident((1, FEAT_PAD)),
            resident((FEAT_PAD, HID1)), resident((1, HID1)),
            resident((HID1, HID2)), resident((1, HID2)),
            resident((HID2, OUT_PAD)), resident((1, OUT_PAD)),
        ],
        out_specs=pl.BlockSpec((tm, OUT_PAD), lambda i: (i, 0)),
        compiler_params=pltpu.CompilerParams(
            dimension_semantics=("parallel",)),            # megacore on v7x
    )(x2d, w0, b0, w1, b1, w2, b2, w3, b3)

    return out[:B, :NUM_CLASSES]


def init_params(key, chw):
    """Deterministic init at logical shapes (PyTorch nn.Linear default U(+-1/sqrt(in))),
    then pad to lane-aligned shapes.  Weights stored (in, out) bf16; biases (1, out) f32."""
    ks = jax.random.split(key, 8)

    def lin(kw, kb, d_in, d_out):
        bound = 1.0 / jnp.sqrt(jnp.float32(d_in))
        w = jax.random.uniform(kw, (d_in, d_out), jnp.float32, -bound, bound)
        b = jax.random.uniform(kb, (1, d_out), jnp.float32, -bound, bound)
        return w, b

    w0, b0 = lin(ks[0], ks[1], chw, FEAT_PRETRAINED)
    w1, b1 = lin(ks[2], ks[3], FEAT_PRETRAINED, HID1)
    w2, b2 = lin(ks[4], ks[5], HID1, HID2)
    w3, b3 = lin(ks[6], ks[7], HID2, NUM_CLASSES)
    logical = (w0, b0, w1, b1, w2, b2, w3, b3)

    # Padded / bf16 variants for the kernel.
    w0p = jnp.pad(w0, ((0, 0), (0, FEAT_PAD - FEAT_PRETRAINED))).astype(jnp.bfloat16)
    b0p = jnp.pad(b0, ((0, 0), (0, FEAT_PAD - FEAT_PRETRAINED)))            # zeros -> ReLU(0)=0
    w1p = jnp.pad(w1, ((0, FEAT_PAD - FEAT_PRETRAINED), (0, 0))).astype(jnp.bfloat16)
    w2p = w2.astype(jnp.bfloat16)
    w3p = jnp.pad(w3, ((0, 0), (0, OUT_PAD - NUM_CLASSES))).astype(jnp.bfloat16)
    b3p = jnp.pad(b3, ((0, 0), (0, OUT_PAD - NUM_CLASSES)),
                  constant_values=NEG_BIG)                                  # padded logits -> -1e30
    padded = (w0p, b0p, w1p, b1, w2p, b2, w3p, b3p)
    return padded, logical


def reference_forward(x_nchw, logical_params):
    """Pure-f32 reference at logical (unpadded) shapes."""
    (w0, b0, w1, b1, w2, b2, w3, b3) = logical_params
    x = x_nchw.reshape(x_nchw.shape[0], -1).astype(jnp.float32)
    feats = x @ w0 + b0
    h = jnp.maximum(feats, 0.0) @ w1 + b1
    h = jnp.maximum(h, 0.0) @ w2 + b2
    logits = jnp.maximum(h, 0.0) @ w3 + b3
    return jax.nn.softmax(logits, axis=1)


if __name__ == "__main__":
    B, C, H, W = 2, 4, 16, 16
    key = jax.random.PRNGKey(0)
    kx, kp = jax.random.split(key)
    x = jax.random.normal(kx, (B, C, H, W), jnp.float32)
    padded_params, logical_params = init_params(kp, C * H * W)

    out = tuned_model_forward(x, padded_params)
    out = jax.block_until_ready(out)

    ref = reference_forward(x, logical_params)
    assert out.shape == (B, NUM_CLASSES)
    # Loosened tolerances: kernel uses bf16 matmul inputs + approx reciprocal.
    assert jnp.allclose(jnp.sum(out, axis=1), 1.0, atol=5e-3)
    assert jnp.allclose(out, ref, atol=2e-2, rtol=2e-2)
    print("KERNEL_OK")
</pallas_src>

<mosaic_0001>
module attributes {stable_mosaic.version = 11 : i64} {
  func.func @tuned_model_kernel(%arg0: i32, %arg1: memref<8x1024xbf16, #tpu.memory_space<vmem>>, %arg2: memref<1024x1024xbf16, #tpu.memory_space<vmem>>, %arg3: memref<1x1024xf32, #tpu.memory_space<vmem>>, %arg4: memref<1024x128xbf16, #tpu.memory_space<vmem>>, %arg5: memref<1x128xf32, #tpu.memory_space<vmem>>, %arg6: memref<128x64xbf16, #tpu.memory_space<vmem>>, %arg7: memref<1x64xf32, #tpu.memory_space<vmem>>, %arg8: memref<64x128xbf16, #tpu.memory_space<vmem>>, %arg9: memref<1x128xf32, #tpu.memory_space<vmem>>, %arg10: memref<8x128xf32, #tpu.memory_space<vmem>>) attributes {dimension_semantics = [#tpu.dimension_semantics<parallel>], iteration_bounds = array<i64: 1>, scalar_prefetch = 0 : i64, scratch_operands = 0 : i64, tpu.core_type = #tpu.core_type<tc>, window_params = [{transform_indices = @transform_0, window_bounds = array<i64: 8, 1024>}, {pipeline_mode = #tpu.pipeline_mode<synchronous>, transform_indices = @transform_1, window_bounds = array<i64: 1024, 1024>}, {pipeline_mode = #tpu.pipeline_mode<synchronous>, transform_indices = @transform_2, window_bounds = array<i64: 1, 1024>}, {pipeline_mode = #tpu.pipeline_mode<synchronous>, transform_indices = @transform_3, window_bounds = array<i64: 1024, 128>}, {pipeline_mode = #tpu.pipeline_mode<synchronous>, transform_indices = @transform_4, window_bounds = array<i64: 1, 128>}, {pipeline_mode = #tpu.pipeline_mode<synchronous>, transform_indices = @transform_5, window_bounds = array<i64: 128, 64>}, {pipeline_mode = #tpu.pipeline_mode<synchronous>, transform_indices = @transform_6, window_bounds = array<i64: 1, 64>}, {pipeline_mode = #tpu.pipeline_mode<synchronous>, transform_indices = @transform_7, window_bounds = array<i64: 64, 128>}, {pipeline_mode = #tpu.pipeline_mode<synchronous>, transform_indices = @transform_8, window_bounds = array<i64: 1, 128>}, {transform_indices = @transform_9, window_bounds = array<i64: 8, 128>}]} {
    %c0 = arith.constant 0 : index
    %c0_0 = arith.constant 0 : index
    %0 = vector.load %arg1[%c0, %c0_0] : memref<8x1024xbf16, #tpu.memory_space<vmem>>, vector<8x1024xbf16>
    %c0_1 = arith.constant 0 : index
    %c0_2 = arith.constant 0 : index
    %1 = vector.load %arg2[%c0_1, %c0_2] : memref<1024x1024xbf16, #tpu.memory_space<vmem>>, vector<1024x1024xbf16>
    %cst = arith.constant dense<0.000000e+00> : vector<8x1024xf32>
    %2 = tpu.matmul %0, %1, %cst {dimension_numbers = #tpu.dot_dimension_numbers<[1], [0], [0], [1], [0, 0, 1, 1], [], []>} : vector<8x1024xbf16>, vector<1024x1024xbf16>, vector<8x1024xf32> -> vector<8x1024xf32>
    %c0_3 = arith.constant 0 : index
    %c0_4 = arith.constant 0 : index
    %3 = vector.load %arg3[%c0_3, %c0_4] : memref<1x1024xf32, #tpu.memory_space<vmem>>, vector<1x1024xf32>
    %4 = vector.broadcast %3 : vector<1x1024xf32> to vector<8x1024xf32>
    %5 = arith.addf %2, %4 : vector<8x1024xf32>
    %cst_5 = arith.constant 0.000000e+00 : f32
    %6 = vector.broadcast %cst_5 : f32 to vector<8x1024xf32>
    %7 = arith.maximumf %5, %6 : vector<8x1024xf32>
    %8 = arith.truncf %7 : vector<8x1024xf32> to vector<8x1024xbf16>
    %c0_6 = arith.constant 0 : index
    %c0_7 = arith.constant 0 : index
    %9 = vector.load %arg4[%c0_6, %c0_7] : memref<1024x128xbf16, #tpu.memory_space<vmem>>, vector<1024x128xbf16>
    %cst_8 = arith.constant dense<0.000000e+00> : vector<8x128xf32>
    %10 = tpu.matmul %8, %9, %cst_8 {dimension_numbers = #tpu.dot_dimension_numbers<[1], [0], [0], [1], [0, 0, 1, 1], [], []>} : vector<8x1024xbf16>, vector<1024x128xbf16>, vector<8x128xf32> -> vector<8x128xf32>
    %c0_9 = arith.constant 0 : index
    %c0_10 = arith.constant 0 : index
    %11 = vector.load %arg5[%c0_9, %c0_10] : memref<1x128xf32, #tpu.memory_space<vmem>>, vector<1x128xf32>
    %12 = vector.broadcast %11 : vector<1x128xf32> to vector<8x128xf32>
    %13 = arith.addf %10, %12 : vector<8x128xf32>
    %cst_11 = arith.constant 0.000000e+00 : f32
    %14 = vector.broadcast %cst_11 : f32 to vector<8x128xf32>
    %15 = arith.maximumf %13, %14 : vector<8x128xf32>
    %16 = arith.truncf %15 : vector<8x128xf32> to vector<8x128xbf16>
    %c0_12 = arith.constant 0 : index
    %c0_13 = arith.constant 0 : index
    %17 = vector.load %arg6[%c0_12, %c0_13] : memref<128x64xbf16, #tpu.memory_space<vmem>>, vector<128x64xbf16>
    %cst_14 = arith.constant dense<0.000000e+00> : vector<8x64xf32>
    %18 = tpu.matmul %16, %17, %cst_14 {dimension_numbers = #tpu.dot_dimension_numbers<[1], [0], [0], [1], [0, 0, 1, 1], [], []>} : vector<8x128xbf16>, vector<128x64xbf16>, vector<8x64xf32> -> vector<8x64xf32>
    %c0_15 = arith.constant 0 : index
    %c0_16 = arith.constant 0 : index
    %19 = vector.load %arg7[%c0_15, %c0_16] : memref<1x64xf32, #tpu.memory_space<vmem>>, vector<1x64xf32>
    %20 = vector.broadcast %19 : vector<1x64xf32> to vector<8x64xf32>
    %21 = arith.addf %18, %20 : vector<8x64xf32>
    %cst_17 = arith.constant 0.000000e+00 : f32
    %22 = vector.broadcast %cst_17 : f32 to vector<8x64xf32>
    %23 = arith.maximumf %21, %22 : vector<8x64xf32>
    %24 = arith.truncf %23 : vector<8x64xf32> to vector<8x64xbf16>
    %c0_18 = arith.constant 0 : index
    %c0_19 = arith.constant 0 : index
    %25 = vector.load %arg8[%c0_18, %c0_19] : memref<64x128xbf16, #tpu.memory_space<vmem>>, vector<64x128xbf16>
    %cst_20 = arith.constant dense<0.000000e+00> : vector<8x128xf32>
    %26 = tpu.matmul %24, %25, %cst_20 {dimension_numbers = #tpu.dot_dimension_numbers<[1], [0], [0], [1], [0, 0, 1, 1], [], []>} : vector<8x64xbf16>, vector<64x128xbf16>, vector<8x128xf32> -> vector<8x128xf32>
    %c0_21 = arith.constant 0 : index
    %c0_22 = arith.constant 0 : index
    %27 = vector.load %arg9[%c0_21, %c0_22] : memref<1x128xf32, #tpu.memory_space<vmem>>, vector<1x128xf32>
    %28 = vector.broadcast %27 : vector<1x128xf32> to vector<8x128xf32>
    %29 = arith.addf %26, %28 : vector<8x128xf32>
    %cst_23 = arith.constant dense<0xFF800000> : vector<8xf32>
    %30 = vector.multi_reduction <maximumf>, %29, %cst_23 [1] : vector<8x128xf32> to vector<8xf32>
    %31 = vector.shape_cast %30 : vector<8xf32> to vector<8x1xf32>
    %32 = vector.broadcast %31 : vector<8x1xf32> to vector<8x128xf32>
    %33 = arith.subf %29, %32 : vector<8x128xf32>
    %34 = math.exp %33 : vector<8x128xf32>
    %cst_24 = arith.constant dense<0.000000e+00> : vector<8xf32>
    %35 = vector.multi_reduction <add>, %34, %cst_24 [1] : vector<8x128xf32> to vector<8xf32>
    %36 = vector.shape_cast %35 : vector<8xf32> to vector<8x1xf32>
    %37 = tpu.reciprocal %36 {approx = true} : vector<8x1xf32> -> vector<8x1xf32>
    %38 = vector.broadcast %37 : vector<8x1xf32> to vector<8x128xf32>
    %39 = arith.mulf %34, %38 : vector<8x128xf32>
    %c0_25 = arith.constant 0 : index
    %c0_26 = arith.constant 0 : index
    %40 = vector.load %arg10[%c0_25, %c0_26] : memref<8x128xf32, #tpu.memory_space<vmem>>, vector<8x128xf32>
    tpu.vector_store %arg10[%c0_25, %c0_26], %39 {strides = array<i32>} : memref<8x128xf32, #tpu.memory_space<vmem>>, vector<8x128xf32>,
    return
  }
  func.func @transform_0(%arg0: i32) -> (i32, i32) {
    %c0_i32 = arith.constant 0 : i32
    %c0_i32_0 = arith.constant 0 : i32
    return %arg0, %c0_i32 : i32, i32
  }
  func.func @transform_1(%arg0: i32) -> (i32, i32) {
    %c0_i32 = arith.constant 0 : i32
    %c0_i32_0 = arith.constant 0 : i32
    %c0_i32_1 = arith.constant 0 : i32
    return %c0_i32, %c0_i32_0 : i32, i32
  }
  func.func @transform_2(%arg0: i32) -> (i32, i32) {
    %c0_i32 = arith.constant 0 : i32
    %c0_i32_0 = arith.constant 0 : i32
    %c0_i32_1 = arith.constant 0 : i32
    return %c0_i32, %c0_i32_0 : i32, i32
  }
  func.func @transform_3(%arg0: i32) -> (i32, i32) {
    %c0_i32 = arith.constant 0 : i32
    %c0_i32_0 = arith.constant 0 : i32
    %c0_i32_1 = arith.constant 0 : i32
    return %c0_i32, %c0_i32_0 : i32, i32
  }
  func.func @transform_4(%arg0: i32) -> (i32, i32) {
    %c0_i32 = arith.constant 0 : i32
    %c0_i32_0 = arith.constant 0 : i32
    %c0_i32_1 = arith.constant 0 : i32
    return %c0_i32, %c0_i32_0 : i32, i32
  }
  func.func @transform_5(%arg0: i32) -> (i32, i32) {
    %c0_i32 = arith.constant 0 : i32
    %c0_i32_0 = arith.constant 0 : i32
    %c0_i32_1 = arith.constant 0 : i32
    return %c0_i32, %c0_i32_0 : i32, i32
  }
  func.func @transform_6(%arg0: i32) -> (i32, i32) {
    %c0_i32 = arith.constant 0 : i32
    %c0_i32_0 = arith.constant 0 : i32
    %c0_i32_1 = arith.constant 0 : i32
    return %c0_i32, %c0_i32_0 : i32, i32
  }
  func.func @transform_7(%arg0: i32) -> (i32, i32) {
    %c0_i32 = arith.constant 0 : i32
    %c0_i32_0 = arith.constant 0 : i32
    %c0_i32_1 = arith.constant 0 : i32
    return %c0_i32, %c0_i32_0 : i32, i32
  }
  func.func @transform_8(%arg0: i32) -> (i32, i32) {
    %c0_i32 = arith.constant 0 : i32
    %c0_i32_0 = arith.constant 0 : i32
    %c0_i32_1 = arith.constant 0 : i32
    return %c0_i32, %c0_i32_0 : i32, i32
  }
  func.func @transform_9(%arg0: i32) -> (i32, i32) {
    %c0_i32 = arith.constant 0 : i32
    %c0_i32_0 = arith.constant 0 : i32
    return %arg0, %c0_i32 : i32, i32
  }
}

</mosaic_0001>

<llo_original>
// kernel: tpu_custom_call.1
$region0: #{tpu_custom_call.1}
  #allocation0 [shape = 'u32[]', space=smem, size = 0x4, offset = 0x4, fixed_abs, tag = 'smem constant byte address 0x4 - core index']
  #allocation1 [shape = 'u32[144,128]{1,0:T(1,128)}', space=vmem, size = 0x12000, scoped, tag = 'internal scratch']
  %s0 = inlined_call_operand.hbm [shape: bf16[8,1024], index: 0, kind: input, shape index: {}]
  %s1 = inlined_call_operand.hbm [shape: bf16[1024,1024], index: 1, kind: input, shape index: {}]
  %s2 = inlined_call_operand.hbm [shape: f32[1,1024], index: 2, kind: input, shape index: {}]
  %s3 = inlined_call_operand.hbm [shape: bf16[1024,128], index: 3, kind: input, shape index: {}]
  %s4 = inlined_call_operand.hbm [shape: f32[1,128], index: 4, kind: input, shape index: {}]
  %s5 = inlined_call_operand.vmem [shape: bf16[128,64], index: 5, kind: input, shape index: {}]
  %s6 = inlined_call_operand.hbm [shape: f32[1,64], index: 6, kind: input, shape index: {}]
  %s7 = inlined_call_operand.hbm [shape: bf16[64,128], index: 7, kind: input, shape index: {}]
  %s8 = inlined_call_operand.hbm [shape: f32[1,128], index: 8, kind: input, shape index: {}]
  %s9 = inlined_call_operand.hbm [shape: f32[8,128], index: 9, kind: output, shape index: {}]
  %s10 = sld [smem:[#allocation0]]
  $region78: #{tpu_custom_call.1} parent=0
    _
  %s12 = ssub.s32 1, %s10
  %s13 = scalar_select 0, %s12, %s10
  $region1: #{tpu_custom_call.1} parent=0
    #allocation2 [shape = 'u8[16384]{0}', space=vmem, size = 0x4000, scoped, tag = 'input window, operand 0, single buffered']
    #allocation3 [shape = 's32[1]{0}', space=sflag, size = 0x4, scoped, tag = 'scoped memory for tpu_custom_call.1']
    #allocation4 [shape = 's32[1]{0}', space=sflag, size = 0x4, scoped, tag = 'scoped memory for tpu_custom_call.1']
    #allocation5 [shape = 'u8[2097152]{0}', space=vmem, size = 0x200000, scoped, tag = 'input window, operand 1, single buffered']
    #allocation6 [shape = 's32[1]{0}', space=sflag, size = 0x4, scoped, tag = 'scoped memory for tpu_custom_call.1']
    #allocation7 [shape = 'u8[4096]{0}', space=vmem, size = 0x1000, scoped, tag = 'input window, operand 2, single buffered']
    #allocation8 [shape = 'u8[262144]{0}', space=vmem, size = 0x40000, scoped, tag = 'input window, operand 3, single buffered']
    #allocation9 [shape = 's32[1]{0}', space=sflag, size = 0x4, scoped, tag = 'scoped memory for tpu_custom_call.1']
    #allocation10 [shape = 'u8[512]{0}', space=vmem, size = 0x400, scoped, tag = 'input window, operand 4, single buffered']
    #allocation11 [shape = 'u8[512]{0}', space=vmem, size = 0x400, scoped, tag = 'input window, operand 6, single buffered']
    #allocation12 [shape = 's32[1]{0}', space=sflag, size = 0x4, scoped, tag = 'scoped memory for tpu_custom_call.1']
    #allocation13 [shape = 'u8[16384]{0}', space=vmem, size = 0x4000, scoped, tag = 'input window, operand 7, single buffered']
    #allocation14 [shape = 'u8[512]{0}', space=vmem, size = 0x400, scoped, tag = 'input window, operand 8, single buffered']
    #allocation15 [shape = 's32[1]{0}', space=sflag, size = 0x4, scoped, tag = 'scoped memory for tpu_custom_call.1']
    #allocation16 [shape = 'u8[4096]{0}', space=vmem, size = 0x1000, scoped, tag = 'output window, operand 0, single buffered']
    %14 = vsyncpa [#allocation3], 0
    %15 = vsyncpa [#allocation6], 0
    %16 = vsyncpa [#allocation9], 0
    %17 = vsyncpa [#allocation12], 0
    %18 = vsyncpa [#allocation15], 0
    %19 = vsyncpa [#allocation4], 0
    // Predicated region
    $region2: #{tpu_custom_call.1} parent=1 // pred_check
      _
    $region3: #{tpu_custom_call.1} parent=1 // pred_check_branch
      %21 = sbr.rel (0) target = $region5
    $region4: #{tpu_custom_call.1} parent=1 // pred_region
      %s23 = ssub.s32 512, 512
      %24 = vsyncadd [#allocation3], %s23
      %s26 = sshll.u32 [#allocation2], 4
      %s27 = int_to_ptr.vmem [resolvable:$true] %s26
      %29 = dma.hbm_to_vmem [thread:$0]  %s0, 512, %s27, [#allocation3]
    $region5: #{tpu_custom_call.1} parent=1 // pred_fallthru
      _
    // Predicated region
    $region6: #{tpu_custom_call.1} parent=1 // pred_check
      _
    $region7: #{tpu_custom_call.1} parent=1 // pred_check_branch
      %31 = sbr.rel (0) target = $region9
    $region8: #{tpu_custom_call.1} parent=1 // pred_region
      %s33 = ssub.s32 65536, 65536
      %34 = vsyncadd [#allocation6], %s33
      %s35 = sshll.u32 [#allocation5], 4
      %s36 = int_to_ptr.vmem [resolvable:$true] %s35
      %41 = dma.hbm_to_vmem [thread:$0]  %s1, 65536, %s36, [#allocation6], 512, 512, 32
    $region9: #{tpu_custom_call.1} parent=1 // pred_fallthru
      _
    // Predicated region
    $region10: #{tpu_custom_call.1} parent=1 // pred_check
      _
    $region11: #{tpu_custom_call.1} parent=1 // pred_check_branch
      %43 = sbr.rel (0) target = $region13
    $region12: #{tpu_custom_call.1} parent=1 // pred_region
      %s45 = ssub.s32 128, 128
      %46 = vsyncadd [#allocation6], %s45
      %s48 = sshll.u32 [#allocation7], 4
      %s49 = int_to_ptr.vmem [resolvable:$true] %s48
      %51 = dma.hbm_to_vmem [thread:$0]  %s2, 128, %s49, [#allocation6]
    $region13: #{tpu_custom_call.1} parent=1 // pred_fallthru
      _
    // Predicated region
    $region14: #{tpu_custom_call.1} parent=1 // pred_check
      _
    $region15: #{tpu_custom_call.1} parent=1 // pred_check_branch
      %53 = sbr.rel (0) target = $region17
    $region16: #{tpu_custom_call.1} parent=1 // pred_region
      %s55 = ssub.s32 8192, 8192
      %56 = vsyncadd [#allocation9], %s55
      %s57 = sshll.u32 [#allocation8], 4
      %s58 = int_to_ptr.vmem [resolvable:$true] %s57
      %63 = dma.hbm_to_vmem [thread:$0]  %s3, 8192, %s58, [#allocation9], 64, 64, 4
    $region17: #{tpu_custom_call.1} parent=1 // pred_fallthru
      _
    // Predicated region
    $region18: #{tpu_custom_call.1} parent=1 // pred_check
      _
    $region19: #{tpu_custom_call.1} parent=1 // pred_check_branch
      %65 = sbr.rel (0) target = $region21
    $region20: #{tpu_custom_call.1} parent=1 // pred_region
      %s67 = ssub.s32 16, 16
      %68 = vsyncadd [#allocation9], %s67
      %s70 = sshll.u32 [#allocation10], 4
      %s71 = int_to_ptr.vmem [resolvable:$true] %s70
      %73 = dma.hbm_to_vmem [thread:$0]  %s4, 16, %s71, [#allocation9]
    $region21: #{tpu_custom_call.1} parent=1 // pred_fallthru
      _
    // Predicated region
    $region22: #{tpu_custom_call.1} parent=1 // pred_check
      _
    $region23: #{tpu_custom_call.1} parent=1 // pred_check_branch
      %75 = sbr.rel (0) target = $region25
    $region24: #{tpu_custom_call.1} parent=1 // pred_region
      _
    $region25: #{tpu_custom_call.1} parent=1 // pred_fallthru
      _
    // Predicated region
    $region26: #{tpu_custom_call.1} parent=1 // pred_check
      _
    $region27: #{tpu_custom_call.1} parent=1 // pred_check_branch
      %77 = sbr.rel (0) target = $region29
    $region28: #{tpu_custom_call.1} parent=1 // pred_region
      %s79 = ssub.s32 16, 16
      %80 = vsyncadd [#allocation12], %s79
      %s82 = sshll.u32 [#allocation11], 4
      %s83 = int_to_ptr.vmem [resolvable:$true] %s82
      %85 = dma.hbm_to_vmem [thread:$0]  %s6, 16, %s83, [#allocation12]
    $region29: #{tpu_custom_call.1} parent=1 // pred_fallthru
      _
    // Predicated region
    $region30: #{tpu_custom_call.1} parent=1 // pred_check
      _
    $region31: #{tpu_custom_call.1} parent=1 // pred_check_branch
      %87 = sbr.rel (0) target = $region33
    $region32: #{tpu_custom_call.1} parent=1 // pred_region
      %s89 = ssub.s32 512, 512
      %90 = vsyncadd [#allocation12], %s89
      %s91 = sshll.u32 [#allocation13], 4
      %s92 = int_to_ptr.vmem [resolvable:$true] %s91
      %97 = dma.hbm_to_vmem [thread:$0]  %s7, 512, %s92, [#allocation12], 64, 64, 4
    $region33: #{tpu_custom_call.1} parent=1 // pred_fallthru
      _
    // Predicated region
    $region34: #{tpu_custom_call.1} parent=1 // pred_check
      _
    $region35: #{tpu_custom_call.1} parent=1 // pred_check_branch
      %99 = sbr.rel (0) target = $region37
    $region36: #{tpu_custom_call.1} parent=1 // pred_region
      %s101 = ssub.s32 16, 16
      %102 = vsyncadd [#allocation15], %s101
      %s104 = sshll.u32 [#allocation14], 4
      %s105 = int_to_ptr.vmem [resolvable:$true] %s104
      %107 = dma.hbm_to_vmem [thread:$0]  %s8, 16, %s105, [#allocation15]
    $region37: #{tpu_custom_call.1} parent=1 // pred_fallthru
      _
    // Predicated region
    $region38: #{tpu_custom_call.1} parent=1 // pred_check
      _
    $region39: #{tpu_custom_call.1} parent=1 // pred_check_branch
      %109 = sbr.rel (0) target = $region41
    $region40: #{tpu_custom_call.1} parent=1 // pred_region
      %110 = dma.done [#allocation3], 512
    $region41: #{tpu_custom_call.1} parent=1 // pred_fallthru
      _
    // Predicated region
    $region42: #{tpu_custom_call.1} parent=1 // pred_check
      _
    $region43: #{tpu_custom_call.1} parent=1 // pred_check_branch
      %112 = sbr.rel (0) target = $region45
    $region44: #{tpu_custom_call.1} parent=1 // pred_region
      %113 = dma.done [#allocation6], 65536
    $region45: #{tpu_custom_call.1} parent=1 // pred_fallthru
      _
    // Predicated region
    $region46: #{tpu_custom_call.1} parent=1 // pred_check
      _
    $region47: #{tpu_custom_call.1} parent=1 // pred_check_branch
      %115 = sbr.rel (0) target = $region49
    $region48: #{tpu_custom_call.1} parent=1 // pred_region
      %116 = dma.done [#allocation6], 128
    $region49: #{tpu_custom_call.1} parent=1 // pred_fallthru
      _
    // Predicated region
    $region50: #{tpu_custom_call.1} parent=1 // pred_check
      _
    $region51: #{tpu_custom_call.1} parent=1 // pred_check_branch
      %118 = sbr.rel (0) target = $region53
    $region52: #{tpu_custom_call.1} parent=1 // pred_region
      %119 = dma.done [#allocation9], 8192
    $region53: #{tpu_custom_call.1} parent=1 // pred_fallthru
      _
    // Predicated region
    $region54: #{tpu_custom_call.1} parent=1 // pred_check
      _
    $region55: #{tpu_custom_call.1} parent=1 // pred_check_branch
      %121 = sbr.rel (0) target = $region57
    $region56: #{tpu_custom_call.1} parent=1 // pred_region
      %122 = dma.done [#allocation9], 16
    $region57: #{tpu_custom_call.1} parent=1 // pred_fallthru
      _
    // Predicated region
    $region58: #{tpu_custom_call.1} parent=1 // pred_check
      _
    $region59: #{tpu_custom_call.1} parent=1 // pred_check_branch
      %124 = sbr.rel (0) target = $region61
    $region60: #{tpu_custom_call.1} parent=1 // pred_region
      %125 = dma.done [#allocation12], 16
    $region61: #{tpu_custom_call.1} parent=1 // pred_fallthru
      _
    // Predicated region
    $region62: #{tpu_custom_call.1} parent=1 // pred_check
      _
    $region63: #{tpu_custom_call.1} parent=1 // pred_check_branch
      %127 = sbr.rel (0) target = $region65
    $region64: #{tpu_custom_call.1} parent=1 // pred_region
      %128 = dma.done [#allocation12], 512
    $region65: #{tpu_custom_call.1} parent=1 // pred_fallthru
      _
    // Predicated region
    $region66: #{tpu_custom_call.1} parent=1 // pred_check
      _
    $region67: #{tpu_custom_call.1} parent=1 // pred_check_branch
      %130 = sbr.rel (0) target = $region69
    $region68: #{tpu_custom_call.1} parent=1 // pred_region
      %131 = dma.done [#allocation15], 16
    $region69: #{tpu_custom_call.1} parent=1 // pred_fallthru
      _
    %v133 = vld [vmem:[#allocation2] sm:$0xff]
    %v134 = vld [vmem:[#allocation2 + $0x8] sm:$0xff]
    %v135 = vld [vmem:[#allocation2 + $0x10] sm:$0xff]
    %v136 = vld [vmem:[#allocation2 + $0x18] sm:$0xff]
    %v137 = vld [vmem:[#allocation5] sm:$0xff]
    %v138 = vld [vmem:[#allocation5 + $0x8] sm:$0xff]
    %v139 = vld [vmem:[#allocation5 + $0x10] sm:$0xff]
    %v140 = vld [vmem:[#allocation5 + $0x18] sm:$0xff]
    %v141 = vld [vmem:[#allocation5 + $0x20] sm:$0xff]
    %v142 = vld [vmem:[#allocation5 + $0x28] sm:$0xff]
    %v143 = vld [vmem:[#allocation5 + $0x30] sm:$0xff]
    %v144 = vld [vmem:[#allocation5 + $0x38] sm:$0xff]
    %v145 = vld [vmem:[#allocation5 + $0x40] sm:$0xff]
    %v146 = vld [vmem:[#allocation5 + $0x48] sm:$0xff]
    %v147 = vld [vmem:[#allocation5 + $0x50] sm:$0xff]
    %v148 = vld [vmem:[#allocation5 + $0x58] sm:$0xff]
    %v149 = vld [vmem:[#allocation5 + $0x60] sm:$0xff]
    %v150 = vld [vmem:[#allocation5 + $0x68] sm:$0xff]
    %v151 = vld [vmem:[#allocation5 + $0x70] sm:$0xff]
    %v152 = vld [vmem:[#allocation5 + $0x78] sm:$0xff]
    %v153 = vld [vmem:[#allocation5 + $0x80] sm:$0xff]
    %v154 = vld [vmem:[#allocation5 + $0x88] sm:$0xff]
    %v155 = vld [vmem:[#allocation5 + $0x90] sm:$0xff]
    %v156 = vld [vmem:[#allocation5 + $0x98] sm:$0xff]
    %v157 = vld [vmem:[#allocation5 + $0xa0] sm:$0xff]
    %v158 = vld [vmem:[#allocation5 + $0xa8] sm:$0xff]
    %v159 = vld [vmem:[#allocation5 + $0xb0] sm:$0xff]
    %v160 = vld [vmem:[#allocation5 + $0xb8] sm:$0xff]
    %v161 = vld [vmem:[#allocation5 + $0xc0] sm:$0xff]
    %v162 = vld [vmem:[#allocation5 + $0xc8] sm:$0xff]
    %v163 = vld [vmem:[#allocation5 + $0xd0] sm:$0xff]
    %v164 = vld [vmem:[#allocation5 + $0xd8] sm:$0xff]
    %v165 = vld [vmem:[#allocation5 + $0xe0] sm:$0xff]
    %v166 = vld [vmem:[#allocation5 + $0xe8] sm:$0xff]
    %v167 = vld [vmem:[#allocation5 + $0xf0] sm:$0xff]
    %v168 = vld [vmem:[#allocation5 + $0xf8] sm:$0xff]
    %v169 = vld [vmem:[#allocation5 + $0x100] sm:$0xff]
    %v170 = vld [vmem:[#allocation5 + $0x108] sm:$0xff]
    %v171 = vld [vmem:[#allocation5 + $0x110] sm:$0xff]
    %v172 = vld [vmem:[#allocation5 + $0x118] sm:$0xff]
    %v173 = vld [vmem:[#allocation5 + $0x120] sm:$0xff]
    %v174 = vld [vmem:[#allocation5 + $0x128] sm:$0xff]
    %v175 = vld [vmem:[#allocation5 + $0x130] sm:$0xff]
    %v176 = vld [vmem:[#allocation5 + $0x138] sm:$0xff]
    %v177 = vld [vmem:[#allocation5 + $0x140] sm:$0xff]
    %v178 = vld [vmem:[#allocation5 + $0x148] sm:$0xff]
    %v179 = vld [vmem:[#allocation5 + $0x150] sm:$0xff]
    %v180 = vld [vmem:[#allocation5 + $0x158] sm:$0xff]
    %v181 = vld [vmem:[#allocation5 + $0x160] sm:$0xff]
    %v182 = vld [vmem:[#allocation5 + $0x168] sm:$0xff]
    %v183 = vld [vmem:[#allocation5 + $0x170] sm:$0xff]
    %v184 = vld [vmem:[#allocation5 + $0x178] sm:$0xff]
    %v185 = vld [vmem:[#allocation5 + $0x180] sm:$0xff]
    %v186 = vld [vmem:[#allocation5 + $0x188] sm:$0xff]
    %v187 = vld [vmem:[#allocation5 + $0x190] sm:$0xff]
    %v188 = vld [vmem:[#allocation5 + $0x198] sm:$0xff]
    %v189 = vld [vmem:[#allocation5 + $0x1a0] sm:$0xff]
    %v190 = vld [vmem:[#allocation5 + $0x1a8] sm:$0xff]
    %v191 = vld [vmem:[#allocation5 + $0x1b0] sm:$0xff]
    %v192 = vld [vmem:[#allocation5 + $0x1b8] sm:$0xff]
    %v193 = vld [vmem:[#allocation5 + $0x1c0] sm:$0xff]
    %v194 = vld [vmem:[#allocation5 + $0x1c8] sm:$0xff]
    %v195 = vld [vmem:[#allocation5 + $0x1d0] sm:$0xff]
    %v196 = vld [vmem:[#allocation5 + $0x1d8] sm:$0xff]
    %v197 = vld [vmem:[#allocation5 + $0x1e0] sm:$0xff]
    %v198 = vld [vmem:[#allocation5 + $0x1e8] sm:$0xff]
    %v199 = vld [vmem:[#allocation5 + $0x1f0] sm:$0xff]
    %v200 = vld [vmem:[#allocation5 + $0x1f8] sm:$0xff]
    %v201 = vld [vmem:[#allocation5 + $0x200] sm:$0xff]
    %v202 = vld [vmem:[#allocation5 + $0x208] sm:$0xff]
    %v203 = vld [vmem:[#allocation5 + $0x210] sm:$0xff]
    %v204 = vld [vmem:[#allocation5 + $0x218] sm:$0xff]
    %v205 = vld [vmem:[#allocation5 + $0x220] sm:$0xff]
    %v206 = vld [vmem:[#allocation5 + $0x228] sm:$0xff]
    %v207 = vld [vmem:[#allocation5 + $0x230] sm:$0xff]
    %v208 = vld [vmem:[#allocation5 + $0x238] sm:$0xff]
    %v209 = vld [vmem:[#allocation5 + $0x240] sm:$0xff]
    %v210 = vld [vmem:[#allocation5 + $0x248] sm:$0xff]
    %v211 = vld [vmem:[#allocation5 + $0x250] sm:$0xff]
    %v212 = vld [vmem:[#allocation5 + $0x258] sm:$0xff]
    %v213 = vld [vmem:[#allocation5 + $0x260] sm:$0xff]
    %v214 = vld [vmem:[#allocation5 + $0x268] sm:$0xff]
    %v215 = vld [vmem:[#allocation5 + $0x270] sm:$0xff]
    %v216 = vld [vmem:[#allocation5 + $0x278] sm:$0xff]
    %v217 = vld [vmem:[#allocation5 + $0x280] sm:$0xff]
    %v218 = vld [vmem:[#allocation5 + $0x288] sm:$0xff]
    %v219 = vld [vmem:[#allocation5 + $0x290] sm:$0xff]
    %v220 = vld [vmem:[#allocation5 + $0x298] sm:$0xff]
    %v221 = vld [vmem:[#allocation5 + $0x2a0] sm:$0xff]
    %v222 = vld [vmem:[#allocation5 + $0x2a8] sm:$0xff]
    %v223 = vld [vmem:[#allocation5 + $0x2b0] sm:$0xff]
    %v224 = vld [vmem:[#allocation5 + $0x2b8] sm:$0xff]
    %v225 = vld [vmem:[#allocation5 + $0x2c0] sm:$0xff]
    %v226 = vld [vmem:[#allocation5 + $0x2c8] sm:$0xff]
    %v227 = vld [vmem:[#allocation5 + $0x2d0] sm:$0xff]
    %v228 = vld [vmem:[#allocation5 + $0x2d8] sm:$0xff]
    %v229 = vld [vmem:[#allocation5 + $0x2e0] sm:$0xff]
    %v230 = vld [vmem:[#allocation5 + $0x2e8] sm:$0xff]
    %v231 = vld [vmem:[#allocation5 + $0x2f0] sm:$0xff]
    %v232 = vld [vmem:[#allocation5 + $0x2f8] sm:$0xff]
    %v233 = vld [vmem:[#allocation5 + $0x300] sm:$0xff]
    %v234 = vld [vmem:[#allocation5 + $0x308] sm:$0xff]
    %v235 = vld [vmem:[#allocation5 + $0x310] sm:$0xff]
    %v236 = vld [vmem:[#allocation5 + $0x318] sm:$0xff]
    %v237 = vld [vmem:[#allocation5 + $0x320] sm:$0xff]
    %v238 = vld [vmem:[#allocation5 + $0x328] sm:$0xff]
    %v239 = vld [vmem:[#allocation5 + $0x330] sm:$0xff]
    %v240 = vld [vmem:[#allocation5 + $0x338] sm:$0xff]
    %v241 = vld [vmem:[#allocation5 + $0x340] sm:$0xff]
    %v242 = vld [vmem:[#allocation5 + $0x348] sm:$0xff]
    %v243 = vld [vmem:[#allocation5 + $0x350] sm:$0xff]
    %v244 = vld [vmem:[#allocation5 + $0x358] sm:$0xff]
    %v245 = vld [vmem:[#allocation5 + $0x360] sm:$0xff]
    %v246 = vld [vmem:[#allocation5 + $0x368] sm:$0xff]
    %v247 = vld [vmem:[#allocation5 + $0x370] sm:$0xff]
    %v248 = vld [vmem:[#allocation5 + $0x378] sm:$0xff]
    %v249 = vld [vmem:[#allocation5 + $0x380] sm:$0xff]
    %v250 = vld [vmem:[#allocation5 + $0x388] sm:$0xff]
    %v251 = vld [vmem:[#allocation5 + $0x390] sm:$0xff]
    %v252 = vld [vmem:[#allocation5 + $0x398] sm:$0xff]
    %v253 = vld [vmem:[#allocation5 + $0x3a0] sm:$0xff]
    %v254 = vld [vmem:[#allocation5 + $0x3a8] sm:$0xff]
    %v255 = vld [vmem:[#allocation5 + $0x3b0] sm:$0xff]
    %v256 = vld [vmem:[#allocation5 + $0x3b8] sm:$0xff]
    %v257 = vld [vmem:[#allocation5 + $0x3c0] sm:$0xff]
    %v258 = vld [vmem:[#allocation5 + $0x3c8] sm:$0xff]
    %v259 = vld [vmem:[#allocation5 + $0x3d0] sm:$0xff]
    %v260 = vld [vmem:[#allocation5 + $0x3d8] sm:$0xff]
    %v261 = vld [vmem:[#allocation5 + $0x3e0] sm:$0xff]
    %v262 = vld [vmem:[#allocation5 + $0x3e8] sm:$0xff]
    %v263 = vld [vmem:[#allocation5 + $0x3f0] sm:$0xff]
    %v264 = vld [vmem:[#allocation5 + $0x3f8] sm:$0xff]
    %v265 = vld [vmem:[#allocation5 + $0x400] sm:$0xff]
    %v266 = vld [vmem:[#allocation5 + $0x408] sm:$0xff]
    %v267 = vld [vmem:[#allocation5 + $0x410] sm:$0xff]
    %v268 = vld [vmem:[#allocation5 + $0x418] sm:$0xff]
    %v269 = vld [vmem:[#allocation5 + $0x420] sm:$0xff]
    %v270 = vld [vmem:[#allocation5 + $0x428] sm:$0xff]
    %v271 = vld [vmem:[#allocation5 + $0x430] sm:$0xff]
    %v272 = vld [vmem:[#allocation5 + $0x438] sm:$0xff]
    %v273 = vld [vmem:[#allocation5 + $0x440] sm:$0xff]
    %v274 = vld [vmem:[#allocation5 + $0x448] sm:$0xff]
    %v275 = vld [vmem:[#allocation5 + $0x450] sm:$0xff]
    %v276 = vld [vmem:[#allocation5 + $0x458] sm:$0xff]
    %v277 = vld [vmem:[#allocation5 + $0x460] sm:$0xff]
    %v278 = vld [vmem:[#allocation5 + $0x468] sm:$0xff]
    %v279 = vld [vmem:[#allocation5 + $0x470] sm:$0xff]
    %v280 = vld [vmem:[#allocation5 + $0x478] sm:$0xff]
    %v281 = vld [vmem:[#allocation5 + $0x480] sm:$0xff]
    %v282 = vld [vmem:[#allocation5 + $0x488] sm:$0xff]
    %v283 = vld [vmem:[#allocation5 + $0x490] sm:$0xff]
    %v284 = vld [vmem:[#allocation5 + $0x498] sm:$0xff]
    %v285 = vld [vmem:[#allocation5 + $0x4a0] sm:$0xff]
    %v286 = vld [vmem:[#allocation5 + $0x4a8] sm:$0xff]
    %v287 = vld [vmem:[#allocation5 + $0x4b0] sm:$0xff]
    %v288 = vld [vmem:[#allocation5 + $0x4b8] sm:$0xff]
    %v289 = vld [vmem:[#allocation5 + $0x4c0] sm:$0xff]
    %v290 = vld [vmem:[#allocation5 + $0x4c8] sm:$0xff]
    %v291 = vld [vmem:[#allocation5 + $0x4d0] sm:$0xff]
    %v292 = vld [vmem:[#allocation5 + $0x4d8] sm:$0xff]
    %v293 = vld [vmem:[#allocation5 + $0x4e0] sm:$0xff]
    %v294 = vld [vmem:[#allocation5 + $0x4e8] sm:$0xff]
    %v295 = vld [vmem:[#allocation5 + $0x4f0] sm:$0xff]
    %v296 = vld [vmem:[#allocation5 + $0x4f8] sm:$0xff]
    %v297 = vld [vmem:[#allocation5 + $0x500] sm:$0xff]
    %v298 = vld [vmem:[#allocation5 + $0x508] sm:$0xff]
    %v299 = vld [vmem:[#allocation5 + $0x510] sm:$0xff]
    %v300 = vld [vmem:[#allocation5 + $0x518] sm:$0xff]
    %v301 = vld [vmem:[#allocation5 + $0x520] sm:$0xff]
    %v302 = vld [vmem:[#allocation5 + $0x528] sm:$0xff]
    %v303 = vld [vmem:[#allocation5 + $0x530] sm:$0xff]
    %v304 = vld [vmem:[#allocation5 + $0x538] sm:$0xff]
    %v305 = vld [vmem:[#allocation5 + $0x540] sm:$0xff]
    %v306 = vld [vmem:[#allocation5 + $0x548] sm:$0xff]
    %v307 = vld [vmem:[#allocation5 + $0x550] sm:$0xff]
    %v308 = vld [vmem:[#allocation5 + $0x558] sm:$0xff]
    %v309 = vld [vmem:[#allocation5 + $0x560] sm:$0xff]
    %v310 = vld [vmem:[#allocation5 + $0x568] sm:$0xff]
    %v311 = vld [vmem:[#allocation5 + $0x570] sm:$0xff]
    %v312 = vld [vmem:[#allocation5 + $0x578] sm:$0xff]
    %v313 = vld [vmem:[#allocation5 + $0x580] sm:$0xff]
    %v314 = vld [vmem:[#allocation5 + $0x588] sm:$0xff]
    %v315 = vld [vmem:[#allocation5 + $0x590] sm:$0xff]
    %v316 = vld [vmem:[#allocation5 + $0x598] sm:$0xff]
    %v317 = vld [vmem:[#allocation5 + $0x5a0] sm:$0xff]
    %v318 = vld [vmem:[#allocation5 + $0x5a8] sm:$0xff]
    %v319 = vld [vmem:[#allocation5 + $0x5b0] sm:$0xff]
    %v320 = vld [vmem:[#allocation5 + $0x5b8] sm:$0xff]
    %v321 = vld [vmem:[#allocation5 + $0x5c0] sm:$0xff]
    %v322 = vld [vmem:[#allocation5 + $0x5c8] sm:$0xff]
    %v323 = vld [vmem:[#allocation5 + $0x5d0] sm:$0xff]
    %v324 = vld [vmem:[#allocation5 + $0x5d8] sm:$0xff]
    %v325 = vld [vmem:[#allocation5 + $0x5e0] sm:$0xff]
    %v326 = vld [vmem:[#allocation5 + $0x5e8] sm:$0xff]
    %v327 = vld [vmem:[#allocation5 + $0x5f0] sm:$0xff]
    %v328 = vld [vmem:[#allocation5 + $0x5f8] sm:$0xff]
    %v329 = vld [vmem:[#allocation5 + $0x600] sm:$0xff]
    %v330 = vld [vmem:[#allocation5 + $0x608] sm:$0xff]
    %v331 = vld [vmem:[#allocation5 + $0x610] sm:$0xff]
    %v332 = vld [vmem:[#allocation5 + $0x618] sm:$0xff]
    %v333 = vld [vmem:[#allocation5 + $0x620] sm:$0xff]
    %v334 = vld [vmem:[#allocation5 + $0x628] sm:$0xff]
    %v335 = vld [vmem:[#allocation5 + $0x630] sm:$0xff]
    %v336 = vld [vmem:[#allocation5 + $0x638] sm:$0xff]
    %v337 = vld [vmem:[#allocation5 + $0x640] sm:$0xff]
    %v338 = vld [vmem:[#allocation5 + $0x648] sm:$0xff]
    %v339 = vld [vmem:[#allocation5 + $0x650] sm:$0xff]
    %v340 = vld [vmem:[#allocation5 + $0x658] sm:$0xff]
    %v341 = vld [vmem:[#allocation5 + $0x660] sm:$0xff]
    %v342 = vld [vmem:[#allocation5 + $0x668] sm:$0xff]
    %v343 = vld [vmem:[#allocation5 + $0x670] sm:$0xff]
    %v344 = vld [vmem:[#allocation5 + $0x678] sm:$0xff]
    %v345 = vld [vmem:[#allocation5 + $0x680] sm:$0xff]
    %v346 = vld [vmem:[#allocation5 + $0x688] sm:$0xff]
    %v347 = vld [vmem:[#allocation5 + $0x690] sm:$0xff]
    %v348 = vld [vmem:[#allocation5 + $0x698] sm:$0xff]
    %v349 = vld [vmem:[#allocation5 + $0x6a0] sm:$0xff]
    %v350 = vld [vmem:[#allocation5 + $0x6a8] sm:$0xff]
    %v351 = vld [vmem:[#allocation5 + $0x6b0] sm:$0xff]
    %v352 = vld [vmem:[#allocation5 + $0x6b8] sm:$0xff]
    %v353 = vld [vmem:[#allocation5 + $0x6c0] sm:$0xff]
    %v354 = vld [vmem:[#allocation5 + $0x6c8] sm:$0xff]
    %v355 = vld [vmem:[#allocation5 + $0x6d0] sm:$0xff]
    %v356 = vld [vmem:[#allocation5 + $0x6d8] sm:$0xff]
    %v357 = vld [vmem:[#allocation5 + $0x6e0] sm:$0xff]
    %v358 = vld [vmem:[#allocation5 + $0x6e8] sm:$0xff]
    %v359 = vld [vmem:[#allocation5 + $0x6f0] sm:$0xff]
    %v360 = vld [vmem:[#allocation5 + $0x6f8] sm:$0xff]
    %v361 = vld [vmem:[#allocation5 + $0x700] sm:$0xff]
    %v362 = vld [vmem:[#allocation5 + $0x708] sm:$0xff]
    %v363 = vld [vmem:[#allocation5 + $0x710] sm:$0xff]
    %v364 = vld [vmem:[#allocation5 + $0x718] sm:$0xff]
    %v365 = vld [vmem:[#allocation5 + $0x720] sm:$0xff]
    %v366 = vld [vmem:[#allocation5 + $0x728] sm:$0xff]
    %v367 = vld [vmem:[#allocation5 + $0x730] sm:$0xff]
    %v368 = vld [vmem:[#allocation5 + $0x738] sm:$0xff]
    %v369 = vld [vmem:[#allocation5 + $0x740] sm:$0xff]
    %v370 = vld [vmem:[#allocation5 + $0x748] sm:$0xff]
    %v371 = vld [vmem:[#allocation5 + $0x750] sm:$0xff]
    %v372 = vld [vmem:[#allocation5 + $0x758] sm:$0xff]
    %v373 = vld [vmem:[#allocation5 + $0x760] sm:$0xff]
    %v374 = vld [vmem:[#allocation5 + $0x768] sm:$0xff]
    %v375 = vld [vmem:[#allocation5 + $0x770] sm:$0xff]
    %v376 = vld [vmem:[#allocation5 + $0x778] sm:$0xff]
    %v377 = vld [vmem:[#allocation5 + $0x780] sm:$0xff]
    %v378 = vld [vmem:[#allocation5 + $0x788] sm:$0xff]
    %v379 = vld [vmem:[#allocation5 + $0x790] sm:$0xff]
    %v380 = vld [vmem:[#allocation5 + $0x798] sm:$0xff]
    %v381 = vld [vmem:[#allocation5 + $0x7a0] sm:$0xff]
    %v382 = vld [vmem:[#allocation5 + $0x7a8] sm:$0xff]
    %v383 = vld [vmem:[#allocation5 + $0x7b0] sm:$0xff]
    %v384 = vld [vmem:[#allocation5 + $0x7b8] sm:$0xff]
    %v385 = vld [vmem:[#allocation5 + $0x7c0] sm:$0xff]
    %v386 = vld [vmem:[#allocation5 + $0x7c8] sm:$0xff]
    %v387 = vld [vmem:[#allocation5 + $0x7d0] sm:$0xff]
    %v388 = vld [vmem:[#allocation5 + $0x7d8] sm:$0xff]
    %v389 = vld [vmem:[#allocation5 + $0x7e0] sm:$0xff]
    %v390 = vld [vmem:[#allocation5 + $0x7e8] sm:$0xff]
    %v391 = vld [vmem:[#allocation5 + $0x7f0] sm:$0xff]
    %v392 = vld [vmem:[#allocation5 + $0x7f8] sm:$0xff]
    %v393 = vld [vmem:[#allocation5 + $0x800] sm:$0xff]
    %v394 = vld [vmem:[#allocation5 + $0x808] sm:$0xff]
    %v395 = vld [vmem:[#allocation5 + $0x810] sm:$0xff]
    %v396 = vld [vmem:[#allocation5 + $0x818] sm:$0xff]
    %v397 = vld [vmem:[#allocation5 + $0x820] sm:$0xff]
    %v398 = vld [vmem:[#allocation5 + $0x828] sm:$0xff]
    %v399 = vld [vmem:[#allocation5 + $0x830] sm:$0xff]
    %v400 = vld [vmem:[#allocation5 + $0x838] sm:$0xff]
    %v401 = vld [vmem:[#allocation5 + $0x840] sm:$0xff]
    %v402 = vld [vmem:[#allocation5 + $0x848] sm:$0xff]
    %v403 = vld [vmem:[#allocation5 + $0x850] sm:$0xff]
    %v404 = vld [vmem:[#allocation5 + $0x858] sm:$0xff]
    %v405 = vld [vmem:[#allocation5 + $0x860] sm:$0xff]
    %v406 = vld [vmem:[#allocation5 + $0x868] sm:$0xff]
    %v407 = vld [vmem:[#allocation5 + $0x870] sm:$0xff]
    %v408 = vld [vmem:[#allocation5 + $0x878] sm:$0xff]
    %v409 = vld [vmem:[#allocation5 + $0x880] sm:$0xff]
    %v410 = vld [vmem:[#allocation5 + $0x888] sm:$0xff]
    %v411 = vld [vmem:[#allocation5 + $0x890] sm:$0xff]
    %v412 = vld [vmem:[#allocation5 + $0x898] sm:$0xff]
    %v413 = vld [vmem:[#allocation5 + $0x8a0] sm:$0xff]
    %v414 = vld [vmem:[#allocation5 + $0x8a8] sm:$0xff]
    %v415 = vld [vmem:[#allocation5 + $0x8b0] sm:$0xff]
    %v416 = vld [vmem:[#allocation5 + $0x8b8] sm:$0xff]
    %v417 = vld [vmem:[#allocation5 + $0x8c0] sm:$0xff]
    %v418 = vld [vmem:[#allocation5 + $0x8c8] sm:$0xff]
    %v419 = vld [vmem:[#allocation5 + $0x8d0] sm:$0xff]
    %v420 = vld [vmem:[#allocation5 + $0x8d8] sm:$0xff]
    %v421 = vld [vmem:[#allocation5 + $0x8e0] sm:$0xff]
    %v422 = vld [vmem:[#allocation5 + $0x8e8] sm:$0xff]
    %v423 = vld [vmem:[#allocation5 + $0x8f0] sm:$0xff]
    %v424 = vld [vmem:[#allocation5 + $0x8f8] sm:$0xff]
    %v425 = vld [vmem:[#allocation5 + $0x900] sm:$0xff]
    %v426 = vld [vmem:[#allocation5 + $0x908] sm:$0xff]
    %v427 = vld [vmem:[#allocation5 + $0x910] sm:$0xff]
    %v428 = vld [vmem:[#allocation5 + $0x918] sm:$0xff]
    %v429 = vld [vmem:[#allocation5 + $0x920] sm:$0xff]
    %v430 = vld [vmem:[#allocation5 + $0x928] sm:$0xff]
    %v431 = vld [vmem:[#allocation5 + $0x930] sm:$0xff]
    %v432 = vld [vmem:[#allocation5 + $0x938] sm:$0xff]
    %v433 = vld [vmem:[#allocation5 + $0x940] sm:$0xff]
    %v434 = vld [vmem:[#allocation5 + $0x948] sm:$0xff]
    %v435 = vld [vmem:[#allocation5 + $0x950] sm:$0xff]
    %v436 = vld [vmem:[#allocation5 + $0x958] sm:$0xff]
    %v437 = vld [vmem:[#allocation5 + $0x960] sm:$0xff]
    %v438 = vld [vmem:[#allocation5 + $0x968] sm:$0xff]
    %v439 = vld [vmem:[#allocation5 + $0x970] sm:$0xff]
    %v440 = vld [vmem:[#allocation5 + $0x978] sm:$0xff]
    %v441 = vld [vmem:[#allocation5 + $0x980] sm:$0xff]
    %v442 = vld [vmem:[#allocation5 + $0x988] sm:$0xff]
    %v443 = vld [vmem:[#allocation5 + $0x990] sm:$0xff]
    %v444 = vld [vmem:[#allocation5 + $0x998] sm:$0xff]
    %v445 = vld [vmem:[#allocation5 + $0x9a0] sm:$0xff]
    %v446 = vld [vmem:[#allocation5 + $0x9a8] sm:$0xff]
    %v447 = vld [vmem:[#allocation5 + $0x9b0] sm:$0xff]
    %v448 = vld [vmem:[#allocation5 + $0x9b8] sm:$0xff]
    %v449 = vld [vmem:[#allocation5 + $0x9c0] sm:$0xff]
    %v450 = vld [vmem:[#allocation5 + $0x9c8] sm:$0xff]
    %v451 = vld [vmem:[#allocation5 + $0x9d0] sm:$0xff]
    %v452 = vld [vmem:[#allocation5 + $0x9d8] sm:$0xff]
    %v453 = vld [vmem:[#allocation5 + $0x9e0] sm:$0xff]
    %v454 = vld [vmem:[#allocation5 + $0x9e8] sm:$0xff]
    %v455 = vld [vmem:[#allocation5 + $0x9f0] sm:$0xff]
    %v456 = vld [vmem:[#allocation5 + $0x9f8] sm:$0xff]
    %v457 = vld [vmem:[#allocation5 + $0xa00] sm:$0xff]
    %v458 = vld [vmem:[#allocation5 + $0xa08] sm:$0xff]
    %v459 = vld [vmem:[#allocation5 + $0xa10] sm:$0xff]
    %v460 = vld [vmem:[#allocation5 + $0xa18] sm:$0xff]
    %v461 = vld [vmem:[#allocation5 + $0xa20] sm:$0xff]
    %v462 = vld [vmem:[#allocation5 + $0xa28] sm:$0xff]
    %v463 = vld [vmem:[#allocation5 + $0xa30] sm:$0xff]
    %v464 = vld [vmem:[#allocation5 + $0xa38] sm:$0xff]
    %v465 = vld [vmem:[#allocation5 + $0xa40] sm:$0xff]
    %v466 = vld [vmem:[#allocation5 + $0xa48] sm:$0xff]
    %v467 = vld [vmem:[#allocation5 + $0xa50] sm:$0xff]
    %v468 = vld [vmem:[#allocation5 + $0xa58] sm:$0xff]
    %v469 = vld [vmem:[#allocation5 + $0xa60] sm:$0xff]
    %v470 = vld [vmem:[#allocation5 + $0xa68] sm:$0xff]
    %v471 = vld [vmem:[#allocation5 + $0xa70] sm:$0xff]
    %v472 = vld [vmem:[#allocation5 + $0xa78] sm:$0xff]
    %v473 = vld [vmem:[#allocation5 + $0xa80] sm:$0xff]
    %v474 = vld [vmem:[#allocation5 + $0xa88] sm:$0xff]
    %v475 = vld [vmem:[#allocation5 + $0xa90] sm:$0xff]
    %v476 = vld [vmem:[#allocation5 + $0xa98] sm:$0xff]
    %v477 = vld [vmem:[#allocation5 + $0xaa0] sm:$0xff]
    %v478 = vld [vmem:[#allocation5 + $0xaa8] sm:$0xff]
    %v479 = vld [vmem:[#allocation5 + $0xab0] sm:$0xff]
    %v480 = vld [vmem:[#allocation5 + $0xab8] sm:$0xff]
    %v481 = vld [vmem:[#allocation5 + $0xac0] sm:$0xff]
    %v482 = vld [vmem:[#allocation5 + $0xac8] sm:$0xff]
    %v483 = vld [vmem:[#allocation5 + $0xad0] sm:$0xff]
    %v484 = vld [vmem:[#allocation5 + $0xad8] sm:$0xff]
    %v485 = vld [vmem:[#allocation5 + $0xae0] sm:$0xff]
    %v486 = vld [vmem:[#allocation5 + $0xae8] sm:$0xff]
    %v487 = vld [vmem:[#allocation5 + $0xaf0] sm:$0xff]
    %v488 = vld [vmem:[#allocation5 + $0xaf8] sm:$0xff]
    %v489 = vld [vmem:[#allocation5 + $0xb00] sm:$0xff]
    %v490 = vld [vmem:[#allocation5 + $0xb08] sm:$0xff]
    %v491 = vld [vmem:[#allocation5 + $0xb10] sm:$0xff]
    %v492 = vld [vmem:[#allocation5 + $0xb18] sm:$0xff]
    %v493 = vld [vmem:[#allocation5 + $0xb20] sm:$0xff]
    %v494 = vld [vmem:[#allocation5 + $0xb28] sm:$0xff]
    %v495 = vld [vmem:[#allocation5 + $0xb30] sm:$0xff]
    %v496 = vld [vmem:[#allocation5 + $0xb38] sm:$0xff]
    %v497 = vld [vmem:[#allocation5 + $0xb40] sm:$0xff]
    %v498 = vld [vmem:[#allocation5 + $0xb48] sm:$0xff]
    %v499 = vld [vmem:[#allocation5 + $0xb50] sm:$0xff]
    %v500 = vld [vmem:[#allocation5 + $0xb58] sm:$0xff]
    %v501 = vld [vmem:[#allocation5 + $0xb60] sm:$0xff]
    %v502 = vld [vmem:[#allocation5 + $0xb68] sm:$0xff]
    %v503 = vld [vmem:[#allocation5 + $0xb70] sm:$0xff]
    %v504 = vld [vmem:[#allocation5 + $0xb78] sm:$0xff]
    %v505 = vld [vmem:[#allocation5 + $0xb80] sm:$0xff]
    %v506 = vld [vmem:[#allocation5 + $0xb88] sm:$0xff]
    %v507 = vld [vmem:[#allocation5 + $0xb90] sm:$0xff]
    %v508 = vld [vmem:[#allocation5 + $0xb98] sm:$0xff]
    %v509 = vld [vmem:[#allocation5 + $0xba0] sm:$0xff]
    %v510 = vld [vmem:[#allocation5 + $0xba8] sm:$0xff]
    %v511 = vld [vmem:[#allocation5 + $0xbb0] sm:$0xff]
    %v512 = vld [vmem:[#allocation5 + $0xbb8] sm:$0xff]
    %v513 = vld [vmem:[#allocation5 + $0xbc0] sm:$0xff]
    %v514 = vld [vmem:[#allocation5 + $0xbc8] sm:$0xff]
    %v515 = vld [vmem:[#allocation5 + $0xbd0] sm:$0xff]
    %v516 = vld [vmem:[#allocation5 + $0xbd8] sm:$0xff]
    %v517 = vld [vmem:[#allocation5 + $0xbe0] sm:$0xff]
    %v518 = vld [vmem:[#allocation5 + $0xbe8] sm:$0xff]
    %v519 = vld [vmem:[#allocation5 + $0xbf0] sm:$0xff]
    %v520 = vld [vmem:[#allocation5 + $0xbf8] sm:$0xff]
    %v521 = vld [vmem:[#allocation5 + $0xc00] sm:$0xff]
    %v522 = vld [vmem:[#allocation5 + $0xc08] sm:$0xff]
    %v523 = vld [vmem:[#allocation5 + $0xc10] sm:$0xff]
    %v524 = vld [vmem:[#allocation5 + $0xc18] sm:$0xff]
    %v525 = vld [vmem:[#allocation5 + $0xc20] sm:$0xff]
    %v526 = vld [vmem:[#allocation5 + $0xc28] sm:$0xff]
    %v527 = vld [vmem:[#allocation5 + $0xc30] sm:$0xff]
    %v528 = vld [vmem:[#allocation5 + $0xc38] sm:$0xff]
    %v529 = vld [vmem:[#allocation5 + $0xc40] sm:$0xff]
    %v530 = vld [vmem:[#allocation5 + $0xc48] sm:$0xff]
    %v531 = vld [vmem:[#allocation5 + $0xc50] sm:$0xff]
    %v532 = vld [vmem:[#allocation5 + $0xc58] sm:$0xff]
    %v533 = vld [vmem:[#allocation5 + $0xc60] sm:$0xff]
    %v534 = vld [vmem:[#allocation5 + $0xc68] sm:$0xff]
    %v535 = vld [vmem:[#allocation5 + $0xc70] sm:$0xff]
    %v536 = vld [vmem:[#allocation5 + $0xc78] sm:$0xff]
    %v537 = vld [vmem:[#allocation5 + $0xc80] sm:$0xff]
    %v538 = vld [vmem:[#allocation5 + $0xc88] sm:$0xff]
    %v539 = vld [vmem:[#allocation5 + $0xc90] sm:$0xff]
    %v540 = vld [vmem:[#allocation5 + $0xc98] sm:$0xff]
    %v541 = vld [vmem:[#allocation5 + $0xca0] sm:$0xff]
    %v542 = vld [vmem:[#allocation5 + $0xca8] sm:$0xff]
    %v543 = vld [vmem:[#allocation5 + $0xcb0] sm:$0xff]
    %v544 = vld [vmem:[#allocation5 + $0xcb8] sm:$0xff]
    %v545 = vld [vmem:[#allocation5 + $0xcc0] sm:$0xff]
    %v546 = vld [vmem:[#allocation5 + $0xcc8] sm:$0xff]
    %v547 = vld [vmem:[#allocation5 + $0xcd0] sm:$0xff]
    %v548 = vld [vmem:[#allocation5 + $0xcd8] sm:$0xff]
    %v549 = vld [vmem:[#allocation5 + $0xce0] sm:$0xff]
    %v550 = vld [vmem:[#allocation5 + $0xce8] sm:$0xff]
    %v551 = vld [vmem:[#allocation5 + $0xcf0] sm:$0xff]
    %v552 = vld [vmem:[#allocation5 + $0xcf8] sm:$0xff]
    %v553 = vld [vmem:[#allocation5 + $0xd00] sm:$0xff]
    %v554 = vld [vmem:[#allocation5 + $0xd08] sm:$0xff]
    %v555 = vld [vmem:[#allocation5 + $0xd10] sm:$0xff]
    %v556 = vld [vmem:[#allocation5 + $0xd18] sm:$0xff]
    %v557 = vld [vmem:[#allocation5 + $0xd20] sm:$0xff]
    %v558 = vld [vmem:[#allocation5 + $0xd28] sm:$0xff]
    %v559 = vld [vmem:[#allocation5 + $0xd30] sm:$0xff]
    %v560 = vld [vmem:[#allocation5 + $0xd38] sm:$0xff]
    %v561 = vld [vmem:[#allocation5 + $0xd40] sm:$0xff]
    %v562 = vld [vmem:[#allocation5 + $0xd48] sm:$0xff]
    %v563 = vld [vmem:[#allocation5 + $0xd50] sm:$0xff]
    %v564 = vld [vmem:[#allocation5 + $0xd58] sm:$0xff]
    %v565 = vld [vmem:[#allocation5 + $0xd60] sm:$0xff]
    %v566 = vld [vmem:[#allocation5 + $0xd68] sm:$0xff]
    %v567 = vld [vmem:[#allocation5 + $0xd70] sm:$0xff]
    %v568 = vld [vmem:[#allocation5 + $0xd78] sm:$0xff]
    %v569 = vld [vmem:[#allocation5 + $0xd80] sm:$0xff]
    %v570 = vld [vmem:[#allocation5 + $0xd88] sm:$0xff]
    %v571 = vld [vmem:[#allocation5 + $0xd90] sm:$0xff]
    %v572 = vld [vmem:[#allocation5 + $0xd98] sm:$0xff]
    %v573 = vld [vmem:[#allocation5 + $0xda0] sm:$0xff]
    %v574 = vld [vmem:[#allocation5 + $0xda8] sm:$0xff]
    %v575 = vld [vmem:[#allocation5 + $0xdb0] sm:$0xff]
    %v576 = vld [vmem:[#allocation5 + $0xdb8] sm:$0xff]
    %v577 = vld [vmem:[#allocation5 + $0xdc0] sm:$0xff]
    %v578 = vld [vmem:[#allocation5 + $0xdc8] sm:$0xff]
    %v579 = vld [vmem:[#allocation5 + $0xdd0] sm:$0xff]
    %v580 = vld [vmem:[#allocation5 + $0xdd8] sm:$0xff]
    %v581 = vld [vmem:[#allocation5 + $0xde0] sm:$0xff]
    %v582 = vld [vmem:[#allocation5 + $0xde8] sm:$0xff]
    %v583 = vld [vmem:[#allocation5 + $0xdf0] sm:$0xff]
    %v584 = vld [vmem:[#allocation5 + $0xdf8] sm:$0xff]
    %v585 = vld [vmem:[#allocation5 + $0xe00] sm:$0xff]
    %v586 = vld [vmem:[#allocation5 + $0xe08] sm:$0xff]
    %v587 = vld [vmem:[#allocation5 + $0xe10] sm:$0xff]
    %v588 = vld [vmem:[#allocation5 + $0xe18] sm:$0xff]
    %v589 = vld [vmem:[#allocation5 + $0xe20] sm:$0xff]
    %v590 = vld [vmem:[#allocation5 + $0xe28] sm:$0xff]
    %v591 = vld [vmem:[#allocation5 + $0xe30] sm:$0xff]
    %v592 = vld [vmem:[#allocation5 + $0xe38] sm:$0xff]
    %v593 = vld [vmem:[#allocation5 + $0xe40] sm:$0xff]
    %v594 = vld [vmem:[#allocation5 + $0xe48] sm:$0xff]
    %v595 = vld [vmem:[#allocation5 + $0xe50] sm:$0xff]
    %v596 = vld [vmem:[#allocation5 + $0xe58] sm:$0xff]
    %v597 = vld [vmem:[#allocation5 + $0xe60] sm:$0xff]
    %v598 = vld [vmem:[#allocation5 + $0xe68] sm:$0xff]
    %v599 = vld [vmem:[#allocation5 + $0xe70] sm:$0xff]
    %v600 = vld [vmem:[#allocation5 + $0xe78] sm:$0xff]
    %v601 = vld [vmem:[#allocation5 + $0xe80] sm:$0xff]
    %v602 = vld [vmem:[#allocation5 + $0xe88] sm:$0xff]
    %v603 = vld [vmem:[#allocation5 + $0xe90] sm:$0xff]
    %v604 = vld [vmem:[#allocation5 + $0xe98] sm:$0xff]
    %v605 = vld [vmem:[#allocation5 + $0xea0] sm:$0xff]
    %v606 = vld [vmem:[#allocation5 + $0xea8] sm:$0xff]
    %v607 = vld [vmem:[#allocation5 + $0xeb0] sm:$0xff]
    %v608 = vld [vmem:[#allocation5 + $0xeb8] sm:$0xff]
    %v609 = vld [vmem:[#allocation5 + $0xec0] sm:$0xff]
    %v610 = vld [vmem:[#allocation5 + $0xec8] sm:$0xff]
    %v611 = vld [vmem:[#allocation5 + $0xed0] sm:$0xff]
    %v612 = vld [vmem:[#allocation5 + $0xed8] sm:$0xff]
    %v613 = vld [vmem:[#allocation5 + $0xee0] sm:$0xff]
    %v614 = vld [vmem:[#allocation5 + $0xee8] sm:$0xff]
    %v615 = vld [vmem:[#allocation5 + $0xef0] sm:$0xff]
    %v616 = vld [vmem:[#allocation5 + $0xef8] sm:$0xff]
    %v617 = vld [vmem:[#allocation5 + $0xf00] sm:$0xff]
    %v618 = vld [vmem:[#allocation5 + $0xf08] sm:$0xff]
    %v619 = vld [vmem:[#allocation5 + $0xf10] sm:$0xff]
    %v620 = vld [vmem:[#allocation5 + $0xf18] sm:$0xff]
    %v621 = vld [vmem:[#allocation5 + $0xf20] sm:$0xff]
    %v622 = vld [vmem:[#allocation5 + $0xf28] sm:$0xff]
    %v623 = vld [vmem:[#allocation5 + $0xf30] sm:$0xff]
    %v624 = vld [vmem:[#allocation5 + $0xf38] sm:$0xff]
    %v625 = vld [vmem:[#allocation5 + $0xf40] sm:$0xff]
    %v626 = vld [vmem:[#allocation5 + $0xf48] sm:$0xff]
    %v627 = vld [vmem:[#allocation5 + $0xf50] sm:$0xff]
    %v628 = vld [vmem:[#allocation5 + $0xf58] sm:$0xff]
    %v629 = vld [vmem:[#allocation5 + $0xf60] sm:$0xff]
    %v630 = vld [vmem:[#allocation5 + $0xf68] sm:$0xff]
    %v631 = vld [vmem:[#allocation5 + $0xf70] sm:$0xff]
    %v632 = vld [vmem:[#allocation5 + $0xf78] sm:$0xff]
    %v633 = vld [vmem:[#allocation5 + $0xf80] sm:$0xff]
    %v634 = vld [vmem:[#allocation5 + $0xf88] sm:$0xff]
    %v635 = vld [vmem:[#allocation5 + $0xf90] sm:$0xff]
    %v636 = vld [vmem:[#allocation5 + $0xf98] sm:$0xff]
    %v637 = vld [vmem:[#allocation5 + $0xfa0] sm:$0xff]
    %v638 = vld [vmem:[#allocation5 + $0xfa8] sm:$0xff]
    %v639 = vld [vmem:[#allocation5 + $0xfb0] sm:$0xff]
    %v640 = vld [vmem:[#allocation5 + $0xfb8] sm:$0xff]
    %v641 = vld [vmem:[#allocation5 + $0xfc0] sm:$0xff]
    %v642 = vld [vmem:[#allocation5 + $0xfc8] sm:$0xff]
    %v643 = vld [vmem:[#allocation5 + $0xfd0] sm:$0xff]
    %v644 = vld [vmem:[#allocation5 + $0xfd8] sm:$0xff]
    %v645 = vld [vmem:[#allocation5 + $0xfe0] sm:$0xff]
    %v646 = vld [vmem:[#allocation5 + $0xfe8] sm:$0xff]
    %v647 = vld [vmem:[#allocation5 + $0xff0] sm:$0xff]
    %v648 = vld [vmem:[#allocation5 + $0xff8] sm:$0xff]
    %v649 = vld [vmem:[#allocation7] sm:$0xff]
    %v651 = vlaneseq
    %v652 = vshrl.u32 %v651, 7
    %v653 = vsub.s32 0, %v652
    %v654 = vrot.slane %v649, %v653
    %v655 = vlaneseq
    %v656 = vshrl.u32 %v655, 7
    %v657 = vsub.s32 1, %v656
    %v658 = vrot.slane %v649, %v657
    %v659 = vlaneseq
    %v660 = vshrl.u32 %v659, 7
    %v661 = vsub.s32 2, %v660
    %v662 = vrot.slane %v649, %v661
    %v663 = vlaneseq
    %v664 = vshrl.u32 %v663, 7
    %v665 = vsub.s32 3, %v664
    %v666 = vrot.slane %v649, %v665
    %v667 = vlaneseq
    %v668 = vshrl.u32 %v667, 7
    %v669 = vsub.s32 4, %v668
    %v670 = vrot.slane %v649, %v669
    %v671 = vlaneseq
    %v672 = vshrl.u32 %v671, 7
    %v673 = vsub.s32 5, %v672
    %v674 = vrot.slane %v649, %v673
    %v675 = vlaneseq
    %v676 = vshrl.u32 %v675, 7
    %v677 = vsub.s32 6, %v676
    %v678 = vrot.slane %v649, %v677
    %v679 = vlaneseq
    %v680 = vshrl.u32 %v679, 7
    %v681 = vsub.s32 7, %v680
    %v682 = vrot.slane %v649, %v681
    %v695 = vunpack.c.l.b16 %v133
    %v696 = vunpack.c.h.b16 %v133
    %v697 = vunpack.c.l.b16 %v134
    %v698 = vunpack.c.h.b16 %v134
    %v699 = vunpack.c.l.b16 %v135
    %v700 = vunpack.c.h.b16 %v135
    %v701 = vunpack.c.l.b16 %v136
    %v702 = vunpack.c.h.b16 %v136
    %v703 = vpack.c.b16 %v695, %v695
    %v704 = vpack.c.b16 %v696, %v696
    %v705 = vpack.c.b16 %v697, %v697
    %v706 = vpack.c.b16 %v698, %v698
    %v707 = vpack.c.b16 %v699, %v699
    %v708 = vpack.c.b16 %v700, %v700
    %v709 = vpack.c.b16 %v701, %v701
    %v710 = vpack.c.b16 %v702, %v702
    %v1231 = vunpack.c.l.b16 %v137
    %v1232 = vunpack.c.h.b16 %v137
    %v1233 = vunpack.c.l.b16 %v138
    %v1234 = vunpack.c.h.b16 %v138
    %v1235 = vunpack.c.l.b16 %v139
    %v1236 = vunpack.c.h.b16 %v139
    %v1237 = vunpack.c.l.b16 %v140
    %v1238 = vunpack.c.h.b16 %v140
    %v1239 = vunpack.c.l.b16 %v141
    %v1240 = vunpack.c.h.b16 %v141
    %v1241 = vunpack.c.l.b16 %v142
    %v1242 = vunpack.c.h.b16 %v142
    %v1243 = vunpack.c.l.b16 %v143
    %v1244 = vunpack.c.h.b16 %v143
    %v1245 = vunpack.c.l.b16 %v144
    %v1246 = vunpack.c.h.b16 %v144
    %v1247 = vunpack.c.l.b16 %v145
    %v1248 = vunpack.c.h.b16 %v145
    %v1249 = vunpack.c.l.b16 %v146
    %v1250 = vunpack.c.h.b16 %v146
    %v1251 = vunpack.c.l.b16 %v147
    %v1252 = vunpack.c.h.b16 %v147
    %v1253 = vunpack.c.l.b16 %v148
    %v1254 = vunpack.c.h.b16 %v148
    %v1255 = vunpack.c.l.b16 %v149
    %v1256 = vunpack.c.h.b16 %v149
    %v1257 = vunpack.c.l.b16 %v150
    %v1258 = vunpack.c.h.b16 %v150
    %v1259 = vunpack.c.l.b16 %v151
    %v1260 = vunpack.c.h.b16 %v151
    %v1261 = vunpack.c.l.b16 %v152
    %v1262 = vunpack.c.h.b16 %v152
    %v1263 = vunpack.c.l.b16 %v153
    %v1264 = vunpack.c.h.b16 %v153
    %v1265 = vunpack.c.l.b16 %v154
    %v1266 = vunpack.c.h.b16 %v154
    %v1267 = vunpack.c.l.b16 %v155
    %v1268 = vunpack.c.h.b16 %v155
    %v1269 = vunpack.c.l.b16 %v156
    %v1270 = vunpack.c.h.b16 %v156
    %v1271 = vunpack.c.l.b16 %v157
    %v1272 = vunpack.c.h.b16 %v157
    %v1273 = vunpack.c.l.b16 %v158
    %v1274 = vunpack.c.h.b16 %v158
    %v1275 = vunpack.c.l.b16 %v159
    %v1276 = vunpack.c.h.b16 %v159
    %v1277 = vunpack.c.l.b16 %v160
    %v1278 = vunpack.c.h.b16 %v160
    %v1279 = vunpack.c.l.b16 %v161
    %v1280 = vunpack.c.h.b16 %v161
    %v1281 = vunpack.c.l.b16 %v162
    %v1282 = vunpack.c.h.b16 %v162
    %v1283 = vunpack.c.l.b16 %v163
    %v1284 = vunpack.c.h.b16 %v163
    %v1285 = vunpack.c.l.b16 %v164
    %v1286 = vunpack.c.h.b16 %v164
    %v1287 = vunpack.c.l.b16 %v165
    %v1288 = vunpack.c.h.b16 %v165
    %v1289 = vunpack.c.l.b16 %v166
    %v1290 = vunpack.c.h.b16 %v166
    %v1291 = vunpack.c.l.b16 %v167
    %v1292 = vunpack.c.h.b16 %v167
    %v1293 = vunpack.c.l.b16 %v168
    %v1294 = vunpack.c.h.b16 %v168
    %v1295 = vunpack.c.l.b16 %v169
    %v1296 = vunpack.c.h.b16 %v169
    %v1297 = vunpack.c.l.b16 %v170
    %v1298 = vunpack.c.h.b16 %v170
    %v1299 = vunpack.c.l.b16 %v171
    %v1300 = vunpack.c.h.b16 %v171
    %v1301 = vunpack.c.l.b16 %v172
    %v1302 = vunpack.c.h.b16 %v172
    %v1303 = vunpack.c.l.b16 %v173
    %v1304 = vunpack.c.h.b16 %v173
    %v1305 = vunpack.c.l.b16 %v174
    %v1306 = vunpack.c.h.b16 %v174
    %v1307 = vunpack.c.l.b16 %v175
    %v1308 = vunpack.c.h.b16 %v175
    %v1309 = vunpack.c.l.b16 %v176
    %v1310 = vunpack.c.h.b16 %v176
    %v1311 = vunpack.c.l.b16 %v177
    %v1312 = vunpack.c.h.b16 %v177
    %v1313 = vunpack.c.l.b16 %v178
    %v1314 = vunpack.c.h.b16 %v178
    %v1315 = vunpack.c.l.b16 %v179
    %v1316 = vunpack.c.h.b16 %v179
    %v1317 = vunpack.c.l.b16 %v180
    %v1318 = vunpack.c.h.b16 %v180
    %v1319 = vunpack.c.l.b16 %v181
    %v1320 = vunpack.c.h.b16 %v181
    %v1321 = vunpack.c.l.b16 %v182
    %v1322 = vunpack.c.h.b16 %v182
    %v1323 = vunpack.c.l.b16 %v183
    %v1324 = vunpack.c.h.b16 %v183
    %v1325 = vunpack.c.l.b16 %v184
    %v1326 = vunpack.c.h.b16 %v184
    %v1327 = vunpack.c.l.b16 %v185
    %v1328 = vunpack.c.h.b16 %v185
    %v1329 = vunpack.c.l.b16 %v186
    %v1330 = vunpack.c.h.b16 %v186
    %v1331 = vunpack.c.l.b16 %v187
    %v1332 = vunpack.c.h.b16 %v187
    %v1333 = vunpack.c.l.b16 %v188
    %v1334 = vunpack.c.h.b16 %v188
    %v1335 = vunpack.c.l.b16 %v189
    %v1336 = vunpack.c.h.b16 %v189
    %v1337 = vunpack.c.l.b16 %v190
    %v1338 = vunpack.c.h.b16 %v190
    %v1339 = vunpack.c.l.b16 %v191
    %v1340 = vunpack.c.h.b16 %v191
    %v1341 = vunpack.c.l.b16 %v192
    %v1342 = vunpack.c.h.b16 %v192
    %v1343 = vunpack.c.l.b16 %v193
    %v1344 = vunpack.c.h.b16 %v193
    %v1345 = vunpack.c.l.b16 %v194
    %v1346 = vunpack.c.h.b16 %v194
    %v1347 = vunpack.c.l.b16 %v195
    %v1348 = vunpack.c.h.b16 %v195
    %v1349 = vunpack.c.l.b16 %v196
    %v1350 = vunpack.c.h.b16 %v196
    %v1351 = vunpack.c.l.b16 %v197
    %v1352 = vunpack.c.h.b16 %v197
    %v1353 = vunpack.c.l.b16 %v198
    %v1354 = vunpack.c.h.b16 %v198
    %v1355 = vunpack.c.l.b16 %v199
    %v1356 = vunpack.c.h.b16 %v199
    %v1357 = vunpack.c.l.b16 %v200
    %v1358 = vunpack.c.h.b16 %v200
    %v1359 = vunpack.c.l.b16 %v201
    %v1360 = vunpack.c.h.b16 %v201
    %v1361 = vunpack.c.l.b16 %v202
    %v1362 = vunpack.c.h.b16 %v202
    %v1363 = vunpack.c.l.b16 %v203
    %v1364 = vunpack.c.h.b16 %v203
    %v1365 = vunpack.c.l.b16 %v204
    %v1366 = vunpack.c.h.b16 %v204
    %v1367 = vunpack.c.l.b16 %v205
    %v1368 = vunpack.c.h.b16 %v205
    %v1369 = vunpack.c.l.b16 %v206
    %v1370 = vunpack.c.h.b16 %v206
    %v1371 = vunpack.c.l.b16 %v207
    %v1372 = vunpack.c.h.b16 %v207
    %v1373 = vunpack.c.l.b16 %v208
    %v1374 = vunpack.c.h.b16 %v208
    %v1375 = vunpack.c.l.b16 %v209
    %v1376 = vunpack.c.h.b16 %v209
    %v1377 = vunpack.c.l.b16 %v210
    %v1378 = vunpack.c.h.b16 %v210
    %v1379 = vunpack.c.l.b16 %v211
    %v1380 = vunpack.c.h.b16 %v211
    %v1381 = vunpack.c.l.b16 %v212
    %v1382 = vunpack.c.h.b16 %v212
    %v1383 = vunpack.c.l.b16 %v213
    %v1384 = vunpack.c.h.b16 %v213
    %v1385 = vunpack.c.l.b16 %v214
    %v1386 = vunpack.c.h.b16 %v214
    %v1387 = vunpack.c.l.b16 %v215
    %v1388 = vunpack.c.h.b16 %v215
    %v1389 = vunpack.c.l.b16 %v216
    %v1390 = vunpack.c.h.b16 %v216
    %v1391 = vunpack.c.l.b16 %v217
    %v1392 = vunpack.c.h.b16 %v217
    %v1393 = vunpack.c.l.b16 %v218
    %v1394 = vunpack.c.h.b16 %v218
    %v1395 = vunpack.c.l.b16 %v219
    %v1396 = vunpack.c.h.b16 %v219
    %v1397 = vunpack.c.l.b16 %v220
    %v1398 = vunpack.c.h.b16 %v220
    %v1399 = vunpack.c.l.b16 %v221
    %v1400 = vunpack.c.h.b16 %v221
    %v1401 = vunpack.c.l.b16 %v222
    %v1402 = vunpack.c.h.b16 %v222
    %v1403 = vunpack.c.l.b16 %v223
    %v1404 = vunpack.c.h.b16 %v223
    %v1405 = vunpack.c.l.b16 %v224
    %v1406 = vunpack.c.h.b16 %v224
    %v1407 = vunpack.c.l.b16 %v225
    %v1408 = vunpack.c.h.b16 %v225
    %v1409 = vunpack.c.l.b16 %v226
    %v1410 = vunpack.c.h.b16 %v226
    %v1411 = vunpack.c.l.b16 %v227
    %v1412 = vunpack.c.h.b16 %v227
    %v1413 = vunpack.c.l.b16 %v228
    %v1414 = vunpack.c.h.b16 %v228
    %v1415 = vunpack.c.l.b16 %v229
    %v1416 = vunpack.c.h.b16 %v229
    %v1417 = vunpack.c.l.b16 %v230
    %v1418 = vunpack.c.h.b16 %v230
    %v1419 = vunpack.c.l.b16 %v231
    %v1420 = vunpack.c.h.b16 %v231
    %v1421 = vunpack.c.l.b16 %v232
    %v1422 = vunpack.c.h.b16 %v232
    %v1423 = vunpack.c.l.b16 %v233
    %v1424 = vunpack.c.h.b16 %v233
    %v1425 = vunpack.c.l.b16 %v234
    %v1426 = vunpack.c.h.b16 %v234
    %v1427 = vunpack.c.l.b16 %v235
    %v1428 = vunpack.c.h.b16 %v235
    %v1429 = vunpack.c.l.b16 %v236
    %v1430 = vunpack.c.h.b16 %v236
    %v1431 = vunpack.c.l.b16 %v237
    %v1432 = vunpack.c.h.b16 %v237
    %v1433 = vunpack.c.l.b16 %v238
    %v1434 = vunpack.c.h.b16 %v238
    %v1435 = vunpack.c.l.b16 %v239
    %v1436 = vunpack.c.h.b16 %v239
    %v1437 = vunpack.c.l.b16 %v240
    %v1438 = vunpack.c.h.b16 %v240
    %v1439 = vunpack.c.l.b16 %v241
    %v1440 = vunpack.c.h.b16 %v241
    %v1441 = vunpack.c.l.b16 %v242
    %v1442 = vunpack.c.h.b16 %v242
    %v1443 = vunpack.c.l.b16 %v243
    %v1444 = vunpack.c.h.b16 %v243
    %v1445 = vunpack.c.l.b16 %v244
    %v1446 = vunpack.c.h.b16 %v244
    %v1447 = vunpack.c.l.b16 %v245
    %v1448 = vunpack.c.h.b16 %v245
    %v1449 = vunpack.c.l.b16 %v246
    %v1450 = vunpack.c.h.b16 %v246
    %v1451 = vunpack.c.l.b16 %v247
    %v1452 = vunpack.c.h.b16 %v247
    %v1453 = vunpack.c.l.b16 %v248
    %v1454 = vunpack.c.h.b16 %v248
    %v1455 = vunpack.c.l.b16 %v249
    %v1456 = vunpack.c.h.b16 %v249
    %v1457 = vunpack.c.l.b16 %v250
    %v1458 = vunpack.c.h.b16 %v250
    %v1459 = vunpack.c.l.b16 %v251
    %v1460 = vunpack.c.h.b16 %v251
    %v1461 = vunpack.c.l.b16 %v252
    %v1462 = vunpack.c.h.b16 %v252
    %v1463 = vunpack.c.l.b16 %v253
    %v1464 = vunpack.c.h.b16 %v253
    %v1465 = vunpack.c.l.b16 %v254
    %v1466 = vunpack.c.h.b16 %v254
    %v1467 = vunpack.c.l.b16 %v255
    %v1468 = vunpack.c.h.b16 %v255
    %v1469 = vunpack.c.l.b16 %v256
    %v1470 = vunpack.c.h.b16 %v256
    %v1471 = vunpack.c.l.b16 %v257
    %v1472 = vunpack.c.h.b16 %v257
    %v1473 = vunpack.c.l.b16 %v258
    %v1474 = vunpack.c.h.b16 %v258
    %v1475 = vunpack.c.l.b16 %v259
    %v1476 = vunpack.c.h.b16 %v259
    %v1477 = vunpack.c.l.b16 %v260
    %v1478 = vunpack.c.h.b16 %v260
    %v1479 = vunpack.c.l.b16 %v261
    %v1480 = vunpack.c.h.b16 %v261
    %v1481 = vunpack.c.l.b16 %v262
    %v1482 = vunpack.c.h.b16 %v262
    %v1483 = vunpack.c.l.b16 %v263
    %v1484 = vunpack.c.h.b16 %v263
    %v1485 = vunpack.c.l.b16 %v264
    %v1486 = vunpack.c.h.b16 %v264
    %v1487 = vunpack.c.l.b16 %v265
    %v1488 = vunpack.c.h.b16 %v265
    %v1489 = vunpack.c.l.b16 %v266
    %v1490 = vunpack.c.h.b16 %v266
    %v1491 = vunpack.c.l.b16 %v267
    %v1492 = vunpack.c.h.b16 %v267
    %v1493 = vunpack.c.l.b16 %v268
    %v1494 = vunpack.c.h.b16 %v268
    %v1495 = vunpack.c.l.b16 %v269
    %v1496 = vunpack.c.h.b16 %v269
    %v1497 = vunpack.c.l.b16 %v270
    %v1498 = vunpack.c.h.b16 %v270
    %v1499 = vunpack.c.l.b16 %v271
    %v1500 = vunpack.c.h.b16 %v271
    %v1501 = vunpack.c.l.b16 %v272
    %v1502 = vunpack.c.h.b16 %v272
    %v1503 = vunpack.c.l.b16 %v273
    %v1504 = vunpack.c.h.b16 %v273
    %v1505 = vunpack.c.l.b16 %v274
    %v1506 = vunpack.c.h.b16 %v274
    %v1507 = vunpack.c.l.b16 %v275
    %v1508 = vunpack.c.h.b16 %v275
    %v1509 = vunpack.c.l.b16 %v276
    %v1510 = vunpack.c.h.b16 %v276
    %v1511 = vunpack.c.l.b16 %v277
    %v1512 = vunpack.c.h.b16 %v277
    %v1513 = vunpack.c.l.b16 %v278
    %v1514 = vunpack.c.h.b16 %v278
    %v1515 = vunpack.c.l.b16 %v279
    %v1516 = vunpack.c.h.b16 %v279
    %v1517 = vunpack.c.l.b16 %v280
    %v1518 = vunpack.c.h.b16 %v280
    %v1519 = vunpack.c.l.b16 %v281
    %v1520 = vunpack.c.h.b16 %v281
    %v1521 = vunpack.c.l.b16 %v282
    %v1522 = vunpack.c.h.b16 %v282
    %v1523 = vunpack.c.l.b16 %v283
    %v1524 = vunpack.c.h.b16 %v283
    %v1525 = vunpack.c.l.b16 %v284
    %v1526 = vunpack.c.h.b16 %v284
    %v1527 = vunpack.c.l.b16 %v285
    %v1528 = vunpack.c.h.b16 %v285
    %v1529 = vunpack.c.l.b16 %v286
    %v1530 = vunpack.c.h.b16 %v286
    %v1531 = vunpack.c.l.b16 %v287
    %v1532 = vunpack.c.h.b16 %v287
    %v1533 = vunpack.c.l.b16 %v288
    %v1534 = vunpack.c.h.b16 %v288
    %v1535 = vunpack.c.l.b16 %v289
    %v1536 = vunpack.c.h.b16 %v289
    %v1537 = vunpack.c.l.b16 %v290
    %v1538 = vunpack.c.h.b16 %v290
    %v1539 = vunpack.c.l.b16 %v291
    %v1540 = vunpack.c.h.b16 %v291
    %v1541 = vunpack.c.l.b16 %v292
    %v1542 = vunpack.c.h.b16 %v292
    %v1543 = vunpack.c.l.b16 %v293
    %v1544 = vunpack.c.h.b16 %v293
    %v1545 = vunpack.c.l.b16 %v294
    %v1546 = vunpack.c.h.b16 %v294
    %v1547 = vunpack.c.l.b16 %v295
    %v1548 = vunpack.c.h.b16 %v295
    %v1549 = vunpack.c.l.b16 %v296
    %v1550 = vunpack.c.h.b16 %v296
    %v1551 = vunpack.c.l.b16 %v297
    %v1552 = vunpack.c.h.b16 %v297
    %v1553 = vunpack.c.l.b16 %v298
    %v1554 = vunpack.c.h.b16 %v298
    %v1555 = vunpack.c.l.b16 %v299
    %v1556 = vunpack.c.h.b16 %v299
    %v1557 = vunpack.c.l.b16 %v300
    %v1558 = vunpack.c.h.b16 %v300
    %v1559 = vunpack.c.l.b16 %v301
    %v1560 = vunpack.c.h.b16 %v301
    %v1561 = vunpack.c.l.b16 %v302
    %v1562 = vunpack.c.h.b16 %v302
    %v1563 = vunpack.c.l.b16 %v303
    %v1564 = vunpack.c.h.b16 %v303
    %v1565 = vunpack.c.l.b16 %v304
    %v1566 = vunpack.c.h.b16 %v304
    %v1567 = vunpack.c.l.b16 %v305
    %v1568 = vunpack.c.h.b16 %v305
    %v1569 = vunpack.c.l.b16 %v306
    %v1570 = vunpack.c.h.b16 %v306
    %v1571 = vunpack.c.l.b16 %v307
    %v1572 = vunpack.c.h.b16 %v307
    %v1573 = vunpack.c.l.b16 %v308
    %v1574 = vunpack.c.h.b16 %v308
    %v1575 = vunpack.c.l.b16 %v309
    %v1576 = vunpack.c.h.b16 %v309
    %v1577 = vunpack.c.l.b16 %v310
    %v1578 = vunpack.c.h.b16 %v310
    %v1579 = vunpack.c.l.b16 %v311
    %v1580 = vunpack.c.h.b16 %v311
    %v1581 = vunpack.c.l.b16 %v312
    %v1582 = vunpack.c.h.b16 %v312
    %v1583 = vunpack.c.l.b16 %v313
    %v1584 = vunpack.c.h.b16 %v313
    %v1585 = vunpack.c.l.b16 %v314
    %v1586 = vunpack.c.h.b16 %v314
    %v1587 = vunpack.c.l.b16 %v315
    %v1588 = vunpack.c.h.b16 %v315
    %v1589 = vunpack.c.l.b16 %v316
    %v1590 = vunpack.c.h.b16 %v316
    %v1591 = vunpack.c.l.b16 %v317
    %v1592 = vunpack.c.h.b16 %v317
    %v1593 = vunpack.c.l.b16 %v318
    %v1594 = vunpack.c.h.b16 %v318
    %v1595 = vunpack.c.l.b16 %v319
    %v1596 = vunpack.c.h.b16 %v319
    %v1597 = vunpack.c.l.b16 %v320
    %v1598 = vunpack.c.h.b16 %v320
    %v1599 = vunpack.c.l.b16 %v321
    %v1600 = vunpack.c.h.b16 %v321
    %v1601 = vunpack.c.l.b16 %v322
    %v1602 = vunpack.c.h.b16 %v322
    %v1603 = vunpack.c.l.b16 %v323
    %v1604 = vunpack.c.h.b16 %v323
    %v1605 = vunpack.c.l.b16 %v324
    %v1606 = vunpack.c.h.b16 %v324
    %v1607 = vunpack.c.l.b16 %v325
    %v1608 = vunpack.c.h.b16 %v325
    %v1609 = vunpack.c.l.b16 %v326
    %v1610 = vunpack.c.h.b16 %v326
    %v1611 = vunpack.c.l.b16 %v327
    %v1612 = vunpack.c.h.b16 %v327
    %v1613 = vunpack.c.l.b16 %v328
    %v1614 = vunpack.c.h.b16 %v328
    %v1615 = vunpack.c.l.b16 %v329
    %v1616 = vunpack.c.h.b16 %v329
    %v1617 = vunpack.c.l.b16 %v330
    %v1618 = vunpack.c.h.b16 %v330
    %v1619 = vunpack.c.l.b16 %v331
    %v1620 = vunpack.c.h.b16 %v331
    %v1621 = vunpack.c.l.b16 %v332
    %v1622 = vunpack.c.h.b16 %v332
    %v1623 = vunpack.c.l.b16 %v333
    %v1624 = vunpack.c.h.b16 %v333
    %v1625 = vunpack.c.l.b16 %v334
    %v1626 = vunpack.c.h.b16 %v334
    %v1627 = vunpack.c.l.b16 %v335
    %v1628 = vunpack.c.h.b16 %v335
    %v1629 = vunpack.c.l.b16 %v336
    %v1630 = vunpack.c.h.b16 %v336
    %v1631 = vunpack.c.l.b16 %v337
    %v1632 = vunpack.c.h.b16 %v337
    %v1633 = vunpack.c.l.b16 %v338
    %v1634 = vunpack.c.h.b16 %v338
    %v1635 = vunpack.c.l.b16 %v339
    %v1636 = vunpack.c.h.b16 %v339
    %v1637 = vunpack.c.l.b16 %v340
    %v1638 = vunpack.c.h.b16 %v340
    %v1639 = vunpack.c.l.b16 %v341
    %v1640 = vunpack.c.h.b16 %v341
    %v1641 = vunpack.c.l.b16 %v342
    %v1642 = vunpack.c.h.b16 %v342
    %v1643 = vunpack.c.l.b16 %v343
    %v1644 = vunpack.c.h.b16 %v343
    %v1645 = vunpack.c.l.b16 %v344
    %v1646 = vunpack.c.h.b16 %v344
    %v1647 = vunpack.c.l.b16 %v345
    %v1648 = vunpack.c.h.b16 %v345
    %v1649 = vunpack.c.l.b16 %v346
    %v1650 = vunpack.c.h.b16 %v346
    %v1651 = vunpack.c.l.b16 %v347
    %v1652 = vunpack.c.h.b16 %v347
    %v1653 = vunpack.c.l.b16 %v348
    %v1654 = vunpack.c.h.b16 %v348
    %v1655 = vunpack.c.l.b16 %v349
    %v1656 = vunpack.c.h.b16 %v349
    %v1657 = vunpack.c.l.b16 %v350
    %v1658 = vunpack.c.h.b16 %v350
    %v1659 = vunpack.c.l.b16 %v351
    %v1660 = vunpack.c.h.b16 %v351
    %v1661 = vunpack.c.l.b16 %v352
    %v1662 = vunpack.c.h.b16 %v352
    %v1663 = vunpack.c.l.b16 %v353
    %v1664 = vunpack.c.h.b16 %v353
    %v1665 = vunpack.c.l.b16 %v354
    %v1666 = vunpack.c.h.b16 %v354
    %v1667 = vunpack.c.l.b16 %v355
    %v1668 = vunpack.c.h.b16 %v355
    %v1669 = vunpack.c.l.b16 %v356
    %v1670 = vunpack.c.h.b16 %v356
    %v1671 = vunpack.c.l.b16 %v357
    %v1672 = vunpack.c.h.b16 %v357
    %v1673 = vunpack.c.l.b16 %v358
    %v1674 = vunpack.c.h.b16 %v358
    %v1675 = vunpack.c.l.b16 %v359
    %v1676 = vunpack.c.h.b16 %v359
    %v1677 = vunpack.c.l.b16 %v360
    %v1678 = vunpack.c.h.b16 %v360
    %v1679 = vunpack.c.l.b16 %v361
    %v1680 = vunpack.c.h.b16 %v361
    %v1681 = vunpack.c.l.b16 %v362
    %v1682 = vunpack.c.h.b16 %v362
    %v1683 = vunpack.c.l.b16 %v363
    %v1684 = vunpack.c.h.b16 %v363
    %v1685 = vunpack.c.l.b16 %v364
    %v1686 = vunpack.c.h.b16 %v364
    %v1687 = vunpack.c.l.b16 %v365
    %v1688 = vunpack.c.h.b16 %v365
    %v1689 = vunpack.c.l.b16 %v366
    %v1690 = vunpack.c.h.b16 %v366
    %v1691 = vunpack.c.l.b16 %v367
    %v1692 = vunpack.c.h.b16 %v367
    %v1693 = vunpack.c.l.b16 %v368
    %v1694 = vunpack.c.h.b16 %v368
    %v1695 = vunpack.c.l.b16 %v369
    %v1696 = vunpack.c.h.b16 %v369
    %v1697 = vunpack.c.l.b16 %v370
    %v1698 = vunpack.c.h.b16 %v370
    %v1699 = vunpack.c.l.b16 %v371
    %v1700 = vunpack.c.h.b16 %v371
    %v1701 = vunpack.c.l.b16 %v372
    %v1702 = vunpack.c.h.b16 %v372
    %v1703 = vunpack.c.l.b16 %v373
    %v1704 = vunpack.c.h.b16 %v373
    %v1705 = vunpack.c.l.b16 %v374
    %v1706 = vunpack.c.h.b16 %v374
    %v1707 = vunpack.c.l.b16 %v375
    %v1708 = vunpack.c.h.b16 %v375
    %v1709 = vunpack.c.l.b16 %v376
    %v1710 = vunpack.c.h.b16 %v376
    %v1711 = vunpack.c.l.b16 %v377
    %v1712 = vunpack.c.h.b16 %v377
    %v1713 = vunpack.c.l.b16 %v378
    %v1714 = vunpack.c.h.b16 %v378
    %v1715 = vunpack.c.l.b16 %v379
    %v1716 = vunpack.c.h.b16 %v379
    %v1717 = vunpack.c.l.b16 %v380
    %v1718 = vunpack.c.h.b16 %v380
    %v1719 = vunpack.c.l.b16 %v381
    %v1720 = vunpack.c.h.b16 %v381
    %v1721 = vunpack.c.l.b16 %v382
    %v1722 = vunpack.c.h.b16 %v382
    %v1723 = vunpack.c.l.b16 %v383
    %v1724 = vunpack.c.h.b16 %v383
    %v1725 = vunpack.c.l.b16 %v384
    %v1726 = vunpack.c.h.b16 %v384
    %v1727 = vunpack.c.l.b16 %v385
    %v1728 = vunpack.c.h.b16 %v385
    %v1729 = vunpack.c.l.b16 %v386
    %v1730 = vunpack.c.h.b16 %v386
    %v1731 = vunpack.c.l.b16 %v387
    %v1732 = vunpack.c.h.b16 %v387
    %v1733 = vunpack.c.l.b16 %v388
    %v1734 = vunpack.c.h.b16 %v388
    %v1735 = vunpack.c.l.b16 %v389
    %v1736 = vunpack.c.h.b16 %v389
    %v1737 = vunpack.c.l.b16 %v390
    %v1738 = vunpack.c.h.b16 %v390
    %v1739 = vunpack.c.l.b16 %v391
    %v1740 = vunpack.c.h.b16 %v391
    %v1741 = vunpack.c.l.b16 %v392
    %v1742 = vunpack.c.h.b16 %v392
    %v1743 = vunpack.c.l.b16 %v393
    %v1744 = vunpack.c.h.b16 %v393
    %v1745 = vunpack.c.l.b16 %v394
    %v1746 = vunpack.c.h.b16 %v394
    %v1747 = vunpack.c.l.b16 %v395
    %v1748 = vunpack.c.h.b16 %v395
    %v1749 = vunpack.c.l.b16 %v396
    %v1750 = vunpack.c.h.b16 %v396
    %v1751 = vunpack.c.l.b16 %v397
    %v1752 = vunpack.c.h.b16 %v397
    %v1753 = vunpack.c.l.b16 %v398
    %v1754 = vunpack.c.h.b16 %v398
    %v1755 = vunpack.c.l.b16 %v399
    %v1756 = vunpack.c.h.b16 %v399
    %v1757 = vunpack.c.l.b16 %v400
    %v1758 = vunpack.c.h.b16 %v400
    %v1759 = vunpack.c.l.b16 %v401
    %v1760 = vunpack.c.h.b16 %v401
    %v1761 = vunpack.c.l.b16 %v402
    %v1762 = vunpack.c.h.b16 %v402
    %v1763 = vunpack.c.l.b16 %v403
    %v1764 = vunpack.c.h.b16 %v403
    %v1765 = vunpack.c.l.b16 %v404
    %v1766 = vunpack.c.h.b16 %v404
    %v1767 = vunpack.c.l.b16 %v405
    %v1768 = vunpack.c.h.b16 %v405
    %v1769 = vunpack.c.l.b16 %v406
    %v1770 = vunpack.c.h.b16 %v406
    %v1771 = vunpack.c.l.b16 %v407
    %v1772 = vunpack.c.h.b16 %v407
    %v1773 = vunpack.c.l.b16 %v408
    %v1774 = vunpack.c.h.b16 %v408
    %v1775 = vunpack.c.l.b16 %v409
    %v1776 = vunpack.c.h.b16 %v409
    %v1777 = vunpack.c.l.b16 %v410
    %v1778 = vunpack.c.h.b16 %v410
    %v1779 = vunpack.c.l.b16 %v411
    %v1780 = vunpack.c.h.b16 %v411
    %v1781 = vunpack.c.l.b16 %v412
    %v1782 = vunpack.c.h.b16 %v412
    %v1783 = vunpack.c.l.b16 %v413
    %v1784 = vunpack.c.h.b16 %v413
    %v1785 = vunpack.c.l.b16 %v414
    %v1786 = vunpack.c.h.b16 %v414
    %v1787 = vunpack.c.l.b16 %v415
    %v1788 = vunpack.c.h.b16 %v415
    %v1789 = vunpack.c.l.b16 %v416
    %v1790 = vunpack.c.h.b16 %v416
    %v1791 = vunpack.c.l.b16 %v417
    %v1792 = vunpack.c.h.b16 %v417
    %v1793 = vunpack.c.l.b16 %v418
    %v1794 = vunpack.c.h.b16 %v418
    %v1795 = vunpack.c.l.b16 %v419
    %v1796 = vunpack.c.h.b16 %v419
    %v1797 = vunpack.c.l.b16 %v420
    %v1798 = vunpack.c.h.b16 %v420
    %v1799 = vunpack.c.l.b16 %v421
    %v1800 = vunpack.c.h.b16 %v421
    %v1801 = vunpack.c.l.b16 %v422
    %v1802 = vunpack.c.h.b16 %v422
    %v1803 = vunpack.c.l.b16 %v423
    %v1804 = vunpack.c.h.b16 %v423
    %v1805 = vunpack.c.l.b16 %v424
    %v1806 = vunpack.c.h.b16 %v424
    %v1807 = vunpack.c.l.b16 %v425
    %v1808 = vunpack.c.h.b16 %v425
    %v1809 = vunpack.c.l.b16 %v426
    %v1810 = vunpack.c.h.b16 %v426
    %v1811 = vunpack.c.l.b16 %v427
    %v1812 = vunpack.c.h.b16 %v427
    %v1813 = vunpack.c.l.b16 %v428
    %v1814 = vunpack.c.h.b16 %v428
    %v1815 = vunpack.c.l.b16 %v429
    %v1816 = vunpack.c.h.b16 %v429
    %v1817 = vunpack.c.l.b16 %v430
    %v1818 = vunpack.c.h.b16 %v430
    %v1819 = vunpack.c.l.b16 %v431
    %v1820 = vunpack.c.h.b16 %v431
    %v1821 = vunpack.c.l.b16 %v432
    %v1822 = vunpack.c.h.b16 %v432
    %v1823 = vunpack.c.l.b16 %v433
    %v1824 = vunpack.c.h.b16 %v433
    %v1825 = vunpack.c.l.b16 %v434
    %v1826 = vunpack.c.h.b16 %v434
    %v1827 = vunpack.c.l.b16 %v435
    %v1828 = vunpack.c.h.b16 %v435
    %v1829 = vunpack.c.l.b16 %v436
    %v1830 = vunpack.c.h.b16 %v436
    %v1831 = vunpack.c.l.b16 %v437
    %v1832 = vunpack.c.h.b16 %v437
    %v1833 = vunpack.c.l.b16 %v438
    %v1834 = vunpack.c.h.b16 %v438
    %v1835 = vunpack.c.l.b16 %v439
    %v1836 = vunpack.c.h.b16 %v439
    %v1837 = vunpack.c.l.b16 %v440
    %v1838 = vunpack.c.h.b16 %v440
    %v1839 = vunpack.c.l.b16 %v441
    %v1840 = vunpack.c.h.b16 %v441
    %v1841 = vunpack.c.l.b16 %v442
    %v1842 = vunpack.c.h.b16 %v442
    %v1843 = vunpack.c.l.b16 %v443
    %v1844 = vunpack.c.h.b16 %v443
    %v1845 = vunpack.c.l.b16 %v444
    %v1846 = vunpack.c.h.b16 %v444
    %v1847 = vunpack.c.l.b16 %v445
    %v1848 = vunpack.c.h.b16 %v445
    %v1849 = vunpack.c.l.b16 %v446
    %v1850 = vunpack.c.h.b16 %v446
    %v1851 = vunpack.c.l.b16 %v447
    %v1852 = vunpack.c.h.b16 %v447
    %v1853 = vunpack.c.l.b16 %v448
    %v1854 = vunpack.c.h.b16 %v448
    %v1855 = vunpack.c.l.b16 %v449
    %v1856 = vunpack.c.h.b16 %v449
    %v1857 = vunpack.c.l.b16 %v450
    %v1858 = vunpack.c.h.b16 %v450
    %v1859 = vunpack.c.l.b16 %v451
    %v1860 = vunpack.c.h.b16 %v451
    %v1861 = vunpack.c.l.b16 %v452
    %v1862 = vunpack.c.h.b16 %v452
    %v1863 = vunpack.c.l.b16 %v453
    %v1864 = vunpack.c.h.b16 %v453
    %v1865 = vunpack.c.l.b16 %v454
    %v1866 = vunpack.c.h.b16 %v454
    %v1867 = vunpack.c.l.b16 %v455
    %v1868 = vunpack.c.h.b16 %v455
    %v1869 = vunpack.c.l.b16 %v456
    %v1870 = vunpack.c.h.b16 %v456
    %v1871 = vunpack.c.l.b16 %v457
    %v1872 = vunpack.c.h.b16 %v457
    %v1873 = vunpack.c.l.b16 %v458
    %v1874 = vunpack.c.h.b16 %v458
    %v1875 = vunpack.c.l.b16 %v459
    %v1876 = vunpack.c.h.b16 %v459
    %v1877 = vunpack.c.l.b16 %v460
    %v1878 = vunpack.c.h.b16 %v460
    %v1879 = vunpack.c.l.b16 %v461
    %v1880 = vunpack.c.h.b16 %v461
    %v1881 = vunpack.c.l.b16 %v462
    %v1882 = vunpack.c.h.b16 %v462
    %v1883 = vunpack.c.l.b16 %v463
    %v1884 = vunpack.c.h.b16 %v463
    %v1885 = vunpack.c.l.b16 %v464
    %v1886 = vunpack.c.h.b16 %v464
    %v1887 = vunpack.c.l.b16 %v465
    %v1888 = vunpack.c.h.b16 %v465
    %v1889 = vunpack.c.l.b16 %v466
    %v1890 = vunpack.c.h.b16 %v466
    %v1891 = vunpack.c.l.b16 %v467
    %v1892 = vunpack.c.h.b16 %v467
    %v1893 = vunpack.c.l.b16 %v468
    %v1894 = vunpack.c.h.b16 %v468
    %v1895 = vunpack.c.l.b16 %v469
    %v1896 = vunpack.c.h.b16 %v469
    %v1897 = vunpack.c.l.b16 %v470
    %v1898 = vunpack.c.h.b16 %v470
    %v1899 = vunpack.c.l.b16 %v471
    %v1900 = vunpack.c.h.b16 %v471
    %v1901 = vunpack.c.l.b16 %v472
    %v1902 = vunpack.c.h.b16 %v472
    %v1903 = vunpack.c.l.b16 %v473
    %v1904 = vunpack.c.h.b16 %v473
    %v1905 = vunpack.c.l.b16 %v474
    %v1906 = vunpack.c.h.b16 %v474
    %v1907 = vunpack.c.l.b16 %v475
    %v1908 = vunpack.c.h.b16 %v475
    %v1909 = vunpack.c.l.b16 %v476
    %v1910 = vunpack.c.h.b16 %v476
    %v1911 = vunpack.c.l.b16 %v477
    %v1912 = vunpack.c.h.b16 %v477
    %v1913 = vunpack.c.l.b16 %v478
    %v1914 = vunpack.c.h.b16 %v478
    %v1915 = vunpack.c.l.b16 %v479
    %v1916 = vunpack.c.h.b16 %v479
    %v1917 = vunpack.c.l.b16 %v480
    %v1918 = vunpack.c.h.b16 %v480
    %v1919 = vunpack.c.l.b16 %v481
    %v1920 = vunpack.c.h.b16 %v481
    %v1921 = vunpack.c.l.b16 %v482
    %v1922 = vunpack.c.h.b16 %v482
    %v1923 = vunpack.c.l.b16 %v483
    %v1924 = vunpack.c.h.b16 %v483
    %v1925 = vunpack.c.l.b16 %v484
    %v1926 = vunpack.c.h.b16 %v484
    %v1927 = vunpack.c.l.b16 %v485
    %v1928 = vunpack.c.h.b16 %v485
    %v1929 = vunpack.c.l.b16 %v486
    %v1930 = vunpack.c.h.b16 %v486
    %v1931 = vunpack.c.l.b16 %v487
    %v1932 = vunpack.c.h.b16 %v487
    %v1933 = vunpack.c.l.b16 %v488
    %v1934 = vunpack.c.h.b16 %v488
    %v1935 = vunpack.c.l.b16 %v489
    %v1936 = vunpack.c.h.b16 %v489
    %v1937 = vunpack.c.l.b16 %v490
    %v1938 = vunpack.c.h.b16 %v490
    %v1939 = vunpack.c.l.b16 %v491
    %v1940 = vunpack.c.h.b16 %v491
    %v1941 = vunpack.c.l.b16 %v492
    %v1942 = vunpack.c.h.b16 %v492
    %v1943 = vunpack.c.l.b16 %v493
    %v1944 = vunpack.c.h.b16 %v493
    %v1945 = vunpack.c.l.b16 %v494
    %v1946 = vunpack.c.h.b16 %v494
    %v1947 = vunpack.c.l.b16 %v495
    %v1948 = vunpack.c.h.b16 %v495
    %v1949 = vunpack.c.l.b16 %v496
    %v1950 = vunpack.c.h.b16 %v496
    %v1951 = vunpack.c.l.b16 %v497
    %v1952 = vunpack.c.h.b16 %v497
    %v1953 = vunpack.c.l.b16 %v498
    %v1954 = vunpack.c.h.b16 %v498
    %v1955 = vunpack.c.l.b16 %v499
    %v1956 = vunpack.c.h.b16 %v499
    %v1957 = vunpack.c.l.b16 %v500
    %v1958 = vunpack.c.h.b16 %v500
    %v1959 = vunpack.c.l.b16 %v501
    %v1960 = vunpack.c.h.b16 %v501
    %v1961 = vunpack.c.l.b16 %v502
    %v1962 = vunpack.c.h.b16 %v502
    %v1963 = vunpack.c.l.b16 %v503
    %v1964 = vunpack.c.h.b16 %v503
    %v1965 = vunpack.c.l.b16 %v504
    %v1966 = vunpack.c.h.b16 %v504
    %v1967 = vunpack.c.l.b16 %v505
    %v1968 = vunpack.c.h.b16 %v505
    %v1969 = vunpack.c.l.b16 %v506
    %v1970 = vunpack.c.h.b16 %v506
    %v1971 = vunpack.c.l.b16 %v507
    %v1972 = vunpack.c.h.b16 %v507
    %v1973 = vunpack.c.l.b16 %v508
    %v1974 = vunpack.c.h.b16 %v508
    %v1975 = vunpack.c.l.b16 %v509
    %v1976 = vunpack.c.h.b16 %v509
    %v1977 = vunpack.c.l.b16 %v510
    %v1978 = vunpack.c.h.b16 %v510
    %v1979 = vunpack.c.l.b16 %v511
    %v1980 = vunpack.c.h.b16 %v511
    %v1981 = vunpack.c.l.b16 %v512
    %v1982 = vunpack.c.h.b16 %v512
    %v1983 = vunpack.c.l.b16 %v513
    %v1984 = vunpack.c.h.b16 %v513
    %v1985 = vunpack.c.l.b16 %v514
    %v1986 = vunpack.c.h.b16 %v514
    %v1987 = vunpack.c.l.b16 %v515
    %v1988 = vunpack.c.h.b16 %v515
    %v1989 = vunpack.c.l.b16 %v516
    %v1990 = vunpack.c.h.b16 %v516
    %v1991 = vunpack.c.l.b16 %v517
    %v1992 = vunpack.c.h.b16 %v517
    %v1993 = vunpack.c.l.b16 %v518
    %v1994 = vunpack.c.h.b16 %v518
    %v1995 = vunpack.c.l.b16 %v519
    %v1996 = vunpack.c.h.b16 %v519
    %v1997 = vunpack.c.l.b16 %v520
    %v1998 = vunpack.c.h.b16 %v520
    %v1999 = vunpack.c.l.b16 %v521
    %v2000 = vunpack.c.h.b16 %v521
    %v2001 = vunpack.c.l.b16 %v522
    %v2002 = vunpack.c.h.b16 %v522
    %v2003 = vunpack.c.l.b16 %v523
    %v2004 = vunpack.c.h.b16 %v523
    %v2005 = vunpack.c.l.b16 %v524
    %v2006 = vunpack.c.h.b16 %v524
    %v2007 = vunpack.c.l.b16 %v525
    %v2008 = vunpack.c.h.b16 %v525
    %v2009 = vunpack.c.l.b16 %v526
    %v2010 = vunpack.c.h.b16 %v526
    %v2011 = vunpack.c.l.b16 %v527
    %v2012 = vunpack.c.h.b16 %v527
    %v2013 = vunpack.c.l.b16 %v528
    %v2014 = vunpack.c.h.b16 %v528
    %v2015 = vunpack.c.l.b16 %v529
    %v2016 = vunpack.c.h.b16 %v529
    %v2017 = vunpack.c.l.b16 %v530
    %v2018 = vunpack.c.h.b16 %v530
    %v2019 = vunpack.c.l.b16 %v531
    %v2020 = vunpack.c.h.b16 %v531
    %v2021 = vunpack.c.l.b16 %v532
    %v2022 = vunpack.c.h.b16 %v532
    %v2023 = vunpack.c.l.b16 %v533
    %v2024 = vunpack.c.h.b16 %v533
    %v2025 = vunpack.c.l.b16 %v534
    %v2026 = vunpack.c.h.b16 %v534
    %v2027 = vunpack.c.l.b16 %v535
    %v2028 = vunpack.c.h.b16 %v535
    %v2029 = vunpack.c.l.b16 %v536
    %v2030 = vunpack.c.h.b16 %v536
    %v2031 = vunpack.c.l.b16 %v537
    %v2032 = vunpack.c.h.b16 %v537
    %v2033 = vunpack.c.l.b16 %v538
    %v2034 = vunpack.c.h.b16 %v538
    %v2035 = vunpack.c.l.b16 %v539
    %v2036 = vunpack.c.h.b16 %v539
    %v2037 = vunpack.c.l.b16 %v540
    %v2038 = vunpack.c.h.b16 %v540
    %v2039 = vunpack.c.l.b16 %v541
    %v2040 = vunpack.c.h.b16 %v541
    %v2041 = vunpack.c.l.b16 %v542
    %v2042 = vunpack.c.h.b16 %v542
    %v2043 = vunpack.c.l.b16 %v543
    %v2044 = vunpack.c.h.b16 %v543
    %v2045 = vunpack.c.l.b16 %v544
    %v2046 = vunpack.c.h.b16 %v544
    %v2047 = vunpack.c.l.b16 %v545
    %v2048 = vunpack.c.h.b16 %v545
    %v2049 = vunpack.c.l.b16 %v546
    %v2050 = vunpack.c.h.b16 %v546
    %v2051 = vunpack.c.l.b16 %v547
    %v2052 = vunpack.c.h.b16 %v547
    %v2053 = vunpack.c.l.b16 %v548
    %v2054 = vunpack.c.h.b16 %v548
    %v2055 = vunpack.c.l.b16 %v549
    %v2056 = vunpack.c.h.b16 %v549
    %v2057 = vunpack.c.l.b16 %v550
    %v2058 = vunpack.c.h.b16 %v550
    %v2059 = vunpack.c.l.b16 %v551
    %v2060 = vunpack.c.h.b16 %v551
    %v2061 = vunpack.c.l.b16 %v552
    %v2062 = vunpack.c.h.b16 %v552
    %v2063 = vunpack.c.l.b16 %v553
    %v2064 = vunpack.c.h.b16 %v553
    %v2065 = vunpack.c.l.b16 %v554
    %v2066 = vunpack.c.h.b16 %v554
    %v2067 = vunpack.c.l.b16 %v555
    %v2068 = vunpack.c.h.b16 %v555
    %v2069 = vunpack.c.l.b16 %v556
    %v2070 = vunpack.c.h.b16 %v556
    %v2071 = vunpack.c.l.b16 %v557
    %v2072 = vunpack.c.h.b16 %v557
    %v2073 = vunpack.c.l.b16 %v558
    %v2074 = vunpack.c.h.b16 %v558
    %v2075 = vunpack.c.l.b16 %v559
    %v2076 = vunpack.c.h.b16 %v559
    %v2077 = vunpack.c.l.b16 %v560
    %v2078 = vunpack.c.h.b16 %v560
    %v2079 = vunpack.c.l.b16 %v561
    %v2080 = vunpack.c.h.b16 %v561
    %v2081 = vunpack.c.l.b16 %v562
    %v2082 = vunpack.c.h.b16 %v562
    %v2083 = vunpack.c.l.b16 %v563
    %v2084 = vunpack.c.h.b16 %v563
    %v2085 = vunpack.c.l.b16 %v564
    %v2086 = vunpack.c.h.b16 %v564
    %v2087 = vunpack.c.l.b16 %v565
    %v2088 = vunpack.c.h.b16 %v565
    %v2089 = vunpack.c.l.b16 %v566
    %v2090 = vunpack.c.h.b16 %v566
    %v2091 = vunpack.c.l.b16 %v567
    %v2092 = vunpack.c.h.b16 %v567
    %v2093 = vunpack.c.l.b16 %v568
    %v2094 = vunpack.c.h.b16 %v568
    %v2095 = vunpack.c.l.b16 %v569
    %v2096 = vunpack.c.h.b16 %v569
    %v2097 = vunpack.c.l.b16 %v570
    %v2098 = vunpack.c.h.b16 %v570
    %v2099 = vunpack.c.l.b16 %v571
    %v2100 = vunpack.c.h.b16 %v571
    %v2101 = vunpack.c.l.b16 %v572
    %v2102 = vunpack.c.h.b16 %v572
    %v2103 = vunpack.c.l.b16 %v573
    %v2104 = vunpack.c.h.b16 %v573
    %v2105 = vunpack.c.l.b16 %v574
    %v2106 = vunpack.c.h.b16 %v574
    %v2107 = vunpack.c.l.b16 %v575
    %v2108 = vunpack.c.h.b16 %v575
    %v2109 = vunpack.c.l.b16 %v576
    %v2110 = vunpack.c.h.b16 %v576
    %v2111 = vunpack.c.l.b16 %v577
    %v2112 = vunpack.c.h.b16 %v577
    %v2113 = vunpack.c.l.b16 %v578
    %v2114 = vunpack.c.h.b16 %v578
    %v2115 = vunpack.c.l.b16 %v579
    %v2116 = vunpack.c.h.b16 %v579
    %v2117 = vunpack.c.l.b16 %v580
    %v2118 = vunpack.c.h.b16 %v580
    %v2119 = vunpack.c.l.b16 %v581
    %v2120 = vunpack.c.h.b16 %v581
    %v2121 = vunpack.c.l.b16 %v582
    %v2122 = vunpack.c.h.b16 %v582
    %v2123 = vunpack.c.l.b16 %v583
    %v2124 = vunpack.c.h.b16 %v583
    %v2125 = vunpack.c.l.b16 %v584
    %v2126 = vunpack.c.h.b16 %v584
    %v2127 = vunpack.c.l.b16 %v585
    %v2128 = vunpack.c.h.b16 %v585
    %v2129 = vunpack.c.l.b16 %v586
    %v2130 = vunpack.c.h.b16 %v586
    %v2131 = vunpack.c.l.b16 %v587
    %v2132 = vunpack.c.h.b16 %v587
    %v2133 = vunpack.c.l.b16 %v588
    %v2134 = vunpack.c.h.b16 %v588
    %v2135 = vunpack.c.l.b16 %v589
    %v2136 = vunpack.c.h.b16 %v589
    %v2137 = vunpack.c.l.b16 %v590
    %v2138 = vunpack.c.h.b16 %v590
    %v2139 = vunpack.c.l.b16 %v591
    %v2140 = vunpack.c.h.b16 %v591
    %v2141 = vunpack.c.l.b16 %v592
    %v2142 = vunpack.c.h.b16 %v592
    %v2143 = vunpack.c.l.b16 %v593
    %v2144 = vunpack.c.h.b16 %v593
    %v2145 = vunpack.c.l.b16 %v594
    %v2146 = vunpack.c.h.b16 %v594
    %v2147 = vunpack.c.l.b16 %v595
    %v2148 = vunpack.c.h.b16 %v595
    %v2149 = vunpack.c.l.b16 %v596
    %v2150 = vunpack.c.h.b16 %v596
    %v2151 = vunpack.c.l.b16 %v597
    %v2152 = vunpack.c.h.b16 %v597
    %v2153 = vunpack.c.l.b16 %v598
    %v2154 = vunpack.c.h.b16 %v598
    %v2155 = vunpack.c.l.b16 %v599
    %v2156 = vunpack.c.h.b16 %v599
    %v2157 = vunpack.c.l.b16 %v600
    %v2158 = vunpack.c.h.b16 %v600
    %v2159 = vunpack.c.l.b16 %v601
    %v2160 = vunpack.c.h.b16 %v601
    %v2161 = vunpack.c.l.b16 %v602
    %v2162 = vunpack.c.h.b16 %v602
    %v2163 = vunpack.c.l.b16 %v603
    %v2164 = vunpack.c.h.b16 %v603
    %v2165 = vunpack.c.l.b16 %v604
    %v2166 = vunpack.c.h.b16 %v604
    %v2167 = vunpack.c.l.b16 %v605
    %v2168 = vunpack.c.h.b16 %v605
    %v2169 = vunpack.c.l.b16 %v606
    %v2170 = vunpack.c.h.b16 %v606
    %v2171 = vunpack.c.l.b16 %v607
    %v2172 = vunpack.c.h.b16 %v607
    %v2173 = vunpack.c.l.b16 %v608
    %v2174 = vunpack.c.h.b16 %v608
    %v2175 = vunpack.c.l.b16 %v609
    %v2176 = vunpack.c.h.b16 %v609
    %v2177 = vunpack.c.l.b16 %v610
    %v2178 = vunpack.c.h.b16 %v610
    %v2179 = vunpack.c.l.b16 %v611
    %v2180 = vunpack.c.h.b16 %v611
    %v2181 = vunpack.c.l.b16 %v612
    %v2182 = vunpack.c.h.b16 %v612
    %v2183 = vunpack.c.l.b16 %v613
    %v2184 = vunpack.c.h.b16 %v613
    %v2185 = vunpack.c.l.b16 %v614
    %v2186 = vunpack.c.h.b16 %v614
    %v2187 = vunpack.c.l.b16 %v615
    %v2188 = vunpack.c.h.b16 %v615
    %v2189 = vunpack.c.l.b16 %v616
    %v2190 = vunpack.c.h.b16 %v616
    %v2191 = vunpack.c.l.b16 %v617
    %v2192 = vunpack.c.h.b16 %v617
    %v2193 = vunpack.c.l.b16 %v618
    %v2194 = vunpack.c.h.b16 %v618
    %v2195 = vunpack.c.l.b16 %v619
    %v2196 = vunpack.c.h.b16 %v619
    %v2197 = vunpack.c.l.b16 %v620
    %v2198 = vunpack.c.h.b16 %v620
    %v2199 = vunpack.c.l.b16 %v621
    %v2200 = vunpack.c.h.b16 %v621
    %v2201 = vunpack.c.l.b16 %v622
    %v2202 = vunpack.c.h.b16 %v622
    %v2203 = vunpack.c.l.b16 %v623
    %v2204 = vunpack.c.h.b16 %v623
    %v2205 = vunpack.c.l.b16 %v624
    %v2206 = vunpack.c.h.b16 %v624
    %v2207 = vunpack.c.l.b16 %v625
    %v2208 = vunpack.c.h.b16 %v625
    %v2209 = vunpack.c.l.b16 %v626
    %v2210 = vunpack.c.h.b16 %v626
    %v2211 = vunpack.c.l.b16 %v627
    %v2212 = vunpack.c.h.b16 %v627
    %v2213 = vunpack.c.l.b16 %v628
    %v2214 = vunpack.c.h.b16 %v628
    %v2215 = vunpack.c.l.b16 %v629
    %v2216 = vunpack.c.h.b16 %v629
    %v2217 = vunpack.c.l.b16 %v630
    %v2218 = vunpack.c.h.b16 %v630
    %v2219 = vunpack.c.l.b16 %v631
    %v2220 = vunpack.c.h.b16 %v631
    %v2221 = vunpack.c.l.b16 %v632
    %v2222 = vunpack.c.h.b16 %v632
    %v2223 = vunpack.c.l.b16 %v633
    %v2224 = vunpack.c.h.b16 %v633
    %v2225 = vunpack.c.l.b16 %v634
    %v2226 = vunpack.c.h.b16 %v634
    %v2227 = vunpack.c.l.b16 %v635
    %v2228 = vunpack.c.h.b16 %v635
    %v2229 = vunpack.c.l.b16 %v636
    %v2230 = vunpack.c.h.b16 %v636
    %v2231 = vunpack.c.l.b16 %v637
    %v2232 = vunpack.c.h.b16 %v637
    %v2233 = vunpack.c.l.b16 %v638
    %v2234 = vunpack.c.h.b16 %v638
    %v2235 = vunpack.c.l.b16 %v639
    %v2236 = vunpack.c.h.b16 %v639
    %v2237 = vunpack.c.l.b16 %v640
    %v2238 = vunpack.c.h.b16 %v640
    %v2239 = vunpack.c.l.b16 %v641
    %v2240 = vunpack.c.h.b16 %v641
    %v2241 = vunpack.c.l.b16 %v642
    %v2242 = vunpack.c.h.b16 %v642
    %v2243 = vunpack.c.l.b16 %v643
    %v2244 = vunpack.c.h.b16 %v643
    %v2245 = vunpack.c.l.b16 %v644
    %v2246 = vunpack.c.h.b16 %v644
    %v2247 = vunpack.c.l.b16 %v645
    %v2248 = vunpack.c.h.b16 %v645
    %v2249 = vunpack.c.l.b16 %v646
    %v2250 = vunpack.c.h.b16 %v646
    %v2251 = vunpack.c.l.b16 %v647
    %v2252 = vunpack.c.h.b16 %v647
    %v2253 = vunpack.c.l.b16 %v648
    %v2254 = vunpack.c.h.b16 %v648
    %v2255 = vpack.c.b16 %v1239, %v1231
    %v2256 = vpack.c.b16 %v1240, %v1232
    %v2257 = vpack.c.b16 %v1241, %v1233
    %v2258 = vpack.c.b16 %v1242, %v1234
    %v2259 = vpack.c.b16 %v1243, %v1235
    %v2260 = vpack.c.b16 %v1244, %v1236
    %v2261 = vpack.c.b16 %v1245, %v1237
    %v2262 = vpack.c.b16 %v1246, %v1238
    %v2263 = vpack.c.b16 %v1255, %v1247
    %v2264 = vpack.c.b16 %v1256, %v1248
    %v2265 = vpack.c.b16 %v1257, %v1249
    %v2266 = vpack.c.b16 %v1258, %v1250
    %v2267 = vpack.c.b16 %v1259, %v1251
    %v2268 = vpack.c.b16 %v1260, %v1252
    %v2269 = vpack.c.b16 %v1261, %v1253
    %v2270 = vpack.c.b16 %v1262, %v1254
    %v2271 = vpack.c.b16 %v1271, %v1263
    %v2272 = vpack.c.b16 %v1272, %v1264
    %v2273 = vpack.c.b16 %v1273, %v1265
    %v2274 = vpack.c.b16 %v1274, %v1266
    %v2275 = vpack.c.b16 %v1275, %v1267
    %v2276 = vpack.c.b16 %v1276, %v1268
    %v2277 = vpack.c.b16 %v1277, %v1269
    %v2278 = vpack.c.b16 %v1278, %v1270
    %v2279 = vpack.c.b16 %v1287, %v1279
    %v2280 = vpack.c.b16 %v1288, %v1280
    %v2281 = vpack.c.b16 %v1289, %v1281
    %v2282 = vpack.c.b16 %v1290, %v1282
    %v2283 = vpack.c.b16 %v1291, %v1283
    %v2284 = vpack.c.b16 %v1292, %v1284
    %v2285 = vpack.c.b16 %v1293, %v1285
    %v2286 = vpack.c.b16 %v1294, %v1286
    %v2287 = vpack.c.b16 %v1303, %v1295
    %v2288 = vpack.c.b16 %v1304, %v1296
    %v2289 = vpack.c.b16 %v1305, %v1297
    %v2290 = vpack.c.b16 %v1306, %v1298
    %v2291 = vpack.c.b16 %v1307, %v1299
    %v2292 = vpack.c.b16 %v1308, %v1300
    %v2293 = vpack.c.b16 %v1309, %v1301
    %v2294 = vpack.c.b16 %v1310, %v1302
    %v2295 = vpack.c.b16 %v1319, %v1311
    %v2296 = vpack.c.b16 %v1320, %v1312
    %v2297 = vpack.c.b16 %v1321, %v1313
    %v2298 = vpack.c.b16 %v1322, %v1314
    %v2299 = vpack.c.b16 %v1323, %v1315
    %v2300 = vpack.c.b16 %v1324, %v1316
    %v2301 = vpack.c.b16 %v1325, %v1317
    %v2302 = vpack.c.b16 %v1326, %v1318
    %v2303 = vpack.c.b16 %v1335, %v1327
    %v2304 = vpack.c.b16 %v1336, %v1328
    %v2305 = vpack.c.b16 %v1337, %v1329
    %v2306 = vpack.c.b16 %v1338, %v1330
    %v2307 = vpack.c.b16 %v1339, %v1331
    %v2308 = vpack.c.b16 %v1340, %v1332
    %v2309 = vpack.c.b16 %v1341, %v1333
    %v2310 = vpack.c.b16 %v1342, %v1334
    %v2311 = vpack.c.b16 %v1351, %v1343
    %v2312 = vpack.c.b16 %v1352, %v1344
    %v2313 = vpack.c.b16 %v1353, %v1345
    %v2314 = vpack.c.b16 %v1354, %v1346
    %v2315 = vpack.c.b16 %v1355, %v1347
    %v2316 = vpack.c.b16 %v1356, %v1348
    %v2317 = vpack.c.b16 %v1357, %v1349
    %v2318 = vpack.c.b16 %v1358, %v1350
    %v2319 = vpack.c.b16 %v1367, %v1359
    %v2320 = vpack.c.b16 %v1368, %v1360
    %v2321 = vpack.c.b16 %v1369, %v1361
    %v2322 = vpack.c.b16 %v1370, %v1362
    %v2323 = vpack.c.b16 %v1371, %v1363
    %v2324 = vpack.c.b16 %v1372, %v1364
    %v2325 = vpack.c.b16 %v1373, %v1365
    %v2326 = vpack.c.b16 %v1374, %v1366
    %v2327 = vpack.c.b16 %v1383, %v1375
    %v2328 = vpack.c.b16 %v1384, %v1376
    %v2329 = vpack.c.b16 %v1385, %v1377
    %v2330 = vpack.c.b16 %v1386, %v1378
    %v2331 = vpack.c.b16 %v1387, %v1379
    %v2332 = vpack.c.b16 %v1388, %v1380
    %v2333 = vpack.c.b16 %v1389, %v1381
    %v2334 = vpack.c.b16 %v1390, %v1382
    %v2335 = vpack.c.b16 %v1399, %v1391
    %v2336 = vpack.c.b16 %v1400, %v1392
    %v2337 = vpack.c.b16 %v1401, %v1393
    %v2338 = vpack.c.b16 %v1402, %v1394
    %v2339 = vpack.c.b16 %v1403, %v1395
    %v2340 = vpack.c.b16 %v1404, %v1396
    %v2341 = vpack.c.b16 %v1405, %v1397
    %v2342 = vpack.c.b16 %v1406, %v1398
    %v2343 = vpack.c.b16 %v1415, %v1407
    %v2344 = vpack.c.b16 %v1416, %v1408
    %v2345 = vpack.c.b16 %v1417, %v1409
    %v2346 = vpack.c.b16 %v1418, %v1410
    %v2347 = vpack.c.b16 %v1419, %v1411
    %v2348 = vpack.c.b16 %v1420, %v1412
    %v2349 = vpack.c.b16 %v1421, %v1413
    %v2350 = vpack.c.b16 %v1422, %v1414
    %v2351 = vpack.c.b16 %v1431, %v1423
    %v2352 = vpack.c.b16 %v1432, %v1424
    %v2353 = vpack.c.b16 %v1433, %v1425
    %v2354 = vpack.c.b16 %v1434, %v1426
    %v2355 = vpack.c.b16 %v1435, %v1427
    %v2356 = vpack.c.b16 %v1436, %v1428
    %v2357 = vpack.c.b16 %v1437, %v1429
    %v2358 = vpack.c.b16 %v1438, %v1430
    %v2359 = vpack.c.b16 %v1447, %v1439
    %v2360 = vpack.c.b16 %v1448, %v1440
    %v2361 = vpack.c.b16 %v1449, %v1441
    %v2362 = vpack.c.b16 %v1450, %v1442
    %v2363 = vpack.c.b16 %v1451, %v1443
    %v2364 = vpack.c.b16 %v1452, %v1444
    %v2365 = vpack.c.b16 %v1453, %v1445
    %v2366 = vpack.c.b16 %v1454, %v1446
    %v2367 = vpack.c.b16 %v1463, %v1455
    %v2368 = vpack.c.b16 %v1464, %v1456
    %v2369 = vpack.c.b16 %v1465, %v1457
    %v2370 = vpack.c.b16 %v1466, %v1458
    %v2371 = vpack.c.b16 %v1467, %v1459
    %v2372 = vpack.c.b16 %v1468, %v1460
    %v2373 = vpack.c.b16 %v1469, %v1461
    %v2374 = vpack.c.b16 %v1470, %v1462
    %v2375 = vpack.c.b16 %v1479, %v1471
    %v2376 = vpack.c.b16 %v1480, %v1472
    %v2377 = vpack.c.b16 %v1481, %v1473
    %v2378 = vpack.c.b16 %v1482, %v1474
    %v2379 = vpack.c.b16 %v1483, %v1475
    %v2380 = vpack.c.b16 %v1484, %v1476
    %v2381 = vpack.c.b16 %v1485, %v1477
    %v2382 = vpack.c.b16 %v1486, %v1478
    %v2383 = vpack.c.b16 %v1495, %v1487
    %v2384 = vpack.c.b16 %v1496, %v1488
    %v2385 = vpack.c.b16 %v1497, %v1489
    %v2386 = vpack.c.b16 %v1498, %v1490
    %v2387 = vpack.c.b16 %v1499, %v1491
    %v2388 = vpack.c.b16 %v1500, %v1492
    %v2389 = vpack.c.b16 %v1501, %v1493
    %v2390 = vpack.c.b16 %v1502, %v1494
    %v2391 = vpack.c.b16 %v1511, %v1503
    %v2392 = vpack.c.b16 %v1512, %v1504
    %v2393 = vpack.c.b16 %v1513, %v1505
    %v2394 = vpack.c.b16 %v1514, %v1506
    %v2395 = vpack.c.b16 %v1515, %v1507
    %v2396 = vpack.c.b16 %v1516, %v1508
    %v2397 = vpack.c.b16 %v1517, %v1509
    %v2398 = vpack.c.b16 %v1518, %v1510
    %v2399 = vpack.c.b16 %v1527, %v1519
    %v2400 = vpack.c.b16 %v1528, %v1520
    %v2401 = vpack.c.b16 %v1529, %v1521
    %v2402 = vpack.c.b16 %v1530, %v1522
    %v2403 = vpack.c.b16 %v1531, %v1523
    %v2404 = vpack.c.b16 %v1532, %v1524
    %v2405 = vpack.c.b16 %v1533, %v1525
    %v2406 = vpack.c.b16 %v1534, %v1526
    %v2407 = vpack.c.b16 %v1543, %v1535
    %v2408 = vpack.c.b16 %v1544, %v1536
    %v2409 = vpack.c.b16 %v1545, %v1537
    %v2410 = vpack.c.b16 %v1546, %v1538
    %v2411 = vpack.c.b16 %v1547, %v1539
    %v2412 = vpack.c.b16 %v1548, %v1540
    %v2413 = vpack.c.b16 %v1549, %v1541
    %v2414 = vpack.c.b16 %v1550, %v1542
    %v2415 = vpack.c.b16 %v1559, %v1551
    %v2416 = vpack.c.b16 %v1560, %v1552
    %v2417 = vpack.c.b16 %v1561, %v1553
    %v2418 = vpack.c.b16 %v1562, %v1554
    %v2419 = vpack.c.b16 %v1563, %v1555
    %v2420 = vpack.c.b16 %v1564, %v1556
    %v2421 = vpack.c.b16 %v1565, %v1557
    %v2422 = vpack.c.b16 %v1566, %v1558
    %v2423 = vpack.c.b16 %v1575, %v1567
    %v2424 = vpack.c.b16 %v1576, %v1568
    %v2425 = vpack.c.b16 %v1577, %v1569
    %v2426 = vpack.c.b16 %v1578, %v1570
    %v2427 = vpack.c.b16 %v1579, %v1571
    %v2428 = vpack.c.b16 %v1580, %v1572
    %v2429 = vpack.c.b16 %v1581, %v1573
    %v2430 = vpack.c.b16 %v1582, %v1574
    %v2431 = vpack.c.b16 %v1591, %v1583
    %v2432 = vpack.c.b16 %v1592, %v1584
    %v2433 = vpack.c.b16 %v1593, %v1585
    %v2434 = vpack.c.b16 %v1594, %v1586
    %v2435 = vpack.c.b16 %v1595, %v1587
    %v2436 = vpack.c.b16 %v1596, %v1588
    %v2437 = vpack.c.b16 %v1597, %v1589
    %v2438 = vpack.c.b16 %v1598, %v1590
    %v2439 = vpack.c.b16 %v1607, %v1599
    %v2440 = vpack.c.b16 %v1608, %v1600
    %v2441 = vpack.c.b16 %v1609, %v1601
    %v2442 = vpack.c.b16 %v1610, %v1602
    %v2443 = vpack.c.b16 %v1611, %v1603
    %v2444 = vpack.c.b16 %v1612, %v1604
    %v2445 = vpack.c.b16 %v1613, %v1605
    %v2446 = vpack.c.b16 %v1614, %v1606
    %v2447 = vpack.c.b16 %v1623, %v1615
    %v2448 = vpack.c.b16 %v1624, %v1616
    %v2449 = vpack.c.b16 %v1625, %v1617
    %v2450 = vpack.c.b16 %v1626, %v1618
    %v2451 = vpack.c.b16 %v1627, %v1619
    %v2452 = vpack.c.b16 %v1628, %v1620
    %v2453 = vpack.c.b16 %v1629, %v1621
    %v2454 = vpack.c.b16 %v1630, %v1622
    %v2455 = vpack.c.b16 %v1639, %v1631
    %v2456 = vpack.c.b16 %v1640, %v1632
    %v2457 = vpack.c.b16 %v1641, %v1633
    %v2458 = vpack.c.b16 %v1642, %v1634
    %v2459 = vpack.c.b16 %v1643, %v1635
    %v2460 = vpack.c.b16 %v1644, %v1636
    %v2461 = vpack.c.b16 %v1645, %v1637
    %v2462 = vpack.c.b16 %v1646, %v1638
    %v2463 = vpack.c.b16 %v1655, %v1647
    %v2464 = vpack.c.b16 %v1656, %v1648
    %v2465 = vpack.c.b16 %v1657, %v1649
    %v2466 = vpack.c.b16 %v1658, %v1650
    %v2467 = vpack.c.b16 %v1659, %v1651
    %v2468 = vpack.c.b16 %v1660, %v1652
    %v2469 = vpack.c.b16 %v1661, %v1653
    %v2470 = vpack.c.b16 %v1662, %v1654
    %v2471 = vpack.c.b16 %v1671, %v1663
    %v2472 = vpack.c.b16 %v1672, %v1664
    %v2473 = vpack.c.b16 %v1673, %v1665
    %v2474 = vpack.c.b16 %v1674, %v1666
    %v2475 = vpack.c.b16 %v1675, %v1667
    %v2476 = vpack.c.b16 %v1676, %v1668
    %v2477 = vpack.c.b16 %v1677, %v1669
    %v2478 = vpack.c.b16 %v1678, %v1670
    %v2479 = vpack.c.b16 %v1687, %v1679
    %v2480 = vpack.c.b16 %v1688, %v1680
    %v2481 = vpack.c.b16 %v1689, %v1681
    %v2482 = vpack.c.b16 %v1690, %v1682
    %v2483 = vpack.c.b16 %v1691, %v1683
    %v2484 = vpack.c.b16 %v1692, %v1684
    %v2485 = vpack.c.b16 %v1693, %v1685
    %v2486 = vpack.c.b16 %v1694, %v1686
    %v2487 = vpack.c.b16 %v1703, %v1695
    %v2488 = vpack.c.b16 %v1704, %v1696
    %v2489 = vpack.c.b16 %v1705, %v1697
    %v2490 = vpack.c.b16 %v1706, %v1698
    %v2491 = vpack.c.b16 %v1707, %v1699
    %v2492 = vpack.c.b16 %v1708, %v1700
    %v2493 = vpack.c.b16 %v1709, %v1701
    %v2494 = vpack.c.b16 %v1710, %v1702
    %v2495 = vpack.c.b16 %v1719, %v1711
    %v2496 = vpack.c.b16 %v1720, %v1712
    %v2497 = vpack.c.b16 %v1721, %v1713
    %v2498 = vpack.c.b16 %v1722, %v1714
    %v2499 = vpack.c.b16 %v1723, %v1715
    %v2500 = vpack.c.b16 %v1724, %v1716
    %v2501 = vpack.c.b16 %v1725, %v1717
    %v2502 = vpack.c.b16 %v1726, %v1718
    %v2503 = vpack.c.b16 %v1735, %v1727
    %v2504 = vpack.c.b16 %v1736, %v1728
    %v2505 = vpack.c.b16 %v1737, %v1729
    %v2506 = vpack.c.b16 %v1738, %v1730
    %v2507 = vpack.c.b16 %v1739, %v1731
    %v2508 = vpack.c.b16 %v1740, %v1732
    %v2509 = vpack.c.b16 %v1741, %v1733
    %v2510 = vpack.c.b16 %v1742, %v1734
    %v2511 = vpack.c.b16 %v1751, %v1743
    %v2512 = vpack.c.b16 %v1752, %v1744
    %v2513 = vpack.c.b16 %v1753, %v1745
    %v2514 = vpack.c.b16 %v1754, %v1746
    %v2515 = vpack.c.b16 %v1755, %v1747
    %v2516 = vpack.c.b16 %v1756, %v1748
    %v2517 = vpack.c.b16 %v1757, %v1749
    %v2518 = vpack.c.b16 %v1758, %v1750
    %v2519 = vpack.c.b16 %v1767, %v1759
    %v2520 = vpack.c.b16 %v1768, %v1760
    %v2521 = vpack.c.b16 %v1769, %v1761
    %v2522 = vpack.c.b16 %v1770, %v1762
    %v2523 = vpack.c.b16 %v1771, %v1763
    %v2524 = vpack.c.b16 %v1772, %v1764
    %v2525 = vpack.c.b16 %v1773, %v1765
    %v2526 = vpack.c.b16 %v1774, %v1766
    %v2527 = vpack.c.b16 %v1783, %v1775
    %v2528 = vpack.c.b16 %v1784, %v1776
    %v2529 = vpack.c.b16 %v1785, %v1777
    %v2530 = vpack.c.b16 %v1786, %v1778
    %v2531 = vpack.c.b16 %v1787, %v1779
    %v2532 = vpack.c.b16 %v1788, %v1780
    %v2533 = vpack.c.b16 %v1789, %v1781
    %v2534 = vpack.c.b16 %v1790, %v1782
    %v2535 = vpack.c.b16 %v1799, %v1791
    %v2536 = vpack.c.b16 %v1800, %v1792
    %v2537 = vpack.c.b16 %v1801, %v1793
    %v2538 = vpack.c.b16 %v1802, %v1794
    %v2539 = vpack.c.b16 %v1803, %v1795
    %v2540 = vpack.c.b16 %v1804, %v1796
    %v2541 = vpack.c.b16 %v1805, %v1797
    %v2542 = vpack.c.b16 %v1806, %v1798
    %v2543 = vpack.c.b16 %v1815, %v1807
    %v2544 = vpack.c.b16 %v1816, %v1808
    %v2545 = vpack.c.b16 %v1817, %v1809
    %v2546 = vpack.c.b16 %v1818, %v1810
    %v2547 = vpack.c.b16 %v1819, %v1811
    %v2548 = vpack.c.b16 %v1820, %v1812
    %v2549 = vpack.c.b16 %v1821, %v1813
    %v2550 = vpack.c.b16 %v1822, %v1814
    %v2551 = vpack.c.b16 %v1831, %v1823
    %v2552 = vpack.c.b16 %v1832, %v1824
    %v2553 = vpack.c.b16 %v1833, %v1825
    %v2554 = vpack.c.b16 %v1834, %v1826
    %v2555 = vpack.c.b16 %v1835, %v1827
    %v2556 = vpack.c.b16 %v1836, %v1828
    %v2557 = vpack.c.b16 %v1837, %v1829
    %v2558 = vpack.c.b16 %v1838, %v1830
    %v2559 = vpack.c.b16 %v1847, %v1839
    %v2560 = vpack.c.b16 %v1848, %v1840
    %v2561 = vpack.c.b16 %v1849, %v1841
    %v2562 = vpack.c.b16 %v1850, %v1842
    %v2563 = vpack.c.b16 %v1851, %v1843
    %v2564 = vpack.c.b16 %v1852, %v1844
    %v2565 = vpack.c.b16 %v1853, %v1845
    %v2566 = vpack.c.b16 %v1854, %v1846
    %v2567 = vpack.c.b16 %v1863, %v1855
    %v2568 = vpack.c.b16 %v1864, %v1856
    %v2569 = vpack.c.b16 %v1865, %v1857
    %v2570 = vpack.c.b16 %v1866, %v1858
    %v2571 = vpack.c.b16 %v1867, %v1859
    %v2572 = vpack.c.b16 %v1868, %v1860
    %v2573 = vpack.c.b16 %v1869, %v1861
    %v2574 = vpack.c.b16 %v1870, %v1862
    %v2575 = vpack.c.b16 %v1879, %v1871
    %v2576 = vpack.c.b16 %v1880, %v1872
    %v2577 = vpack.c.b16 %v1881, %v1873
    %v2578 = vpack.c.b16 %v1882, %v1874
    %v2579 = vpack.c.b16 %v1883, %v1875
    %v2580 = vpack.c.b16 %v1884, %v1876
    %v2581 = vpack.c.b16 %v1885, %v1877
    %v2582 = vpack.c.b16 %v1886, %v1878
    %v2583 = vpack.c.b16 %v1895, %v1887
    %v2584 = vpack.c.b16 %v1896, %v1888
    %v2585 = vpack.c.b16 %v1897, %v1889
    %v2586 = vpack.c.b16 %v1898, %v1890
    %v2587 = vpack.c.b16 %v1899, %v1891
    %v2588 = vpack.c.b16 %v1900, %v1892
    %v2589 = vpack.c.b16 %v1901, %v1893
    %v2590 = vpack.c.b16 %v1902, %v1894
    %v2591 = vpack.c.b16 %v1911, %v1903
    %v2592 = vpack.c.b16 %v1912, %v1904
    %v2593 = vpack.c.b16 %v1913, %v1905
    %v2594 = vpack.c.b16 %v1914, %v1906
    %v2595 = vpack.c.b16 %v1915, %v1907
    %v2596 = vpack.c.b16 %v1916, %v1908
    %v2597 = vpack.c.b16 %v1917, %v1909
    %v2598 = vpack.c.b16 %v1918, %v1910
    %v2599 = vpack.c.b16 %v1927, %v1919
    %v2600 = vpack.c.b16 %v1928, %v1920
    %v2601 = vpack.c.b16 %v1929, %v1921
    %v2602 = vpack.c.b16 %v1930, %v1922
    %v2603 = vpack.c.b16 %v1931, %v1923
    %v2604 = vpack.c.b16 %v1932, %v1924
    %v2605 = vpack.c.b16 %v1933, %v1925
    %v2606 = vpack.c.b16 %v1934, %v1926
    %v2607 = vpack.c.b16 %v1943, %v1935
    %v2608 = vpack.c.b16 %v1944, %v1936
    %v2609 = vpack.c.b16 %v1945, %v1937
    %v2610 = vpack.c.b16 %v1946, %v1938
    %v2611 = vpack.c.b16 %v1947, %v1939
    %v2612 = vpack.c.b16 %v1948, %v1940
    %v2613 = vpack.c.b16 %v1949, %v1941
    %v2614 = vpack.c.b16 %v1950, %v1942
    %v2615 = vpack.c.b16 %v1959, %v1951
    %v2616 = vpack.c.b16 %v1960, %v1952
    %v2617 = vpack.c.b16 %v1961, %v1953
    %v2618 = vpack.c.b16 %v1962, %v1954
    %v2619 = vpack.c.b16 %v1963, %v1955
    %v2620 = vpack.c.b16 %v1964, %v1956
    %v2621 = vpack.c.b16 %v1965, %v1957
    %v2622 = vpack.c.b16 %v1966, %v1958
    %v2623 = vpack.c.b16 %v1975, %v1967
    %v2624 = vpack.c.b16 %v1976, %v1968
    %v2625 = vpack.c.b16 %v1977, %v1969
    %v2626 = vpack.c.b16 %v1978, %v1970
    %v2627 = vpack.c.b16 %v1979, %v1971
    %v2628 = vpack.c.b16 %v1980, %v1972
    %v2629 = vpack.c.b16 %v1981, %v1973
    %v2630 = vpack.c.b16 %v1982, %v1974
    %v2631 = vpack.c.b16 %v1991, %v1983
    %v2632 = vpack.c.b16 %v1992, %v1984
    %v2633 = vpack.c.b16 %v1993, %v1985
    %v2634 = vpack.c.b16 %v1994, %v1986
    %v2635 = vpack.c.b16 %v1995, %v1987
    %v2636 = vpack.c.b16 %v1996, %v1988
    %v2637 = vpack.c.b16 %v1997, %v1989
    %v2638 = vpack.c.b16 %v1998, %v1990
    %v2639 = vpack.c.b16 %v2007, %v1999
    %v2640 = vpack.c.b16 %v2008, %v2000
    %v2641 = vpack.c.b16 %v2009, %v2001
    %v2642 = vpack.c.b16 %v2010, %v2002
    %v2643 = vpack.c.b16 %v2011, %v2003
    %v2644 = vpack.c.b16 %v2012, %v2004
    %v2645 = vpack.c.b16 %v2013, %v2005
    %v2646 = vpack.c.b16 %v2014, %v2006
    %v2647 = vpack.c.b16 %v2023, %v2015
    %v2648 = vpack.c.b16 %v2024, %v2016
    %v2649 = vpack.c.b16 %v2025, %v2017
    %v2650 = vpack.c.b16 %v2026, %v2018
    %v2651 = vpack.c.b16 %v2027, %v2019
    %v2652 = vpack.c.b16 %v2028, %v2020
    %v2653 = vpack.c.b16 %v2029, %v2021
    %v2654 = vpack.c.b16 %v2030, %v2022
    %v2655 = vpack.c.b16 %v2039, %v2031
    %v2656 = vpack.c.b16 %v2040, %v2032
    %v2657 = vpack.c.b16 %v2041, %v2033
    %v2658 = vpack.c.b16 %v2042, %v2034
    %v2659 = vpack.c.b16 %v2043, %v2035
    %v2660 = vpack.c.b16 %v2044, %v2036
    %v2661 = vpack.c.b16 %v2045, %v2037
    %v2662 = vpack.c.b16 %v2046, %v2038
    %v2663 = vpack.c.b16 %v2055, %v2047
    %v2664 = vpack.c.b16 %v2056, %v2048
    %v2665 = vpack.c.b16 %v2057, %v2049
    %v2666 = vpack.c.b16 %v2058, %v2050
    %v2667 = vpack.c.b16 %v2059, %v2051
    %v2668 = vpack.c.b16 %v2060, %v2052
    %v2669 = vpack.c.b16 %v2061, %v2053
    %v2670 = vpack.c.b16 %v2062, %v2054
    %v2671 = vpack.c.b16 %v2071, %v2063
    %v2672 = vpack.c.b16 %v2072, %v2064
    %v2673 = vpack.c.b16 %v2073, %v2065
    %v2674 = vpack.c.b16 %v2074, %v2066
    %v2675 = vpack.c.b16 %v2075, %v2067
    %v2676 = vpack.c.b16 %v2076, %v2068
    %v2677 = vpack.c.b16 %v2077, %v2069
    %v2678 = vpack.c.b16 %v2078, %v2070
    %v2679 = vpack.c.b16 %v2087, %v2079
    %v2680 = vpack.c.b16 %v2088, %v2080
    %v2681 = vpack.c.b16 %v2089, %v2081
    %v2682 = vpack.c.b16 %v2090, %v2082
    %v2683 = vpack.c.b16 %v2091, %v2083
    %v2684 = vpack.c.b16 %v2092, %v2084
    %v2685 = vpack.c.b16 %v2093, %v2085
    %v2686 = vpack.c.b16 %v2094, %v2086
    %v2687 = vpack.c.b16 %v2103, %v2095
    %v2688 = vpack.c.b16 %v2104, %v2096
    %v2689 = vpack.c.b16 %v2105, %v2097
    %v2690 = vpack.c.b16 %v2106, %v2098
    %v2691 = vpack.c.b16 %v2107, %v2099
    %v2692 = vpack.c.b16 %v2108, %v2100
    %v2693 = vpack.c.b16 %v2109, %v2101
    %v2694 = vpack.c.b16 %v2110, %v2102
    %v2695 = vpack.c.b16 %v2119, %v2111
    %v2696 = vpack.c.b16 %v2120, %v2112
    %v2697 = vpack.c.b16 %v2121, %v2113
    %v2698 = vpack.c.b16 %v2122, %v2114
    %v2699 = vpack.c.b16 %v2123, %v2115
    %v2700 = vpack.c.b16 %v2124, %v2116
    %v2701 = vpack.c.b16 %v2125, %v2117
    %v2702 = vpack.c.b16 %v2126, %v2118
    %v2703 = vpack.c.b16 %v2135, %v2127
    %v2704 = vpack.c.b16 %v2136, %v2128
    %v2705 = vpack.c.b16 %v2137, %v2129
    %v2706 = vpack.c.b16 %v2138, %v2130
    %v2707 = vpack.c.b16 %v2139, %v2131
    %v2708 = vpack.c.b16 %v2140, %v2132
    %v2709 = vpack.c.b16 %v2141, %v2133
    %v2710 = vpack.c.b16 %v2142, %v2134
    %v2711 = vpack.c.b16 %v2151, %v2143
    %v2712 = vpack.c.b16 %v2152, %v2144
    %v2713 = vpack.c.b16 %v2153, %v2145
    %v2714 = vpack.c.b16 %v2154, %v2146
    %v2715 = vpack.c.b16 %v2155, %v2147
    %v2716 = vpack.c.b16 %v2156, %v2148
    %v2717 = vpack.c.b16 %v2157, %v2149
    %v2718 = vpack.c.b16 %v2158, %v2150
    %v2719 = vpack.c.b16 %v2167, %v2159
    %v2720 = vpack.c.b16 %v2168, %v2160
    %v2721 = vpack.c.b16 %v2169, %v2161
    %v2722 = vpack.c.b16 %v2170, %v2162
    %v2723 = vpack.c.b16 %v2171, %v2163
    %v2724 = vpack.c.b16 %v2172, %v2164
    %v2725 = vpack.c.b16 %v2173, %v2165
    %v2726 = vpack.c.b16 %v2174, %v2166
    %v2727 = vpack.c.b16 %v2183, %v2175
    %v2728 = vpack.c.b16 %v2184, %v2176
    %v2729 = vpack.c.b16 %v2185, %v2177
    %v2730 = vpack.c.b16 %v2186, %v2178
    %v2731 = vpack.c.b16 %v2187, %v2179
    %v2732 = vpack.c.b16 %v2188, %v2180
    %v2733 = vpack.c.b16 %v2189, %v2181
    %v2734 = vpack.c.b16 %v2190, %v2182
    %v2735 = vpack.c.b16 %v2199, %v2191
    %v2736 = vpack.c.b16 %v2200, %v2192
    %v2737 = vpack.c.b16 %v2201, %v2193
    %v2738 = vpack.c.b16 %v2202, %v2194
    %v2739 = vpack.c.b16 %v2203, %v2195
    %v2740 = vpack.c.b16 %v2204, %v2196
    %v2741 = vpack.c.b16 %v2205, %v2197
    %v2742 = vpack.c.b16 %v2206, %v2198
    %v2743 = vpack.c.b16 %v2215, %v2207
    %v2744 = vpack.c.b16 %v2216, %v2208
    %v2745 = vpack.c.b16 %v2217, %v2209
    %v2746 = vpack.c.b16 %v2218, %v2210
    %v2747 = vpack.c.b16 %v2219, %v2211
    %v2748 = vpack.c.b16 %v2220, %v2212
    %v2749 = vpack.c.b16 %v2221, %v2213
    %v2750 = vpack.c.b16 %v2222, %v2214
    %v2751 = vpack.c.b16 %v2231, %v2223
    %v2752 = vpack.c.b16 %v2232, %v2224
    %v2753 = vpack.c.b16 %v2233, %v2225
    %v2754 = vpack.c.b16 %v2234, %v2226
    %v2755 = vpack.c.b16 %v2235, %v2227
    %v2756 = vpack.c.b16 %v2236, %v2228
    %v2757 = vpack.c.b16 %v2237, %v2229
    %v2758 = vpack.c.b16 %v2238, %v2230
    %v2759 = vpack.c.b16 %v2247, %v2239
    %v2760 = vpack.c.b16 %v2248, %v2240
    %v2761 = vpack.c.b16 %v2249, %v2241
    %v2762 = vpack.c.b16 %v2250, %v2242
    %v2763 = vpack.c.b16 %v2251, %v2243
    %v2764 = vpack.c.b16 %v2252, %v2244
    %v2765 = vpack.c.b16 %v2253, %v2245
    %v2766 = vpack.c.b16 %v2254, %v2246
    %3279 = vmatprep.subr.bf16.mxu0 %v2256
    %3280 = vmatpush1.bf16.msra.mxu0 %v2255
    %3281 = vmatprep.subr.bf16.mxu0 %v2264
    %3282 = vmatpush1.bf16.msra.mxu0 %v2263
    %3283 = vmatprep.subr.bf16.mxu0 %v2272
    %3284 = vmatpush1.bf16.msra.mxu0 %v2271
    %3285 = vmatprep.subr.bf16.mxu0 %v2280
    %3286 = vmatpush1.bf16.msra.mxu0 %v2279
    %3287 = vmatprep.subr.bf16.mxu0 %v2288
    %3288 = vmatpush1.bf16.msra.mxu0 %v2287
    %3289 = vmatprep.subr.bf16.mxu0 %v2296
    %3290 = vmatpush1.bf16.msra.mxu0 %v2295
    %3291 = vmatprep.subr.bf16.mxu0 %v2304
    %3292 = vmatpush1.bf16.msra.mxu0 %v2303
    %3293 = vmatprep.subr.bf16.mxu0 %v2312
    %3294 = vmatpush1.bf16.msra.mxu0 %v2311
    %3295 = vmatprep.subr.bf16.mxu0 %v2320
    %3296 = vmatpush1.bf16.msra.mxu0 %v2319
    %3297 = vmatprep.subr.bf16.mxu0 %v2328
    %3298 = vmatpush1.bf16.msra.mxu0 %v2327
    %3299 = vmatprep.subr.bf16.mxu0 %v2336
    %3300 = vmatpush1.bf16.msra.mxu0 %v2335
    %3301 = vmatprep.subr.bf16.mxu0 %v2344
    %3302 = vmatpush1.bf16.msra.mxu0 %v2343
    %3303 = vmatprep.subr.bf16.mxu0 %v2352
    %3304 = vmatpush1.bf16.msra.mxu0 %v2351
    %3305 = vmatprep.subr.bf16.mxu0 %v2360
    %3306 = vmatpush1.bf16.msra.mxu0 %v2359
    %3307 = vmatprep.subr.bf16.mxu0 %v2368
    %3308 = vmatpush1.bf16.msra.mxu0 %v2367
    %3309 = vmatprep.subr.bf16.mxu0 %v2376
    %3310 = vmatpush1.bf16.msra.mxu0 %v2375
    %3311 = vmatprep.mubr.bf16.mxu0 %v704
    %3312 = vmatmul.mubr.bf16.gmra.mrb[0].mxu0 %v703
    %v3313 = vpop.f32.mrb[0].mxu0
    %v3314 = vadd.f32 %v654, %v3313
    %v3315 = vpop.f32.mrb[0].mxu0
    %v3316 = vadd.f32 %v658, %v3315
    %v3317 = vpop.f32.mrb[0].mxu0
    %v3318 = vpop.f32.mrb[0].mxu0
    %3319 = vdwg.mxu0
    %3320 = vmatprep.subr.bf16.mxu0 %v2384
    %3321 = vmatpush1.bf16.msra.mxu0 %v2383
    %3322 = vmatprep.subr.bf16.mxu0 %v2392
    %3323 = vmatpush1.bf16.msra.mxu0 %v2391
    %3324 = vmatprep.subr.bf16.mxu0 %v2400
    %3325 = vmatpush1.bf16.msra.mxu0 %v2399
    %3326 = vmatprep.subr.bf16.mxu0 %v2408
    %3327 = vmatpush1.bf16.msra.mxu0 %v2407
    %3328 = vmatprep.subr.bf16.mxu0 %v2416
    %3329 = vmatpush1.bf16.msra.mxu0 %v2415
    %3330 = vmatprep.subr.bf16.mxu0 %v2424
    %3331 = vmatpush1.bf16.msra.mxu0 %v2423
    %3332 = vmatprep.subr.bf16.mxu0 %v2432
    %3333 = vmatpush1.bf16.msra.mxu0 %v2431
    %3334 = vmatprep.subr.bf16.mxu0 %v2440
    %3335 = vmatpush1.bf16.msra.mxu0 %v2439
    %3336 = vmatprep.subr.bf16.mxu0 %v2448
    %3337 = vmatpush1.bf16.msra.mxu0 %v2447
    %3338 = vmatprep.subr.bf16.mxu0 %v2456
    %3339 = vmatpush1.bf16.msra.mxu0 %v2455
    %3340 = vmatprep.subr.bf16.mxu0 %v2464
    %3341 = vmatpush1.bf16.msra.mxu0 %v2463
    %3342 = vmatprep.subr.bf16.mxu0 %v2472
    %3343 = vmatpush1.bf16.msra.mxu0 %v2471
    %3344 = vmatprep.subr.bf16.mxu0 %v2480
    %3345 = vmatpush1.bf16.msra.mxu0 %v2479
    %3346 = vmatprep.subr.bf16.mxu0 %v2488
    %3347 = vmatpush1.bf16.msra.mxu0 %v2487
    %3348 = vmatprep.subr.bf16.mxu0 %v2496
    %3349 = vmatpush1.bf16.msra.mxu0 %v2495
    %3350 = vmatprep.subr.bf16.mxu0 %v2504
    %3351 = vmatpush1.bf16.msra.mxu0 %v2503
    %3352 = vmatprep.mubr.bf16.mxu0 %v706
    %3353 = vmatmul.mubr.bf16.gmra.mrb[0].mxu0 %v705
    %v3354 = vpop.f32.mrb[0].mxu0
    %v3355 = vadd.f32 %v3314, %v3354
    %v3356 = vpop.f32.mrb[0].mxu0
    %v3357 = vadd.f32 %v3316, %v3356
    %v3358 = vpop.f32.mrb[0].mxu0
    %v3359 = vpop.f32.mrb[0].mxu0
    %3360 = vdwg.mxu0
    %3361 = vmatprep.subr.bf16.mxu0 %v2512
    %3362 = vmatpush1.bf16.msra.mxu0 %v2511
    %3363 = vmatprep.subr.bf16.mxu0 %v2520
    %3364 = vmatpush1.bf16.msra.mxu0 %v2519
    %3365 = vmatprep.subr.bf16.mxu0 %v2528
    %3366 = vmatpush1.bf16.msra.mxu0 %v2527
    %3367 = vmatprep.subr.bf16.mxu0 %v2536
    %3368 = vmatpush1.bf16.msra.mxu0 %v2535
    %3369 = vmatprep.subr.bf16.mxu0 %v2544
    %3370 = vmatpush1.bf16.msra.mxu0 %v2543
    %3371 = vmatprep.subr.bf16.mxu0 %v2552
    %3372 = vmatpush1.bf16.msra.mxu0 %v2551
    %3373 = vmatprep.subr.bf16.mxu0 %v2560
    %3374 = vmatpush1.bf16.msra.mxu0 %v2559
    %3375 = vmatprep.subr.bf16.mxu0 %v2568
    %3376 = vmatpush1.bf16.msra.mxu0 %v2567
    %3377 = vmatprep.subr.bf16.mxu0 %v2576
    %3378 = vmatpush1.bf16.msra.mxu0 %v2575
    %3379 = vmatprep.subr.bf16.mxu0 %v2584
    %3380 = vmatpush1.bf16.msra.mxu0 %v2583
    %3381 = vmatprep.subr.bf16.mxu0 %v2592
    %3382 = vmatpush1.bf16.msra.mxu0 %v2591
    %3383 = vmatprep.subr.bf16.mxu0 %v2600
    %3384 = vmatpush1.bf16.msra.mxu0 %v2599
    %3385 = vmatprep.subr.bf16.mxu0 %v2608
    %3386 = vmatpush1.bf16.msra.mxu0 %v2607
    %3387 = vmatprep.subr.bf16.mxu0 %v2616
    %3388 = vmatpush1.bf16.msra.mxu0 %v2615
    %3389 = vmatprep.subr.bf16.mxu0 %v2624
    %3390 = vmatpush1.bf16.msra.mxu0 %v2623
    %3391 = vmatprep.subr.bf16.mxu0 %v2632
    %3392 = vmatpush1.bf16.msra.mxu0 %v2631
    %3393 = vmatprep.mubr.bf16.mxu0 %v708
    %3394 = vmatmul.mubr.bf16.gmra.mrb[0].mxu0 %v707
    %v3395 = vpop.f32.mrb[0].mxu0
    %v3396 = vadd.f32 %v3355, %v3395
    %v3397 = vpop.f32.mrb[0].mxu0
    %v3398 = vadd.f32 %v3357, %v3397
    %v3399 = vpop.f32.mrb[0].mxu0
    %v3400 = vpop.f32.mrb[0].mxu0
    %3401 = vdwg.mxu0
    %3402 = vmatprep.subr.bf16.mxu0 %v2640
    %3403 = vmatpush1.bf16.msra.mxu0 %v2639
    %3404 = vmatprep.subr.bf16.mxu0 %v2648
    %3405 = vmatpush1.bf16.msra.mxu0 %v2647
    %3406 = vmatprep.subr.bf16.mxu0 %v2656
    %3407 = vmatpush1.bf16.msra.mxu0 %v2655
    %3408 = vmatprep.subr.bf16.mxu0 %v2664
    %3409 = vmatpush1.bf16.msra.mxu0 %v2663
    %3410 = vmatprep.subr.bf16.mxu0 %v2672
    %3411 = vmatpush1.bf16.msra.mxu0 %v2671
    %3412 = vmatprep.subr.bf16.mxu0 %v2680
    %3413 = vmatpush1.bf16.msra.mxu0 %v2679
    %3414 = vmatprep.subr.bf16.mxu0 %v2688
    %3415 = vmatpush1.bf16.msra.mxu0 %v2687
    %3416 = vmatprep.subr.bf16.mxu0 %v2696
    %3417 = vmatpush1.bf16.msra.mxu0 %v2695
    %3418 = vmatprep.subr.bf16.mxu0 %v2704
    %3419 = vmatpush1.bf16.msra.mxu0 %v2703
    %3420 = vmatprep.subr.bf16.mxu0 %v2712
    %3421 = vmatpush1.bf16.msra.mxu0 %v2711
    %3422 = vmatprep.subr.bf16.mxu0 %v2720
    %3423 = vmatpush1.bf16.msra.mxu0 %v2719
    %3424 = vmatprep.subr.bf16.mxu0 %v2728
    %3425 = vmatpush1.bf16.msra.mxu0 %v2727
    %3426 = vmatprep.subr.bf16.mxu0 %v2736
    %3427 = vmatpush1.bf16.msra.mxu0 %v2735
    %3428 = vmatprep.subr.bf16.mxu0 %v2744
    %3429 = vmatpush1.bf16.msra.mxu0 %v2743
    %3430 = vmatprep.subr.bf16.mxu0 %v2752
    %3431 = vmatpush1.bf16.msra.mxu0 %v2751
    %3432 = vmatprep.subr.bf16.mxu0 %v2760
    %3433 = vmatpush1.bf16.msra.mxu0 %v2759
    %3434 = vmatprep.mubr.bf16.mxu0 %v710
    %3435 = vmatmul.mubr.bf16.gmra.mrb[0].mxu0 %v709
    %v3436 = vpop.f32.mrb[0].mxu0
    %v3437 = vadd.f32 %v3396, %v3436
    %v3438 = vpop.f32.mrb[0].mxu0
    %v3439 = vadd.f32 %v3398, %v3438
    %v3440 = vpop.f32.mrb[0].mxu0
    %v3441 = vpop.f32.mrb[0].mxu0
    %3442 = vdwg.mxu0
    %3443 = vmatprep.subr.bf16.mxu0 %v2258
    %3444 = vmatpush1.bf16.msra.mxu0 %v2257
    %3445 = vmatprep.subr.bf16.mxu0 %v2266
    %3446 = vmatpush1.bf16.msra.mxu0 %v2265
    %3447 = vmatprep.subr.bf16.mxu0 %v2274
    %3448 = vmatpush1.bf16.msra.mxu0 %v2273
    %3449 = vmatprep.subr.bf16.mxu0 %v2282
    %3450 = vmatpush1.bf16.msra.mxu0 %v2281
    %3451 = vmatprep.subr.bf16.mxu0 %v2290
    %3452 = vmatpush1.bf16.msra.mxu0 %v2289
    %3453 = vmatprep.subr.bf16.mxu0 %v2298
    %3454 = vmatpush1.bf16.msra.mxu0 %v2297
    %3455 = vmatprep.subr.bf16.mxu0 %v2306
    %3456 = vmatpush1.bf16.msra.mxu0 %v2305
    %3457 = vmatprep.subr.bf16.mxu0 %v2314
    %3458 = vmatpush1.bf16.msra.mxu0 %v2313
    %3459 = vmatprep.subr.bf16.mxu0 %v2322
    %3460 = vmatpush1.bf16.msra.mxu0 %v2321
    %3461 = vmatprep.subr.bf16.mxu0 %v2330
    %3462 = vmatpush1.bf16.msra.mxu0 %v2329
    %3463 = vmatprep.subr.bf16.mxu0 %v2338
    %3464 = vmatpush1.bf16.msra.mxu0 %v2337
    %3465 = vmatprep.subr.bf16.mxu0 %v2346
    %3466 = vmatpush1.bf16.msra.mxu0 %v2345
    %3467 = vmatprep.subr.bf16.mxu0 %v2354
    %3468 = vmatpush1.bf16.msra.mxu0 %v2353
    %3469 = vmatprep.subr.bf16.mxu0 %v2362
    %3470 = vmatpush1.bf16.msra.mxu0 %v2361
    %3471 = vmatprep.subr.bf16.mxu0 %v2370
    %3472 = vmatpush1.bf16.msra.mxu0 %v2369
    %3473 = vmatprep.subr.bf16.mxu0 %v2378
    %3474 = vmatpush1.bf16.msra.mxu0 %v2377
    %3475 = vmatprep.mubr.bf16.mxu0 %v704
    %3476 = vmatmul.mubr.bf16.gmra.mrb[0].mxu0 %v703
    %v3477 = vpop.f32.mrb[0].mxu0
    %v3478 = vadd.f32 %v662, %v3477
    %v3479 = vpop.f32.mrb[0].mxu0
    %v3480 = vadd.f32 %v666, %v3479
    %v3481 = vpop.f32.mrb[0].mxu0
    %v3482 = vpop.f32.mrb[0].mxu0
    %3483 = vdwg.mxu0
    %3484 = vmatprep.subr.bf16.mxu0 %v2386
    %3485 = vmatpush1.bf16.msra.mxu0 %v2385
    %3486 = vmatprep.subr.bf16.mxu0 %v2394
    %3487 = vmatpush1.bf16.msra.mxu0 %v2393
    %3488 = vmatprep.subr.bf16.mxu0 %v2402
    %3489 = vmatpush1.bf16.msra.mxu0 %v2401
    %3490 = vmatprep.subr.bf16.mxu0 %v2410
    %3491 = vmatpush1.bf16.msra.mxu0 %v2409
    %3492 = vmatprep.subr.bf16.mxu0 %v2418
    %3493 = vmatpush1.bf16.msra.mxu0 %v2417
    %3494 = vmatprep.subr.bf16.mxu0 %v2426
    %3495 = vmatpush1.bf16.msra.mxu0 %v2425
    %3496 = vmatprep.subr.bf16.mxu0 %v2434
    %3497 = vmatpush1.bf16.msra.mxu0 %v2433
    %3498 = vmatprep.subr.bf16.mxu0 %v2442
    %3499 = vmatpush1.bf16.msra.mxu0 %v2441
    %3500 = vmatprep.subr.bf16.mxu0 %v2450
    %3501 = vmatpush1.bf16.msra.mxu0 %v2449
    %3502 = vmatprep.subr.bf16.mxu0 %v2458
    %3503 = vmatpush1.bf16.msra.mxu0 %v2457
    %3504 = vmatprep.subr.bf16.mxu0 %v2466
    %3505 = vmatpush1.bf16.msra.mxu0 %v2465
    %3506 = vmatprep.subr.bf16.mxu0 %v2474
    %3507 = vmatpush1.bf16.msra.mxu0 %v2473
    %3508 = vmatprep.subr.bf16.mxu0 %v2482
    %3509 = vmatpush1.bf16.msra.mxu0 %v2481
    %3510 = vmatprep.subr.bf16.mxu0 %v2490
    %3511 = vmatpush1.bf16.msra.mxu0 %v2489
    %3512 = vmatprep.subr.bf16.mxu0 %v2498
    %3513 = vmatpush1.bf16.msra.mxu0 %v2497
    %3514 = vmatprep.subr.bf16.mxu0 %v2506
    %3515 = vmatpush1.bf16.msra.mxu0 %v2505
    %3516 = vmatprep.mubr.bf16.mxu0 %v706
    %3517 = vmatmul.mubr.bf16.gmra.mrb[0].mxu0 %v705
    %v3518 = vpop.f32.mrb[0].mxu0
    %v3519 = vadd.f32 %v3478, %v3518
    %v3520 = vpop.f32.mrb[0].mxu0
    %v3521 = vadd.f32 %v3480, %v3520
    %v3522 = vpop.f32.mrb[0].mxu0
    %v3523 = vpop.f32.mrb[0].mxu0
    %3524 = vdwg.mxu0
    %3525 = vmatprep.subr.bf16.mxu0 %v2514
    %3526 = vmatpush1.bf16.msra.mxu0 %v2513
    %3527 = vmatprep.subr.bf16.mxu0 %v2522
    %3528 = vmatpush1.bf16.msra.mxu0 %v2521
    %3529 = vmatprep.subr.bf16.mxu0 %v2530
    %3530 = vmatpush1.bf16.msra.mxu0 %v2529
    %3531 = vmatprep.subr.bf16.mxu0 %v2538
    %3532 = vmatpush1.bf16.msra.mxu0 %v2537
    %3533 = vmatprep.subr.bf16.mxu0 %v2546
    %3534 = vmatpush1.bf16.msra.mxu0 %v2545
    %3535 = vmatprep.subr.bf16.mxu0 %v2554
    %3536 = vmatpush1.bf16.msra.mxu0 %v2553
    %3537 = vmatprep.subr.bf16.mxu0 %v2562
    %3538 = vmatpush1.bf16.msra.mxu0 %v2561
    %3539 = vmatprep.subr.bf16.mxu0 %v2570
    %3540 = vmatpush1.bf16.msra.mxu0 %v2569
    %3541 = vmatprep.subr.bf16.mxu0 %v2578
    %3542 = vmatpush1.bf16.msra.mxu0 %v2577
    %3543 = vmatprep.subr.bf16.mxu0 %v2586
    %3544 = vmatpush1.bf16.msra.mxu0 %v2585
    %3545 = vmatprep.subr.bf16.mxu0 %v2594
    %3546 = vmatpush1.bf16.msra.mxu0 %v2593
    %3547 = vmatprep.subr.bf16.mxu0 %v2602
    %3548 = vmatpush1.bf16.msra.mxu0 %v2601
    %3549 = vmatprep.subr.bf16.mxu0 %v2610
    %3550 = vmatpush1.bf16.msra.mxu0 %v2609
    %3551 = vmatprep.subr.bf16.mxu0 %v2618
    %3552 = vmatpush1.bf16.msra.mxu0 %v2617
    %3553 = vmatprep.subr.bf16.mxu0 %v2626
    %3554 = vmatpush1.bf16.msra.mxu0 %v2625
    %3555 = vmatprep.subr.bf16.mxu0 %v2634
    %3556 = vmatpush1.bf16.msra.mxu0 %v2633
    %3557 = vmatprep.mubr.bf16.mxu0 %v708
    %3558 = vmatmul.mubr.bf16.gmra.mrb[0].mxu0 %v707
    %v3559 = vpop.f32.mrb[0].mxu0
    %v3560 = vadd.f32 %v3519, %v3559
    %v3561 = vpop.f32.mrb[0].mxu0
    %v3562 = vadd.f32 %v3521, %v3561
    %v3563 = vpop.f32.mrb[0].mxu0
    %v3564 = vpop.f32.mrb[0].mxu0
    %3565 = vdwg.mxu0
    %3566 = vmatprep.subr.bf16.mxu0 %v2642
    %3567 = vmatpush1.bf16.msra.mxu0 %v2641
    %3568 = vmatprep.subr.bf16.mxu0 %v2650
    %3569 = vmatpush1.bf16.msra.mxu0 %v2649
    %3570 = vmatprep.subr.bf16.mxu0 %v2658
    %3571 = vmatpush1.bf16.msra.mxu0 %v2657
    %3572 = vmatprep.subr.bf16.mxu0 %v2666
    %3573 = vmatpush1.bf16.msra.mxu0 %v2665
    %3574 = vmatprep.subr.bf16.mxu0 %v2674
    %3575 = vmatpush1.bf16.msra.mxu0 %v2673
    %3576 = vmatprep.subr.bf16.mxu0 %v2682
    %3577 = vmatpush1.bf16.msra.mxu0 %v2681
    %3578 = vmatprep.subr.bf16.mxu0 %v2690
    %3579 = vmatpush1.bf16.msra.mxu0 %v2689
    %3580 = vmatprep.subr.bf16.mxu0 %v2698
    %3581 = vmatpush1.bf16.msra.mxu0 %v2697
    %3582 = vmatprep.subr.bf16.mxu0 %v2706
    %3583 = vmatpush1.bf16.msra.mxu0 %v2705
    %3584 = vmatprep.subr.bf16.mxu0 %v2714
    %3585 = vmatpush1.bf16.msra.mxu0 %v2713
    %3586 = vmatprep.subr.bf16.mxu0 %v2722
    %3587 = vmatpush1.bf16.msra.mxu0 %v2721
    %3588 = vmatprep.subr.bf16.mxu0 %v2730
    %3589 = vmatpush1.bf16.msra.mxu0 %v2729
    %3590 = vmatprep.subr.bf16.mxu0 %v2738
    %3591 = vmatpush1.bf16.msra.mxu0 %v2737
    %3592 = vmatprep.subr.bf16.mxu0 %v2746
    %3593 = vmatpush1.bf16.msra.mxu0 %v2745
    %3594 = vmatprep.subr.bf16.mxu0 %v2754
    %3595 = vmatpush1.bf16.msra.mxu0 %v2753
    %3596 = vmatprep.subr.bf16.mxu0 %v2762
    %3597 = vmatpush1.bf16.msra.mxu0 %v2761
    %3598 = vmatprep.mubr.bf16.mxu0 %v710
    %3599 = vmatmul.mubr.bf16.gmra.mrb[0].mxu0 %v709
    %v3600 = vpop.f32.mrb[0].mxu0
    %v3601 = vadd.f32 %v3560, %v3600
    %v3602 = vpop.f32.mrb[0].mxu0
    %v3603 = vadd.f32 %v3562, %v3602
    %v3604 = vpop.f32.mrb[0].mxu0
    %v3605 = vpop.f32.mrb[0].mxu0
    %3606 = vdwg.mxu0
    %3607 = vmatprep.subr.bf16.mxu0 %v2260
    %3608 = vmatpush1.bf16.msra.mxu0 %v2259
    %3609 = vmatprep.subr.bf16.mxu0 %v2268
    %3610 = vmatpush1.bf16.msra.mxu0 %v2267
    %3611 = vmatprep.subr.bf16.mxu0 %v2276
    %3612 = vmatpush1.bf16.msra.mxu0 %v2275
    %3613 = vmatprep.subr.bf16.mxu0 %v2284
    %3614 = vmatpush1.bf16.msra.mxu0 %v2283
    %3615 = vmatprep.subr.bf16.mxu0 %v2292
    %3616 = vmatpush1.bf16.msra.mxu0 %v2291
    %3617 = vmatprep.subr.bf16.mxu0 %v2300
    %3618 = vmatpush1.bf16.msra.mxu0 %v2299
    %3619 = vmatprep.subr.bf16.mxu0 %v2308
    %3620 = vmatpush1.bf16.msra.mxu0 %v2307
    %3621 = vmatprep.subr.bf16.mxu0 %v2316
    %3622 = vmatpush1.bf16.msra.mxu0 %v2315
    %3623 = vmatprep.subr.bf16.mxu0 %v2324
    %3624 = vmatpush1.bf16.msra.mxu0 %v2323
    %3625 = vmatprep.subr.bf16.mxu0 %v2332
    %3626 = vmatpush1.bf16.msra.mxu0 %v2331
    %3627 = vmatprep.subr.bf16.mxu0 %v2340
    %3628 = vmatpush1.bf16.msra.mxu0 %v2339
    %3629 = vmatprep.subr.bf16.mxu0 %v2348
    %3630 = vmatpush1.bf16.msra.mxu0 %v2347
    %3631 = vmatprep.subr.bf16.mxu0 %v2356
    %3632 = vmatpush1.bf16.msra.mxu0 %v2355
    %3633 = vmatprep.subr.bf16.mxu0 %v2364
    %3634 = vmatpush1.bf16.msra.mxu0 %v2363
    %3635 = vmatprep.subr.bf16.mxu0 %v2372
    %3636 = vmatpush1.bf16.msra.mxu0 %v2371
    %3637 = vmatprep.subr.bf16.mxu0 %v2380
    %3638 = vmatpush1.bf16.msra.mxu0 %v2379
    %3639 = vmatprep.mubr.bf16.mxu0 %v704
    %3640 = vmatmul.mubr.bf16.gmra.mrb[0].mxu0 %v703
    %v3641 = vpop.f32.mrb[0].mxu0
    %v3642 = vadd.f32 %v670, %v3641
    %v3643 = vpop.f32.mrb[0].mxu0
    %v3644 = vadd.f32 %v674, %v3643
    %v3645 = vpop.f32.mrb[0].mxu0
    %v3646 = vpop.f32.mrb[0].mxu0
    %3647 = vdwg.mxu0
    %3648 = vmatprep.subr.bf16.mxu0 %v2388
    %3649 = vmatpush1.bf16.msra.mxu0 %v2387
    %3650 = vmatprep.subr.bf16.mxu0 %v2396
    %3651 = vmatpush1.bf16.msra.mxu0 %v2395
    %3652 = vmatprep.subr.bf16.mxu0 %v2404
    %3653 = vmatpush1.bf16.msra.mxu0 %v2403
    %3654 = vmatprep.subr.bf16.mxu0 %v2412
    %3655 = vmatpush1.bf16.msra.mxu0 %v2411
    %3656 = vmatprep.subr.bf16.mxu0 %v2420
    %3657 = vmatpush1.bf16.msra.mxu0 %v2419
    %3658 = vmatprep.subr.bf16.mxu0 %v2428
    %3659 = vmatpush1.bf16.msra.mxu0 %v2427
    %3660 = vmatprep.subr.bf16.mxu0 %v2436
    %3661 = vmatpush1.bf16.msra.mxu0 %v2435
    %3662 = vmatprep.subr.bf16.mxu0 %v2444
    %3663 = vmatpush1.bf16.msra.mxu0 %v2443
    %3664 = vmatprep.subr.bf16.mxu0 %v2452
    %3665 = vmatpush1.bf16.msra.mxu0 %v2451
    %3666 = vmatprep.subr.bf16.mxu0 %v2460
    %3667 = vmatpush1.bf16.msra.mxu0 %v2459
    %3668 = vmatprep.subr.bf16.mxu0 %v2468
    %3669 = vmatpush1.bf16.msra.mxu0 %v2467
    %3670 = vmatprep.subr.bf16.mxu0 %v2476
    %3671 = vmatpush1.bf16.msra.mxu0 %v2475
    %3672 = vmatprep.subr.bf16.mxu0 %v2484
    %3673 = vmatpush1.bf16.msra.mxu0 %v2483
    %3674 = vmatprep.subr.bf16.mxu0 %v2492
    %3675 = vmatpush1.bf16.msra.mxu0 %v2491
    %3676 = vmatprep.subr.bf16.mxu0 %v2500
    %3677 = vmatpush1.bf16.msra.mxu0 %v2499
    %3678 = vmatprep.subr.bf16.mxu0 %v2508
    %3679 = vmatpush1.bf16.msra.mxu0 %v2507
    %3680 = vmatprep.mubr.bf16.mxu0 %v706
    %3681 = vmatmul.mubr.bf16.gmra.mrb[0].mxu0 %v705
    %v3682 = vpop.f32.mrb[0].mxu0
    %v3683 = vadd.f32 %v3642, %v3682
    %v3684 = vpop.f32.mrb[0].mxu0
    %v3685 = vadd.f32 %v3644, %v3684
    %v3686 = vpop.f32.mrb[0].mxu0
    %v3687 = vpop.f32.mrb[0].mxu0
    %3688 = vdwg.mxu0
    %3689 = vmatprep.subr.bf16.mxu0 %v2516
    %3690 = vmatpush1.bf16.msra.mxu0 %v2515
    %3691 = vmatprep.subr.bf16.mxu0 %v2524
    %3692 = vmatpush1.bf16.msra.mxu0 %v2523
    %3693 = vmatprep.subr.bf16.mxu0 %v2532
    %3694 = vmatpush1.bf16.msra.mxu0 %v2531
    %3695 = vmatprep.subr.bf16.mxu0 %v2540
    %3696 = vmatpush1.bf16.msra.mxu0 %v2539
    %3697 = vmatprep.subr.bf16.mxu0 %v2548
    %3698 = vmatpush1.bf16.msra.mxu0 %v2547
    %3699 = vmatprep.subr.bf16.mxu0 %v2556
    %3700 = vmatpush1.bf16.msra.mxu0 %v2555
    %3701 = vmatprep.subr.bf16.mxu0 %v2564
    %3702 = vmatpush1.bf16.msra.mxu0 %v2563
    %3703 = vmatprep.subr.bf16.mxu0 %v2572
    %3704 = vmatpush1.bf16.msra.mxu0 %v2571
    %3705 = vmatprep.subr.bf16.mxu0 %v2580
    %3706 = vmatpush1.bf16.msra.mxu0 %v2579
    %3707 = vmatprep.subr.bf16.mxu0 %v2588
    %3708 = vmatpush1.bf16.msra.mxu0 %v2587
    %3709 = vmatprep.subr.bf16.mxu0 %v2596
    %3710 = vmatpush1.bf16.msra.mxu0 %v2595
    %3711 = vmatprep.subr.bf16.mxu0 %v2604
    %3712 = vmatpush1.bf16.msra.mxu0 %v2603
    %3713 = vmatprep.subr.bf16.mxu0 %v2612
    %3714 = vmatpush1.bf16.msra.mxu0 %v2611
    %3715 = vmatprep.subr.bf16.mxu0 %v2620
    %3716 = vmatpush1.bf16.msra.mxu0 %v2619
    %3717 = vmatprep.subr.bf16.mxu0 %v2628
    %3718 = vmatpush1.bf16.msra.mxu0 %v2627
    %3719 = vmatprep.subr.bf16.mxu0 %v2636
    %3720 = vmatpush1.bf16.msra.mxu0 %v2635
    %3721 = vmatprep.mubr.bf16.mxu0 %v708
    %3722 = vmatmul.mubr.bf16.gmra.mrb[0].mxu0 %v707
    %v3723 = vpop.f32.mrb[0].mxu0
    %v3724 = vadd.f32 %v3683, %v3723
    %v3725 = vpop.f32.mrb[0].mxu0
    %v3726 = vadd.f32 %v3685, %v3725
    %v3727 = vpop.f32.mrb[0].mxu0
    %v3728 = vpop.f32.mrb[0].mxu0
    %3729 = vdwg.mxu0
    %3730 = vmatprep.subr.bf16.mxu0 %v2644
    %3731 = vmatpush1.bf16.msra.mxu0 %v2643
    %3732 = vmatprep.subr.bf16.mxu0 %v2652
    %3733 = vmatpush1.bf16.msra.mxu0 %v2651
    %3734 = vmatprep.subr.bf16.mxu0 %v2660
    %3735 = vmatpush1.bf16.msra.mxu0 %v2659
    %3736 = vmatprep.subr.bf16.mxu0 %v2668
    %3737 = vmatpush1.bf16.msra.mxu0 %v2667
    %3738 = vmatprep.subr.bf16.mxu0 %v2676
    %3739 = vmatpush1.bf16.msra.mxu0 %v2675
    %3740 = vmatprep.subr.bf16.mxu0 %v2684
    %3741 = vmatpush1.bf16.msra.mxu0 %v2683
    %3742 = vmatprep.subr.bf16.mxu0 %v2692
    %3743 = vmatpush1.bf16.msra.mxu0 %v2691
    %3744 = vmatprep.subr.bf16.mxu0 %v2700
    %3745 = vmatpush1.bf16.msra.mxu0 %v2699
    %3746 = vmatprep.subr.bf16.mxu0 %v2708
    %3747 = vmatpush1.bf16.msra.mxu0 %v2707
    %3748 = vmatprep.subr.bf16.mxu0 %v2716
    %3749 = vmatpush1.bf16.msra.mxu0 %v2715
    %3750 = vmatprep.subr.bf16.mxu0 %v2724
    %3751 = vmatpush1.bf16.msra.mxu0 %v2723
    %3752 = vmatprep.subr.bf16.mxu0 %v2732
    %3753 = vmatpush1.bf16.msra.mxu0 %v2731
    %3754 = vmatprep.subr.bf16.mxu0 %v2740
    %3755 = vmatpush1.bf16.msra.mxu0 %v2739
    %3756 = vmatprep.subr.bf16.mxu0 %v2748
    %3757 = vmatpush1.bf16.msra.mxu0 %v2747
    %3758 = vmatprep.subr.bf16.mxu0 %v2756
    %3759 = vmatpush1.bf16.msra.mxu0 %v2755
    %3760 = vmatprep.subr.bf16.mxu0 %v2764
    %3761 = vmatpush1.bf16.msra.mxu0 %v2763
    %3762 = vmatprep.mubr.bf16.mxu0 %v710
    %3763 = vmatmul.mubr.bf16.gmra.mrb[0].mxu0 %v709
    %v3764 = vpop.f32.mrb[0].mxu0
    %v3765 = vadd.f32 %v3724, %v3764
    %v3766 = vpop.f32.mrb[0].mxu0
    %v3767 = vadd.f32 %v3726, %v3766
    %v3768 = vpop.f32.mrb[0].mxu0
    %v3769 = vpop.f32.mrb[0].mxu0
    %3770 = vdwg.mxu0
    %3771 = vmatprep.subr.bf16.mxu0 %v2262
    %3772 = vmatpush1.bf16.msra.mxu0 %v2261
    %3773 = vmatprep.subr.bf16.mxu0 %v2270
    %3774 = vmatpush1.bf16.msra.mxu0 %v2269
    %3775 = vmatprep.subr.bf16.mxu0 %v2278
    %3776 = vmatpush1.bf16.msra.mxu0 %v2277
    %3777 = vmatprep.subr.bf16.mxu0 %v2286
    %3778 = vmatpush1.bf16.msra.mxu0 %v2285
    %3779 = vmatprep.subr.bf16.mxu0 %v2294
    %3780 = vmatpush1.bf16.msra.mxu0 %v2293
    %3781 = vmatprep.subr.bf16.mxu0 %v2302
    %3782 = vmatpush1.bf16.msra.mxu0 %v2301
    %3783 = vmatprep.subr.bf16.mxu0 %v2310
    %3784 = vmatpush1.bf16.msra.mxu0 %v2309
    %3785 = vmatprep.subr.bf16.mxu0 %v2318
    %3786 = vmatpush1.bf16.msra.mxu0 %v2317
    %3787 = vmatprep.subr.bf16.mxu0 %v2326
    %3788 = vmatpush1.bf16.msra.mxu0 %v2325
    %3789 = vmatprep.subr.bf16.mxu0 %v2334
    %3790 = vmatpush1.bf16.msra.mxu0 %v2333
    %3791 = vmatprep.subr.bf16.mxu0 %v2342
    %3792 = vmatpush1.bf16.msra.mxu0 %v2341
    %3793 = vmatprep.subr.bf16.mxu0 %v2350
    %3794 = vmatpush1.bf16.msra.mxu0 %v2349
    %3795 = vmatprep.subr.bf16.mxu0 %v2358
    %3796 = vmatpush1.bf16.msra.mxu0 %v2357
    %3797 = vmatprep.subr.bf16.mxu0 %v2366
    %3798 = vmatpush1.bf16.msra.mxu0 %v2365
    %3799 = vmatprep.subr.bf16.mxu0 %v2374
    %3800 = vmatpush1.bf16.msra.mxu0 %v2373
    %3801 = vmatprep.subr.bf16.mxu0 %v2382
    %3802 = vmatpush1.bf16.msra.mxu0 %v2381
    %3803 = vmatprep.mubr.bf16.mxu0 %v704
    %3804 = vmatmul.mubr.bf16.gmra.mrb[0].mxu0 %v703
    %v3805 = vpop.f32.mrb[0].mxu0
    %v3806 = vadd.f32 %v678, %v3805
    %v3807 = vpop.f32.mrb[0].mxu0
    %v3808 = vadd.f32 %v682, %v3807
    %v3809 = vpop.f32.mrb[0].mxu0
    %v3810 = vpop.f32.mrb[0].mxu0
    %3811 = vdwg.mxu0
    %3812 = vmatprep.subr.bf16.mxu0 %v2390
    %3813 = vmatpush1.bf16.msra.mxu0 %v2389
    %3814 = vmatprep.subr.bf16.mxu0 %v2398
    %3815 = vmatpush1.bf16.msra.mxu0 %v2397
    %3816 = vmatprep.subr.bf16.mxu0 %v2406
    %3817 = vmatpush1.bf16.msra.mxu0 %v2405
    %3818 = vmatprep.subr.bf16.mxu0 %v2414
    %3819 = vmatpush1.bf16.msra.mxu0 %v2413
    %3820 = vmatprep.subr.bf16.mxu0 %v2422
    %3821 = vmatpush1.bf16.msra.mxu0 %v2421
    %3822 = vmatprep.subr.bf16.mxu0 %v2430
    %3823 = vmatpush1.bf16.msra.mxu0 %v2429
    %3824 = vmatprep.subr.bf16.mxu0 %v2438
    %3825 = vmatpush1.bf16.msra.mxu0 %v2437
    %3826 = vmatprep.subr.bf16.mxu0 %v2446
    %3827 = vmatpush1.bf16.msra.mxu0 %v2445
    %3828 = vmatprep.subr.bf16.mxu0 %v2454
    %3829 = vmatpush1.bf16.msra.mxu0 %v2453
    %3830 = vmatprep.subr.bf16.mxu0 %v2462
    %3831 = vmatpush1.bf16.msra.mxu0 %v2461
    %3832 = vmatprep.subr.bf16.mxu0 %v2470
    %3833 = vmatpush1.bf16.msra.mxu0 %v2469
    %3834 = vmatprep.subr.bf16.mxu0 %v2478
    %3835 = vmatpush1.bf16.msra.mxu0 %v2477
    %3836 = vmatprep.subr.bf16.mxu0 %v2486
    %3837 = vmatpush1.bf16.msra.mxu0 %v2485
    %3838 = vmatprep.subr.bf16.mxu0 %v2494
    %3839 = vmatpush1.bf16.msra.mxu0 %v2493
    %3840 = vmatprep.subr.bf16.mxu0 %v2502
    %3841 = vmatpush1.bf16.msra.mxu0 %v2501
    %3842 = vmatprep.subr.bf16.mxu0 %v2510
    %3843 = vmatpush1.bf16.msra.mxu0 %v2509
    %3844 = vmatprep.mubr.bf16.mxu0 %v706
    %3845 = vmatmul.mubr.bf16.gmra.mrb[0].mxu0 %v705
    %v3846 = vpop.f32.mrb[0].mxu0
    %v3847 = vadd.f32 %v3806, %v3846
    %v3848 = vpop.f32.mrb[0].mxu0
    %v3849 = vadd.f32 %v3808, %v3848
    %v3850 = vpop.f32.mrb[0].mxu0
    %v3851 = vpop.f32.mrb[0].mxu0
    %3852 = vdwg.mxu0
    %3853 = vmatprep.subr.bf16.mxu0 %v2518
    %3854 = vmatpush1.bf16.msra.mxu0 %v2517
    %3855 = vmatprep.subr.bf16.mxu0 %v2526
    %3856 = vmatpush1.bf16.msra.mxu0 %v2525
    %3857 = vmatprep.subr.bf16.mxu0 %v2534
    %3858 = vmatpush1.bf16.msra.mxu0 %v2533
    %3859 = vmatprep.subr.bf16.mxu0 %v2542
    %3860 = vmatpush1.bf16.msra.mxu0 %v2541
    %3861 = vmatprep.subr.bf16.mxu0 %v2550
    %3862 = vmatpush1.bf16.msra.mxu0 %v2549
    %3863 = vmatprep.subr.bf16.mxu0 %v2558
    %3864 = vmatpush1.bf16.msra.mxu0 %v2557
    %3865 = vmatprep.subr.bf16.mxu0 %v2566
    %3866 = vmatpush1.bf16.msra.mxu0 %v2565
    %3867 = vmatprep.subr.bf16.mxu0 %v2574
    %3868 = vmatpush1.bf16.msra.mxu0 %v2573
    %3869 = vmatprep.subr.bf16.mxu0 %v2582
    %3870 = vmatpush1.bf16.msra.mxu0 %v2581
    %3871 = vmatprep.subr.bf16.mxu0 %v2590
    %3872 = vmatpush1.bf16.msra.mxu0 %v2589
    %3873 = vmatprep.subr.bf16.mxu0 %v2598
    %3874 = vmatpush1.bf16.msra.mxu0 %v2597
    %3875 = vmatprep.subr.bf16.mxu0 %v2606
    %3876 = vmatpush1.bf16.msra.mxu0 %v2605
    %3877 = vmatprep.subr.bf16.mxu0 %v2614
    %3878 = vmatpush1.bf16.msra.mxu0 %v2613
    %3879 = vmatprep.subr.bf16.mxu0 %v2622
    %3880 = vmatpush1.bf16.msra.mxu0 %v2621
    %3881 = vmatprep.subr.bf16.mxu0 %v2630
    %3882 = vmatpush1.bf16.msra.mxu0 %v2629
    %3883 = vmatprep.subr.bf16.mxu0 %v2638
    %3884 = vmatpush1.bf16.msra.mxu0 %v2637
    %3885 = vmatprep.mubr.bf16.mxu0 %v708
    %3886 = vmatmul.mubr.bf16.gmra.mrb[0].mxu0 %v707
    %v3887 = vpop.f32.mrb[0].mxu0
    %v3888 = vadd.f32 %v3847, %v3887
    %v3889 = vpop.f32.mrb[0].mxu0
    %v3890 = vadd.f32 %v3849, %v3889
    %v3891 = vpop.f32.mrb[0].mxu0
    %v3892 = vpop.f32.mrb[0].mxu0
    %3893 = vdwg.mxu0
    %3894 = vmatprep.subr.bf16.mxu0 %v2646
    %3895 = vmatpush1.bf16.msra.mxu0 %v2645
    %3896 = vmatprep.subr.bf16.mxu0 %v2654
    %3897 = vmatpush1.bf16.msra.mxu0 %v2653
    %3898 = vmatprep.subr.bf16.mxu0 %v2662
    %3899 = vmatpush1.bf16.msra.mxu0 %v2661
    %3900 = vmatprep.subr.bf16.mxu0 %v2670
    %3901 = vmatpush1.bf16.msra.mxu0 %v2669
    %3902 = vmatprep.subr.bf16.mxu0 %v2678
    %3903 = vmatpush1.bf16.msra.mxu0 %v2677
    %3904 = vmatprep.subr.bf16.mxu0 %v2686
    %3905 = vmatpush1.bf16.msra.mxu0 %v2685
    %3906 = vmatprep.subr.bf16.mxu0 %v2694
    %3907 = vmatpush1.bf16.msra.mxu0 %v2693
    %3908 = vmatprep.subr.bf16.mxu0 %v2702
    %3909 = vmatpush1.bf16.msra.mxu0 %v2701
    %3910 = vmatprep.subr.bf16.mxu0 %v2710
    %3911 = vmatpush1.bf16.msra.mxu0 %v2709
    %3912 = vmatprep.subr.bf16.mxu0 %v2718
    %3913 = vmatpush1.bf16.msra.mxu0 %v2717
    %3914 = vmatprep.subr.bf16.mxu0 %v2726
    %3915 = vmatpush1.bf16.msra.mxu0 %v2725
    %3916 = vmatprep.subr.bf16.mxu0 %v2734
    %3917 = vmatpush1.bf16.msra.mxu0 %v2733
    %3918 = vmatprep.subr.bf16.mxu0 %v2742
    %3919 = vmatpush1.bf16.msra.mxu0 %v2741
    %3920 = vmatprep.subr.bf16.mxu0 %v2750
    %3921 = vmatpush1.bf16.msra.mxu0 %v2749
    %3922 = vmatprep.subr.bf16.mxu0 %v2758
    %3923 = vmatpush1.bf16.msra.mxu0 %v2757
    %3924 = vmatprep.subr.bf16.mxu0 %v2766
    %3925 = vmatpush1.bf16.msra.mxu0 %v2765
    %3926 = vmatprep.mubr.bf16.mxu0 %v710
    %3927 = vmatmul.mubr.bf16.gmra.mrb[0].mxu0 %v709
    %v3928 = vpop.f32.mrb[0].mxu0
    %v3929 = vadd.f32 %v3888, %v3928
    %v3930 = vpop.f32.mrb[0].mxu0
    %v3931 = vadd.f32 %v3890, %v3930
    %v3932 = vpop.f32.mrb[0].mxu0
    %v3933 = vpop.f32.mrb[0].mxu0
    %3934 = vdwg.mxu0
    %v3935 = vmax.f32 %v3437, 0.0
    %v3936 = vmax.f32 %v3439, 0.0
    %v3937 = vmax.f32 %v3601, 0.0
    %v3938 = vmax.f32 %v3603, 0.0
    %v3939 = vmax.f32 %v3765, 0.0
    %v3940 = vmax.f32 %v3767, 0.0
    %v3941 = vmax.f32 %v3929, 0.0
    %v3942 = vmax.f32 %v3931, 0.0
    %v3943 = vpack.c.bf16 %v3935, %v3935
    %v3944 = vpack.c.bf16 %v3936, %v3936
    %v3945 = vpack.c.bf16 %v3937, %v3937
    %v3946 = vpack.c.bf16 %v3938, %v3938
    %v3947 = vpack.c.bf16 %v3939, %v3939
    %v3948 = vpack.c.bf16 %v3940, %v3940
    %v3949 = vpack.c.bf16 %v3941, %v3941
    %v3950 = vpack.c.bf16 %v3942, %v3942
    %v3951 = vld [vmem:[#allocation8] sm:$0xf]
    %v3952 = vld [vmem:[#allocation8 + $0x4] sm:$0xf]
    %v3953 = vld [vmem:[#allocation8 + $0x8] sm:$0xf]
    %v3954 = vld [vmem:[#allocation8 + $0xc] sm:$0xf]
    %v3955 = vld [vmem:[#allocation8 + $0x10] sm:$0xf]
    %v3956 = vld [vmem:[#allocation8 + $0x14] sm:$0xf]
    %v3957 = vld [vmem:[#allocation8 + $0x18] sm:$0xf]
    %v3958 = vld [vmem:[#allocation8 + $0x1c] sm:$0xf]
    %v3959 = vld [vmem:[#allocation8 + $0x20] sm:$0xf]
    %v3960 = vld [vmem:[#allocation8 + $0x24] sm:$0xf]
    %v3961 = vld [vmem:[#allocation8 + $0x28] sm:$0xf]
    %v3962 = vld [vmem:[#allocation8 + $0x2c] sm:$0xf]
    %v3963 = vld [vmem:[#allocation8 + $0x30] sm:$0xf]
    %v3964 = vld [vmem:[#allocation8 + $0x34] sm:$0xf]
    %v3965 = vld [vmem:[#allocation8 + $0x38] sm:$0xf]
    %v3966 = vld [vmem:[#allocation8 + $0x3c] sm:$0xf]
    %v3967 = vld [vmem:[#allocation8 + $0x40] sm:$0xf]
    %v3968 = vld [vmem:[#allocation8 + $0x44] sm:$0xf]
    %v3969 = vld [vmem:[#allocation8 + $0x48] sm:$0xf]
    %v3970 = vld [vmem:[#allocation8 + $0x4c] sm:$0xf]
    %v3971 = vld [vmem:[#allocation8 + $0x50] sm:$0xf]
    %v3972 = vld [vmem:[#allocation8 + $0x54] sm:$0xf]
    %v3973 = vld [vmem:[#allocation8 + $0x58] sm:$0xf]
    %v3974 = vld [vmem:[#allocation8 + $0x5c] sm:$0xf]
    %v3975 = vld [vmem:[#allocation8 + $0x60] sm:$0xf]
    %v3976 = vld [vmem:[#allocation8 + $0x64] sm:$0xf]
    %v3977 = vld [vmem:[#allocation8 + $0x68] sm:$0xf]
    %v3978 = vld [vmem:[#allocation8 + $0x6c] sm:$0xf]
    %v3979 = vld [vmem:[#allocation8 + $0x70] sm:$0xf]
    %v3980 = vld [vmem:[#allocation8 + $0x74] sm:$0xf]
    %v3981 = vld [vmem:[#allocation8 + $0x78] sm:$0xf]
    %v3982 = vld [vmem:[#allocation8 + $0x7c] sm:$0xf]
    %v3983 = vld [vmem:[#allocation8 + $0x80] sm:$0xf]
    %v3984 = vld [vmem:[#allocation8 + $0x84] sm:$0xf]
    %v3985 = vld [vmem:[#allocation8 + $0x88] sm:$0xf]
    %v3986 = vld [vmem:[#allocation8 + $0x8c] sm:$0xf]
    %v3987 = vld [vmem:[#allocation8 + $0x90] sm:$0xf]
    %v3988 = vld [vmem:[#allocation8 + $0x94] sm:$0xf]
    %v3989 = vld [vmem:[#allocation8 + $0x98] sm:$0xf]
    %v3990 = vld [vmem:[#allocation8 + $0x9c] sm:$0xf]
    %v3991 = vld [vmem:[#allocation8 + $0xa0] sm:$0xf]
    %v3992 = vld [vmem:[#allocation8 + $0xa4] sm:$0xf]
    %v3993 = vld [vmem:[#allocation8 + $0xa8] sm:$0xf]
    %v3994 = vld [vmem:[#allocation8 + $0xac] sm:$0xf]
    %v3995 = vld [vmem:[#allocation8 + $0xb0] sm:$0xf]
    %v3996 = vld [vmem:[#allocation8 + $0xb4] sm:$0xf]
    %v3997 = vld [vmem:[#allocation8 + $0xb8] sm:$0xf]
    %v3998 = vld [vmem:[#allocation8 + $0xbc] sm:$0xf]
    %v3999 = vld [vmem:[#allocation8 + $0xc0] sm:$0xf]
    %v4000 = vld [vmem:[#allocation8 + $0xc4] sm:$0xf]
    %v4001 = vld [vmem:[#allocation8 + $0xc8] sm:$0xf]
    %v4002 = vld [vmem:[#allocation8 + $0xcc] sm:$0xf]
    %v4003 = vld [vmem:[#allocation8 + $0xd0] sm:$0xf]
    %v4004 = vld [vmem:[#allocation8 + $0xd4] sm:$0xf]
    %v4005 = vld [vmem:[#allocation8 + $0xd8] sm:$0xf]
    %v4006 = vld [vmem:[#allocation8 + $0xdc] sm:$0xf]
    %v4007 = vld [vmem:[#allocation8 + $0xe0] sm:$0xf]
    %v4008 = vld [vmem:[#allocation8 + $0xe4] sm:$0xf]
    %v4009 = vld [vmem:[#allocation8 + $0xe8] sm:$0xf]
    %v4010 = vld [vmem:[#allocation8 + $0xec] sm:$0xf]
    %v4011 = vld [vmem:[#allocation8 + $0xf0] sm:$0xf]
    %v4012 = vld [vmem:[#allocation8 + $0xf4] sm:$0xf]
    %v4013 = vld [vmem:[#allocation8 + $0xf8] sm:$0xf]
    %v4014 = vld [vmem:[#allocation8 + $0xfc] sm:$0xf]
    %v4015 = vld [vmem:[#allocation8 + $0x100] sm:$0xf]
    %v4016 = vld [vmem:[#allocation8 + $0x104] sm:$0xf]
    %v4017 = vld [vmem:[#allocation8 + $0x108] sm:$0xf]
    %v4018 = vld [vmem:[#allocation8 + $0x10c] sm:$0xf]
    %v4019 = vld [vmem:[#allocation8 + $0x110] sm:$0xf]
    %v4020 = vld [vmem:[#allocation8 + $0x114] sm:$0xf]
    %v4021 = vld [vmem:[#allocation8 + $0x118] sm:$0xf]
    %v4022 = vld [vmem:[#allocation8 + $0x11c] sm:$0xf]
    %v4023 = vld [vmem:[#allocation8 + $0x120] sm:$0xf]
    %v4024 = vld [vmem:[#allocation8 + $0x124] sm:$0xf]
    %v4025 = vld [vmem:[#allocation8 + $0x128] sm:$0xf]
    %v4026 = vld [vmem:[#allocation8 + $0x12c] sm:$0xf]
    %v4027 = vld [vmem:[#allocation8 + $0x130] sm:$0xf]
    %v4028 = vld [vmem:[#allocation8 + $0x134] sm:$0xf]
    %v4029 = vld [vmem:[#allocation8 + $0x138] sm:$0xf]
    %v4030 = vld [vmem:[#allocation8 + $0x13c] sm:$0xf]
    %v4031 = vld [vmem:[#allocation8 + $0x140] sm:$0xf]
    %v4032 = vld [vmem:[#allocation8 + $0x144] sm:$0xf]
    %v4033 = vld [vmem:[#allocation8 + $0x148] sm:$0xf]
    %v4034 = vld [vmem:[#allocation8 + $0x14c] sm:$0xf]
    %v4035 = vld [vmem:[#allocation8 + $0x150] sm:$0xf]
    %v4036 = vld [vmem:[#allocation8 + $0x154] sm:$0xf]
    %v4037 = vld [vmem:[#allocation8 + $0x158] sm:$0xf]
    %v4038 = vld [vmem:[#allocation8 + $0x15c] sm:$0xf]
    %v4039 = vld [vmem:[#allocation8 + $0x160] sm:$0xf]
    %v4040 = vld [vmem:[#allocation8 + $0x164] sm:$0xf]
    %v4041 = vld [vmem:[#allocation8 + $0x168] sm:$0xf]
    %v4042 = vld [vmem:[#allocation8 + $0x16c] sm:$0xf]
    %v4043 = vld [vmem:[#allocation8 + $0x170] sm:$0xf]
    %v4044 = vld [vmem:[#allocation8 + $0x174] sm:$0xf]
    %v4045 = vld [vmem:[#allocation8 + $0x178] sm:$0xf]
    %v4046 = vld [vmem:[#allocation8 + $0x17c] sm:$0xf]
    %v4047 = vld [vmem:[#allocation8 + $0x180] sm:$0xf]
    %v4048 = vld [vmem:[#allocation8 + $0x184] sm:$0xf]
    %v4049 = vld [vmem:[#allocation8 + $0x188] sm:$0xf]
    %v4050 = vld [vmem:[#allocation8 + $0x18c] sm:$0xf]
    %v4051 = vld [vmem:[#allocation8 + $0x190] sm:$0xf]
    %v4052 = vld [vmem:[#allocation8 + $0x194] sm:$0xf]
    %v4053 = vld [vmem:[#allocation8 + $0x198] sm:$0xf]
    %v4054 = vld [vmem:[#allocation8 + $0x19c] sm:$0xf]
    %v4055 = vld [vmem:[#allocation8 + $0x1a0] sm:$0xf]
    %v4056 = vld [vmem:[#allocation8 + $0x1a4] sm:$0xf]
    %v4057 = vld [vmem:[#allocation8 + $0x1a8] sm:$0xf]
    %v4058 = vld [vmem:[#allocation8 + $0x1ac] sm:$0xf]
    %v4059 = vld [vmem:[#allocation8 + $0x1b0] sm:$0xf]
    %v4060 = vld [vmem:[#allocation8 + $0x1b4] sm:$0xf]
    %v4061 = vld [vmem:[#allocation8 + $0x1b8] sm:$0xf]
    %v4062 = vld [vmem:[#allocation8 + $0x1bc] sm:$0xf]
    %v4063 = vld [vmem:[#allocation8 + $0x1c0] sm:$0xf]
    %v4064 = vld [vmem:[#allocation8 + $0x1c4] sm:$0xf]
    %v4065 = vld [vmem:[#allocation8 + $0x1c8] sm:$0xf]
    %v4066 = vld [vmem:[#allocation8 + $0x1cc] sm:$0xf]
    %v4067 = vld [vmem:[#allocation8 + $0x1d0] sm:$0xf]
    %v4068 = vld [vmem:[#allocation8 + $0x1d4] sm:$0xf]
    %v4069 = vld [vmem:[#allocation8 + $0x1d8] sm:$0xf]
    %v4070 = vld [vmem:[#allocation8 + $0x1dc] sm:$0xf]
    %v4071 = vld [vmem:[#allocation8 + $0x1e0] sm:$0xf]
    %v4072 = vld [vmem:[#allocation8 + $0x1e4] sm:$0xf]
    %v4073 = vld [vmem:[#allocation8 + $0x1e8] sm:$0xf]
    %v4074 = vld [vmem:[#allocation8 + $0x1ec] sm:$0xf]
    %v4075 = vld [vmem:[#allocation8 + $0x1f0] sm:$0xf]
    %v4076 = vld [vmem:[#allocation8 + $0x1f4] sm:$0xf]
    %v4077 = vld [vmem:[#allocation8 + $0x1f8] sm:$0xf]
    %v4078 = vld [vmem:[#allocation8 + $0x1fc] sm:$0xf]
    %v4079 = vld [vmem:[#allocation10] sm:$0x1]
    %v4081 = vlaneseq
    %v4082 = vshrl.u32 %v4081, 7
    %v4083 = vsub.s32 0, %v4082
    %v4084 = vrot.slane %v4079, %v4083
    %v4214 = vunpack.c.l.b16 %v3951
    %v4215 = vunpack.c.l.b16 %v3952
    %v4216 = vunpack.c.l.b16 %v3953
    %v4217 = vunpack.c.l.b16 %v3954
    %v4218 = vunpack.c.l.b16 %v3955
    %v4219 = vunpack.c.l.b16 %v3956
    %v4220 = vunpack.c.l.b16 %v3957
    %v4221 = vunpack.c.l.b16 %v3958
    %v4222 = vunpack.c.l.b16 %v3959
    %v4223 = vunpack.c.l.b16 %v3960
    %v4224 = vunpack.c.l.b16 %v3961
    %v4225 = vunpack.c.l.b16 %v3962
    %v4226 = vunpack.c.l.b16 %v3963
    %v4227 = vunpack.c.l.b16 %v3964
    %v4228 = vunpack.c.l.b16 %v3965
    %v4229 = vunpack.c.l.b16 %v3966
    %v4230 = vunpack.c.l.b16 %v3967
    %v4231 = vunpack.c.l.b16 %v3968
    %v4232 = vunpack.c.l.b16 %v3969
    %v4233 = vunpack.c.l.b16 %v3970
    %v4234 = vunpack.c.l.b16 %v3971
    %v4235 = vunpack.c.l.b16 %v3972
    %v4236 = vunpack.c.l.b16 %v3973
    %v4237 = vunpack.c.l.b16 %v3974
    %v4238 = vunpack.c.l.b16 %v3975
    %v4239 = vunpack.c.l.b16 %v3976
    %v4240 = vunpack.c.l.b16 %v3977
    %v4241 = vunpack.c.l.b16 %v3978
    %v4242 = vunpack.c.l.b16 %v3979
    %v4243 = vunpack.c.l.b16 %v3980
    %v4244 = vunpack.c.l.b16 %v3981
    %v4245 = vunpack.c.l.b16 %v3982
    %v4246 = vunpack.c.l.b16 %v3983
    %v4247 = vunpack.c.l.b16 %v3984
    %v4248 = vunpack.c.l.b16 %v3985
    %v4249 = vunpack.c.l.b16 %v3986
    %v4250 = vunpack.c.l.b16 %v3987
    %v4251 = vunpack.c.l.b16 %v3988
    %v4252 = vunpack.c.l.b16 %v3989
    %v4253 = vunpack.c.l.b16 %v3990
    %v4254 = vunpack.c.l.b16 %v3991
    %v4255 = vunpack.c.l.b16 %v3992
    %v4256 = vunpack.c.l.b16 %v3993
    %v4257 = vunpack.c.l.b16 %v3994
    %v4258 = vunpack.c.l.b16 %v3995
    %v4259 = vunpack.c.l.b16 %v3996
    %v4260 = vunpack.c.l.b16 %v3997
    %v4261 = vunpack.c.l.b16 %v3998
    %v4262 = vunpack.c.l.b16 %v3999
    %v4263 = vunpack.c.l.b16 %v4000
    %v4264 = vunpack.c.l.b16 %v4001
    %v4265 = vunpack.c.l.b16 %v4002
    %v4266 = vunpack.c.l.b16 %v4003
    %v4267 = vunpack.c.l.b16 %v4004
    %v4268 = vunpack.c.l.b16 %v4005
    %v4269 = vunpack.c.l.b16 %v4006
    %v4270 = vunpack.c.l.b16 %v4007
    %v4271 = vunpack.c.l.b16 %v4008
    %v4272 = vunpack.c.l.b16 %v4009
    %v4273 = vunpack.c.l.b16 %v4010
    %v4274 = vunpack.c.l.b16 %v4011
    %v4275 = vunpack.c.l.b16 %v4012
    %v4276 = vunpack.c.l.b16 %v4013
    %v4277 = vunpack.c.l.b16 %v4014
    %v4278 = vunpack.c.l.b16 %v4015
    %v4279 = vunpack.c.l.b16 %v4016
    %v4280 = vunpack.c.l.b16 %v4017
    %v4281 = vunpack.c.l.b16 %v4018
    %v4282 = vunpack.c.l.b16 %v4019
    %v4283 = vunpack.c.l.b16 %v4020
    %v4284 = vunpack.c.l.b16 %v4021
    %v4285 = vunpack.c.l.b16 %v4022
    %v4286 = vunpack.c.l.b16 %v4023
    %v4287 = vunpack.c.l.b16 %v4024
    %v4288 = vunpack.c.l.b16 %v4025
    %v4289 = vunpack.c.l.b16 %v4026
    %v4290 = vunpack.c.l.b16 %v4027
    %v4291 = vunpack.c.l.b16 %v4028
    %v4292 = vunpack.c.l.b16 %v4029
    %v4293 = vunpack.c.l.b16 %v4030
    %v4294 = vunpack.c.l.b16 %v4031
    %v4295 = vunpack.c.l.b16 %v4032
    %v4296 = vunpack.c.l.b16 %v4033
    %v4297 = vunpack.c.l.b16 %v4034
    %v4298 = vunpack.c.l.b16 %v4035
    %v4299 = vunpack.c.l.b16 %v4036
    %v4300 = vunpack.c.l.b16 %v4037
    %v4301 = vunpack.c.l.b16 %v4038
    %v4302 = vunpack.c.l.b16 %v4039
    %v4303 = vunpack.c.l.b16 %v4040
    %v4304 = vunpack.c.l.b16 %v4041
    %v4305 = vunpack.c.l.b16 %v4042
    %v4306 = vunpack.c.l.b16 %v4043
    %v4307 = vunpack.c.l.b16 %v4044
    %v4308 = vunpack.c.l.b16 %v4045
    %v4309 = vunpack.c.l.b16 %v4046
    %v4310 = vunpack.c.l.b16 %v4047
    %v4311 = vunpack.c.l.b16 %v4048
    %v4312 = vunpack.c.l.b16 %v4049
    %v4313 = vunpack.c.l.b16 %v4050
    %v4314 = vunpack.c.l.b16 %v4051
    %v4315 = vunpack.c.l.b16 %v4052
    %v4316 = vunpack.c.l.b16 %v4053
    %v4317 = vunpack.c.l.b16 %v4054
    %v4318 = vunpack.c.l.b16 %v4055
    %v4319 = vunpack.c.l.b16 %v4056
    %v4320 = vunpack.c.l.b16 %v4057
    %v4321 = vunpack.c.l.b16 %v4058
    %v4322 = vunpack.c.l.b16 %v4059
    %v4323 = vunpack.c.l.b16 %v4060
    %v4324 = vunpack.c.l.b16 %v4061
    %v4325 = vunpack.c.l.b16 %v4062
    %v4326 = vunpack.c.l.b16 %v4063
    %v4327 = vunpack.c.l.b16 %v4064
    %v4328 = vunpack.c.l.b16 %v4065
    %v4329 = vunpack.c.l.b16 %v4066
    %v4330 = vunpack.c.l.b16 %v4067
    %v4331 = vunpack.c.l.b16 %v4068
    %v4332 = vunpack.c.l.b16 %v4069
    %v4333 = vunpack.c.l.b16 %v4070
    %v4334 = vunpack.c.l.b16 %v4071
    %v4335 = vunpack.c.l.b16 %v4072
    %v4336 = vunpack.c.l.b16 %v4073
    %v4337 = vunpack.c.l.b16 %v4074
    %v4338 = vunpack.c.l.b16 %v4075
    %v4339 = vunpack.c.l.b16 %v4076
    %v4340 = vunpack.c.l.b16 %v4077
    %v4341 = vunpack.c.l.b16 %v4078
    %v4342 = vpack.c.b16 %v4215, %v4214
    %v4343 = vpack.c.b16 %v4217, %v4216
    %v4344 = vpack.c.b16 %v4219, %v4218
    %v4345 = vpack.c.b16 %v4221, %v4220
    %v4346 = vpack.c.b16 %v4223, %v4222
    %v4347 = vpack.c.b16 %v4225, %v4224
    %v4348 = vpack.c.b16 %v4227, %v4226
    %v4349 = vpack.c.b16 %v4229, %v4228
    %v4350 = vpack.c.b16 %v4231, %v4230
    %v4351 = vpack.c.b16 %v4233, %v4232
    %v4352 = vpack.c.b16 %v4235, %v4234
    %v4353 = vpack.c.b16 %v4237, %v4236
    %v4354 = vpack.c.b16 %v4239, %v4238
    %v4355 = vpack.c.b16 %v4241, %v4240
    %v4356 = vpack.c.b16 %v4243, %v4242
    %v4357 = vpack.c.b16 %v4245, %v4244
    %v4358 = vpack.c.b16 %v4247, %v4246
    %v4359 = vpack.c.b16 %v4249, %v4248
    %v4360 = vpack.c.b16 %v4251, %v4250
    %v4361 = vpack.c.b16 %v4253, %v4252
    %v4362 = vpack.c.b16 %v4255, %v4254
    %v4363 = vpack.c.b16 %v4257, %v4256
    %v4364 = vpack.c.b16 %v4259, %v4258
    %v4365 = vpack.c.b16 %v4261, %v4260
    %v4366 = vpack.c.b16 %v4263, %v4262
    %v4367 = vpack.c.b16 %v4265, %v4264
    %v4368 = vpack.c.b16 %v4267, %v4266
    %v4369 = vpack.c.b16 %v4269, %v4268
    %v4370 = vpack.c.b16 %v4271, %v4270
    %v4371 = vpack.c.b16 %v4273, %v4272
    %v4372 = vpack.c.b16 %v4275, %v4274
    %v4373 = vpack.c.b16 %v4277, %v4276
    %v4374 = vpack.c.b16 %v4279, %v4278
    %v4375 = vpack.c.b16 %v4281, %v4280
    %v4376 = vpack.c.b16 %v4283, %v4282
    %v4377 = vpack.c.b16 %v4285, %v4284
    %v4378 = vpack.c.b16 %v4287, %v4286
    %v4379 = vpack.c.b16 %v4289, %v4288
    %v4380 = vpack.c.b16 %v4291, %v4290
    %v4381 = vpack.c.b16 %v4293, %v4292
    %v4382 = vpack.c.b16 %v4295, %v4294
    %v4383 = vpack.c.b16 %v4297, %v4296
    %v4384 = vpack.c.b16 %v4299, %v4298
    %v4385 = vpack.c.b16 %v4301, %v4300
    %v4386 = vpack.c.b16 %v4303, %v4302
    %v4387 = vpack.c.b16 %v4305, %v4304
    %v4388 = vpack.c.b16 %v4307, %v4306
    %v4389 = vpack.c.b16 %v4309, %v4308
    %v4390 = vpack.c.b16 %v4311, %v4310
    %v4391 = vpack.c.b16 %v4313, %v4312
    %v4392 = vpack.c.b16 %v4315, %v4314
    %v4393 = vpack.c.b16 %v4317, %v4316
    %v4394 = vpack.c.b16 %v4319, %v4318
    %v4395 = vpack.c.b16 %v4321, %v4320
    %v4396 = vpack.c.b16 %v4323, %v4322
    %v4397 = vpack.c.b16 %v4325, %v4324
    %v4398 = vpack.c.b16 %v4327, %v4326
    %v4399 = vpack.c.b16 %v4329, %v4328
    %v4400 = vpack.c.b16 %v4331, %v4330
    %v4401 = vpack.c.b16 %v4333, %v4332
    %v4402 = vpack.c.b16 %v4335, %v4334
    %v4403 = vpack.c.b16 %v4337, %v4336
    %v4404 = vpack.c.b16 %v4339, %v4338
    %v4405 = vpack.c.b16 %v4341, %v4340
    %4470 = vmatprep.subr.bf16.mxu0 0
    %4471 = vmatpush1.bf16.msra.mxu0 %v4342
    %4472 = vmatprep.subr.bf16.mxu0 0
    %4473 = vmatpush1.bf16.msra.mxu0 %v4343
    %4474 = vmatprep.subr.bf16.mxu0 0
    %4475 = vmatpush1.bf16.msra.mxu0 %v4344
    %4476 = vmatprep.subr.bf16.mxu0 0
    %4477 = vmatpush1.bf16.msra.mxu0 %v4345
    %4478 = vmatprep.subr.bf16.mxu0 0
    %4479 = vmatpush1.bf16.msra.mxu0 %v4346
    %4480 = vmatprep.subr.bf16.mxu0 0
    %4481 = vmatpush1.bf16.msra.mxu0 %v4347
    %4482 = vmatprep.subr.bf16.mxu0 0
    %4483 = vmatpush1.bf16.msra.mxu0 %v4348
    %4484 = vmatprep.subr.bf16.mxu0 0
    %4485 = vmatpush1.bf16.msra.mxu0 %v4349
    %4486 = vmatprep.subr.bf16.mxu0 0
    %4487 = vmatpush1.bf16.msra.mxu0 %v4350
    %4488 = vmatprep.subr.bf16.mxu0 0
    %4489 = vmatpush1.bf16.msra.mxu0 %v4351
    %4490 = vmatprep.subr.bf16.mxu0 0
    %4491 = vmatpush1.bf16.msra.mxu0 %v4352
    %4492 = vmatprep.subr.bf16.mxu0 0
    %4493 = vmatpush1.bf16.msra.mxu0 %v4353
    %4494 = vmatprep.subr.bf16.mxu0 0
    %4495 = vmatpush1.bf16.msra.mxu0 %v4354
    %4496 = vmatprep.subr.bf16.mxu0 0
    %4497 = vmatpush1.bf16.msra.mxu0 %v4355
    %4498 = vmatprep.subr.bf16.mxu0 0
    %4499 = vmatpush1.bf16.msra.mxu0 %v4356
    %4500 = vmatprep.subr.bf16.mxu0 0
    %4501 = vmatpush1.bf16.msra.mxu0 %v4357
    %4502 = vmatprep.mubr.bf16.mxu0 %v3944
    %4503 = vmatmul.mubr.bf16.gmra.mrb[0].mxu0 %v3943
    %v4504 = vpop.f32.mrb[0].mxu0
    %v4505 = vadd.f32 %v4084, %v4504
    %v4506 = vpop.f32.mrb[0].mxu0
    %v4507 = vpop.f32.mrb[0].mxu0
    %v4508 = vpop.f32.mrb[0].mxu0
    %4509 = vdwg.mxu0
    %4510 = vmatprep.subr.bf16.mxu0 0
    %4511 = vmatpush1.bf16.msra.mxu0 %v4358
    %4512 = vmatprep.subr.bf16.mxu0 0
    %4513 = vmatpush1.bf16.msra.mxu0 %v4359
    %4514 = vmatprep.subr.bf16.mxu0 0
    %4515 = vmatpush1.bf16.msra.mxu0 %v4360
    %4516 = vmatprep.subr.bf16.mxu0 0
    %4517 = vmatpush1.bf16.msra.mxu0 %v4361
    %4518 = vmatprep.subr.bf16.mxu0 0
    %4519 = vmatpush1.bf16.msra.mxu0 %v4362
    %4520 = vmatprep.subr.bf16.mxu0 0
    %4521 = vmatpush1.bf16.msra.mxu0 %v4363
    %4522 = vmatprep.subr.bf16.mxu0 0
    %4523 = vmatpush1.bf16.msra.mxu0 %v4364
    %4524 = vmatprep.subr.bf16.mxu0 0
    %4525 = vmatpush1.bf16.msra.mxu0 %v4365
    %4526 = vmatprep.subr.bf16.mxu0 0
    %4527 = vmatpush1.bf16.msra.mxu0 %v4366
    %4528 = vmatprep.subr.bf16.mxu0 0
    %4529 = vmatpush1.bf16.msra.mxu0 %v4367
    %4530 = vmatprep.subr.bf16.mxu0 0
    %4531 = vmatpush1.bf16.msra.mxu0 %v4368
    %4532 = vmatprep.subr.bf16.mxu0 0
    %4533 = vmatpush1.bf16.msra.mxu0 %v4369
    %4534 = vmatprep.subr.bf16.mxu0 0
    %4535 = vmatpush1.bf16.msra.mxu0 %v4370
    %4536 = vmatprep.subr.bf16.mxu0 0
    %4537 = vmatpush1.bf16.msra.mxu0 %v4371
    %4538 = vmatprep.subr.bf16.mxu0 0
    %4539 = vmatpush1.bf16.msra.mxu0 %v4372
    %4540 = vmatprep.subr.bf16.mxu0 0
    %4541 = vmatpush1.bf16.msra.mxu0 %v4373
    %4542 = vmatprep.mubr.bf16.mxu0 %v3946
    %4543 = vmatmul.mubr.bf16.gmra.mrb[0].mxu0 %v3945
    %v4544 = vpop.f32.mrb[0].mxu0
    %v4545 = vadd.f32 %v4505, %v4544
    %v4546 = vpop.f32.mrb[0].mxu0
    %v4547 = vpop.f32.mrb[0].mxu0
    %v4548 = vpop.f32.mrb[0].mxu0
    %4549 = vdwg.mxu0
    %4550 = vmatprep.subr.bf16.mxu0 0
    %4551 = vmatpush1.bf16.msra.mxu0 %v4374
    %4552 = vmatprep.subr.bf16.mxu0 0
    %4553 = vmatpush1.bf16.msra.mxu0 %v4375
    %4554 = vmatprep.subr.bf16.mxu0 0
    %4555 = vmatpush1.bf16.msra.mxu0 %v4376
    %4556 = vmatprep.subr.bf16.mxu0 0
    %4557 = vmatpush1.bf16.msra.mxu0 %v4377
    %4558 = vmatprep.subr.bf16.mxu0 0
    %4559 = vmatpush1.bf16.msra.mxu0 %v4378
    %4560 = vmatprep.subr.bf16.mxu0 0
    %4561 = vmatpush1.bf16.msra.mxu0 %v4379
    %4562 = vmatprep.subr.bf16.mxu0 0
    %4563 = vmatpush1.bf16.msra.mxu0 %v4380
    %4564 = vmatprep.subr.bf16.mxu0 0
    %4565 = vmatpush1.bf16.msra.mxu0 %v4381
    %4566 = vmatprep.subr.bf16.mxu0 0
    %4567 = vmatpush1.bf16.msra.mxu0 %v4382
    %4568 = vmatprep.subr.bf16.mxu0 0
    %4569 = vmatpush1.bf16.msra.mxu0 %v4383
    %4570 = vmatprep.subr.bf16.mxu0 0
    %4571 = vmatpush1.bf16.msra.mxu0 %v4384
    %4572 = vmatprep.subr.bf16.mxu0 0
    %4573 = vmatpush1.bf16.msra.mxu0 %v4385
    %4574 = vmatprep.subr.bf16.mxu0 0
    %4575 = vmatpush1.bf16.msra.mxu0 %v4386
    %4576 = vmatprep.subr.bf16.mxu0 0
    %4577 = vmatpush1.bf16.msra.mxu0 %v4387
    %4578 = vmatprep.subr.bf16.mxu0 0
    %4579 = vmatpush1.bf16.msra.mxu0 %v4388
    %4580 = vmatprep.subr.bf16.mxu0 0
    %4581 = vmatpush1.bf16.msra.mxu0 %v4389
    %4582 = vmatprep.mubr.bf16.mxu0 %v3948
    %4583 = vmatmul.mubr.bf16.gmra.mrb[0].mxu0 %v3947
    %v4584 = vpop.f32.mrb[0].mxu0
    %v4585 = vadd.f32 %v4545, %v4584
    %v4586 = vpop.f32.mrb[0].mxu0
    %v4587 = vpop.f32.mrb[0].mxu0
    %v4588 = vpop.f32.mrb[0].mxu0
    %4589 = vdwg.mxu0
    %4590 = vmatprep.subr.bf16.mxu0 0
    %4591 = vmatpush1.bf16.msra.mxu0 %v4390
    %4592 = vmatprep.subr.bf16.mxu0 0
    %4593 = vmatpush1.bf16.msra.mxu0 %v4391
    %4594 = vmatprep.subr.bf16.mxu0 0
    %4595 = vmatpush1.bf16.msra.mxu0 %v4392
    %4596 = vmatprep.subr.bf16.mxu0 0
    %4597 = vmatpush1.bf16.msra.mxu0 %v4393
    %4598 = vmatprep.subr.bf16.mxu0 0
    %4599 = vmatpush1.bf16.msra.mxu0 %v4394
    %4600 = vmatprep.subr.bf16.mxu0 0
    %4601 = vmatpush1.bf16.msra.mxu0 %v4395
    %4602 = vmatprep.subr.bf16.mxu0 0
    %4603 = vmatpush1.bf16.msra.mxu0 %v4396
    %4604 = vmatprep.subr.bf16.mxu0 0
    %4605 = vmatpush1.bf16.msra.mxu0 %v4397
    %4606 = vmatprep.subr.bf16.mxu0 0
    %4607 = vmatpush1.bf16.msra.mxu0 %v4398
    %4608 = vmatprep.subr.bf16.mxu0 0
    %4609 = vmatpush1.bf16.msra.mxu0 %v4399
    %4610 = vmatprep.subr.bf16.mxu0 0
    %4611 = vmatpush1.bf16.msra.mxu0 %v4400
    %4612 = vmatprep.subr.bf16.mxu0 0
    %4613 = vmatpush1.bf16.msra.mxu0 %v4401
    %4614 = vmatprep.subr.bf16.mxu0 0
    %4615 = vmatpush1.bf16.msra.mxu0 %v4402
    %4616 = vmatprep.subr.bf16.mxu0 0
    %4617 = vmatpush1.bf16.msra.mxu0 %v4403
    %4618 = vmatprep.subr.bf16.mxu0 0
    %4619 = vmatpush1.bf16.msra.mxu0 %v4404
    %4620 = vmatprep.subr.bf16.mxu0 0
    %4621 = vmatpush1.bf16.msra.mxu0 %v4405
    %4622 = vmatprep.mubr.bf16.mxu0 %v3950
    %4623 = vmatmul.mubr.bf16.gmra.mrb[0].mxu0 %v3949
    %v4624 = vpop.f32.mrb[0].mxu0
    %v4625 = vadd.f32 %v4585, %v4624
    %v4626 = vpop.f32.mrb[0].mxu0
    %v4627 = vpop.f32.mrb[0].mxu0
    %v4628 = vpop.f32.mrb[0].mxu0
    %4629 = vdwg.mxu0
    %v4630 = vmax.f32 %v4625, 0.0
    %v4631 = vpack.c.bf16 %v4630, %v4630
    %v4632 = vld [vmem:[%s5] sm:$0xf]
    %v4633 = vld [vmem:[%s5 + $0x4] sm:$0xf]
    %v4634 = vld [vmem:[%s5 + $0x8] sm:$0xf]
    %v4635 = vld [vmem:[%s5 + $0xc] sm:$0xf]
    %v4636 = vld [vmem:[%s5 + $0x10] sm:$0xf]
    %v4637 = vld [vmem:[%s5 + $0x14] sm:$0xf]
    %v4638 = vld [vmem:[%s5 + $0x18] sm:$0xf]
    %v4639 = vld [vmem:[%s5 + $0x1c] sm:$0xf]
    %v4640 = vld [vmem:[%s5 + $0x20] sm:$0xf]
    %v4641 = vld [vmem:[%s5 + $0x24] sm:$0xf]
    %v4642 = vld [vmem:[%s5 + $0x28] sm:$0xf]
    %v4643 = vld [vmem:[%s5 + $0x2c] sm:$0xf]
    %v4644 = vld [vmem:[%s5 + $0x30] sm:$0xf]
    %v4645 = vld [vmem:[%s5 + $0x34] sm:$0xf]
    %v4646 = vld [vmem:[%s5 + $0x38] sm:$0xf]
    %v4647 = vld [vmem:[%s5 + $0x3c] sm:$0xf]
    %v4648 = vld [vmem:[#allocation11] sm:$0x1]
    %v4650 = vlaneseq
    %v4651 = vshrl.u32 %v4650, 7
    %v4652 = vsub.s32 0, %v4651
    %v4653 = vrot.slane %v4648, %v4652
    %v4671 = vunpack.c.l.b16 %v4632
    %v4672 = vunpack.c.l.b16 %v4633
    %v4673 = vunpack.c.l.b16 %v4634
    %v4674 = vunpack.c.l.b16 %v4635
    %v4675 = vunpack.c.l.b16 %v4636
    %v4676 = vunpack.c.l.b16 %v4637
    %v4677 = vunpack.c.l.b16 %v4638
    %v4678 = vunpack.c.l.b16 %v4639
    %v4679 = vunpack.c.l.b16 %v4640
    %v4680 = vunpack.c.l.b16 %v4641
    %v4681 = vunpack.c.l.b16 %v4642
    %v4682 = vunpack.c.l.b16 %v4643
    %v4683 = vunpack.c.l.b16 %v4644
    %v4684 = vunpack.c.l.b16 %v4645
    %v4685 = vunpack.c.l.b16 %v4646
    %v4686 = vunpack.c.l.b16 %v4647
    %v4687 = vpack.c.b16 %v4672, %v4671
    %v4688 = vpack.c.b16 %v4674, %v4673
    %v4689 = vpack.c.b16 %v4676, %v4675
    %v4690 = vpack.c.b16 %v4678, %v4677
    %v4691 = vpack.c.b16 %v4680, %v4679
    %v4692 = vpack.c.b16 %v4682, %v4681
    %v4693 = vpack.c.b16 %v4684, %v4683
    %v4694 = vpack.c.b16 %v4686, %v4685
    %4703 = vmatprep.subr.bf16.mxu0 0
    %4704 = vmatpush1.bf16.msra.mxu0 %v4687
    %4705 = vmatprep.subr.bf16.mxu0 0
    %4706 = vmatpush1.bf16.msra.mxu0 %v4688
    %4707 = vmatprep.subr.bf16.mxu0 0
    %4708 = vmatpush1.bf16.msra.mxu0 %v4689
    %4709 = vmatprep.subr.bf16.mxu0 0
    %4710 = vmatpush1.bf16.msra.mxu0 %v4690
    %4711 = vmatprep.subr.bf16.mxu0 0
    %4712 = vmatpush1.bf16.msra.mxu0 %v4691
    %4713 = vmatprep.subr.bf16.mxu0 0
    %4714 = vmatpush1.bf16.msra.mxu0 %v4692
    %4715 = vmatprep.subr.bf16.mxu0 0
    %4716 = vmatpush1.bf16.msra.mxu0 %v4693
    %4717 = vmatprep.subr.bf16.mxu0 0
    %4718 = vmatpush1.bf16.msra.mxu0 %v4694
    %4719 = vmatprep.subr.bf16.mxu0 0
    %4720 = vmatpush1.bf16.msra.mxu0 0
    %4721 = vmatprep.subr.bf16.mxu0 0
    %4722 = vmatpush1.bf16.msra.mxu0 0
    %4723 = vmatprep.subr.bf16.mxu0 0
    %4724 = vmatpush1.bf16.msra.mxu0 0
    %4725 = vmatprep.subr.bf16.mxu0 0
    %4726 = vmatpush1.bf16.msra.mxu0 0
    %4727 = vmatprep.subr.bf16.mxu0 0
    %4728 = vmatpush1.bf16.msra.mxu0 0
    %4729 = vmatprep.subr.bf16.mxu0 0
    %4730 = vmatpush1.bf16.msra.mxu0 0
    %4731 = vmatprep.subr.bf16.mxu0 0
    %4732 = vmatpush1.bf16.msra.mxu0 0
    %4733 = vmatprep.subr.bf16.mxu0 0
    %4734 = vmatpush1.bf16.msra.mxu0 0
    %4735 = vmatprep.mubr.bf16.mxu0 0
    %4736 = vmatmul.mubr.bf16.gmra.mrb[0].mxu0 %v4631
    %v4737 = vpop.f32.mrb[0].mxu0
    %v4738 = vadd.f32 %v4653, %v4737
    %v4739 = vpop.f32.mrb[0].mxu0
    %v4740 = vpop.f32.mrb[0].mxu0
    %v4741 = vpop.f32.mrb[0].mxu0
    %4742 = vdwg.mxu0
    %v4743 = vmax.f32 %v4738, 0.0
    %v4744 = vpack.c.bf16 %v4743, %v4743
    %v4745 = vld [vmem:[#allocation13] sm:$0xf]
    %v4746 = vld [vmem:[#allocation13 + $0x4] sm:$0xf]
    %v4747 = vld [vmem:[#allocation13 + $0x8] sm:$0xf]
    %v4748 = vld [vmem:[#allocation13 + $0xc] sm:$0xf]
    %v4749 = vld [vmem:[#allocation13 + $0x10] sm:$0xf]
    %v4750 = vld [vmem:[#allocation13 + $0x14] sm:$0xf]
    %v4751 = vld [vmem:[#allocation13 + $0x18] sm:$0xf]
    %v4752 = vld [vmem:[#allocation13 + $0x1c] sm:$0xf]
    %v4753 = vld [vmem:[#allocation14] sm:$0x1]
    %v4755 = vlaneseq
    %v4756 = vshrl.u32 %v4755, 7
    %v4757 = vsub.s32 0, %v4756
    %v4758 = vrot.slane %v4753, %v4757
    %v4768 = vunpack.c.l.b16 %v4745
    %v4769 = vunpack.c.l.b16 %v4746
    %v4770 = vunpack.c.l.b16 %v4747
    %v4771 = vunpack.c.l.b16 %v4748
    %v4772 = vunpack.c.l.b16 %v4749
    %v4773 = vunpack.c.l.b16 %v4750
    %v4774 = vunpack.c.l.b16 %v4751
    %v4775 = vunpack.c.l.b16 %v4752
    %v4776 = vpack.c.b16 %v4769, %v4768
    %v4777 = vpack.c.b16 %v4771, %v4770
    %v4778 = vpack.c.b16 %v4773, %v4772
    %v4779 = vpack.c.b16 %v4775, %v4774
    %vm4784 = vcmask 523264
    %v4786 = vsel %vm4784, %v4744, 0
    %4788 = vmatprep.subr.bf16.mxu0 0
    %4789 = vmatpush1.bf16.msra.mxu0 %v4776
    %4790 = vmatprep.subr.bf16.mxu0 0
    %4791 = vmatpush1.bf16.msra.mxu0 %v4777
    %4792 = vmatprep.subr.bf16.mxu0 0
    %4793 = vmatpush1.bf16.msra.mxu0 %v4778
    %4794 = vmatprep.subr.bf16.mxu0 0
    %4795 = vmatpush1.bf16.msra.mxu0 %v4779
    %4796 = vmatprep.subr.bf16.mxu0 0
    %4797 = vmatpush1.bf16.msra.mxu0 0
    %4798 = vmatprep.subr.bf16.mxu0 0
    %4799 = vmatpush1.bf16.msra.mxu0 0
    %4800 = vmatprep.subr.bf16.mxu0 0
    %4801 = vmatpush1.bf16.msra.mxu0 0
    %4802 = vmatprep.subr.bf16.mxu0 0
    %4803 = vmatpush1.bf16.msra.mxu0 0
    %4804 = vmatprep.subr.bf16.mxu0 0
    %4805 = vmatpush1.bf16.msra.mxu0 0
    %4806 = vmatprep.subr.bf16.mxu0 0
    %4807 = vmatpush1.bf16.msra.mxu0 0
    %4808 = vmatprep.subr.bf16.mxu0 0
    %4809 = vmatpush1.bf16.msra.mxu0 0
    %4810 = vmatprep.subr.bf16.mxu0 0
    %4811 = vmatpush1.bf16.msra.mxu0 0
    %4812 = vmatprep.subr.bf16.mxu0 0
    %4813 = vmatpush1.bf16.msra.mxu0 0
    %4814 = vmatprep.subr.bf16.mxu0 0
    %4815 = vmatpush1.bf16.msra.mxu0 0
    %4816 = vmatprep.subr.bf16.mxu0 0
    %4817 = vmatpush1.bf16.msra.mxu0 0
    %4818 = vmatprep.subr.bf16.mxu0 0
    %4819 = vmatpush1.bf16.msra.mxu0 0
    %4820 = vmatprep.mubr.bf16.mxu0 0
    %4821 = vmatmul.mubr.bf16.gmra.mrb[0].mxu0 %v4786
    %v4822 = vpop.f32.mrb[0].mxu0
    %v4823 = vadd.f32 %v4758, %v4822
    %v4824 = vpop.f32.mrb[0].mxu0
    %v4825 = vpop.f32.mrb[0].mxu0
    %v4826 = vpop.f32.mrb[0].mxu0
    %4827 = vdwg.mxu0
    %4828 = vmax.xlane.f32.xlu0 %v4823
    %v4829 = vpop.xlane.xlu0 %4828
    %v4830 = vsub.f32 %v4823, %v4829
    %v4831 = vmul.f32 %v4830, 1.442695
    %v4832 = vpow.pop %v4831
    %4833 = vadd.xlane.f32.xlu0 %v4832
    %v4834 = vpop.xlane.xlu0 %4833
    %v4835 = vrcp.pop %v4834
    %v4836 = vmul.f32 %v4832, %v4835
    %4837 = vst [vmem:[#allocation16] sm:$0xff] %v4836
    // Predicated region
    $region70: #{tpu_custom_call.1} parent=1 // pred_check
      _
    $region71: #{tpu_custom_call.1} parent=1 // pred_check_branch
      %4839 = sbr.rel (0) target = $region73
    $region72: #{tpu_custom_call.1} parent=1 // pred_region
      %s4841 = ssub.s32 128, 128
      %4842 = vsyncadd [#allocation4], %s4841
      %s4844 = sshll.u32 [#allocation16], 4
      %s4845 = int_to_ptr.vmem [resolvable:$true] %s4844
      %4847 = dma.vmem_to_hbm [thread:$0]  %s4845, 128, %s9, [#allocation4]
    $region73: #{tpu_custom_call.1} parent=1 // pred_fallthru
      _
    // Predicated region
    $region74: #{tpu_custom_call.1} parent=1 // pred_check
      _
    $region75: #{tpu_custom_call.1} parent=1 // pred_check_branch
      %4849 = sbr.rel (0) target = $region77
    $region76: #{tpu_custom_call.1} parent=1 // pred_region
      %4850 = dma.done [#allocation4], 128
    $region77: #{tpu_custom_call.1} parent=1 // pred_fallthru
      _
    %4851 = vsyncpa [#allocation3], 1
    %4852 = vsyncpa [#allocation6], 1
    %4853 = vsyncpa [#allocation9], 1
    %4854 = vsyncpa [#allocation12], 1
    %4855 = vsyncpa [#allocation15], 1
    %4856 = vsyncpa [#allocation4], 1

</llo_original>
